<compile_context>
chip_gen: v5e
topology: v5e:2x2
jax: 0.10.0
libtpu: 0.0.40
codegen_flags: <defaults>
</compile_context>

<pallas_src>
import functools

import numpy as np

import jax
import jax.numpy as jnp
from jax.experimental import pallas as pl
from jax.experimental.pallas import tpu as pltpu

EPS = 1e-5


# ----------------------------------------------------------------------------
# Kernel 1: one full branch (3x conv3x3+BN+ReLU, conv2x2/s2+BN+ReLU)
#   grid = (3,) over branches, "parallel" (uses both TCs on v7x).
# ----------------------------------------------------------------------------
def branch_kernel(x_ref, kvp_ref, krd_ref, vrow_ref, svp_ref, srd_ref, gg_ref,
                  out_ref, z_ref):
    CN, P = x_ref.shape                 # (4*N, H*W) = (32, 72)
    N, PR = out_ref.shape               # (N, Hr*Wr) = (8, 18)
    n_vp = kvp_ref.shape[0] // (9 * CN)  # 3 volume-preserving conv blocks

    gg = gg_ref[...]                    # (CN, CN) channel-group averaging mask
    gamma1 = vrow_ref[:, 3:4]           # (CN, 1) shared BN gamma (rows = channel,batch)
    beta1 = vrow_ref[:, 4:5]            # (CN, 1) shared BN beta

    y = x_ref[...]                      # (CN, P) activation, rows ordered (channel, image)
    inv_cnt = 1.0 / float(N * P)

    # --- 3x [conv3x3(pad=1) -> shared BatchNorm2d(batch stats) -> ReLU] ---
    for l in range(n_vp):
        # channel mixing for all 9 taps in a single MXU matmul
        z_ref[...] = jnp.dot(kvp_ref[l * 9 * CN:(l + 1) * 9 * CN, :], y,
                             preferred_element_type=jnp.float32)        # (9*CN, P)
        # spatial shifts (zero padding encoded in the constant S_t matrices)
        acc = jnp.dot(z_ref[0:CN, :], svp_ref[0:P, :],
                      preferred_element_type=jnp.float32)
        for t in range(1, 9):
            acc = acc + jnp.dot(z_ref[t * CN:(t + 1) * CN, :],
                                svp_ref[t * P:(t + 1) * P, :],
                                preferred_element_type=jnp.float32)
        yb = acc + vrow_ref[:, l:l + 1]                                  # conv bias

        # BatchNorm2d, one-pass batch statistics per channel (biased variance)
        m_rows = jnp.sum(jnp.dot(gg, yb, preferred_element_type=jnp.float32),
                         axis=1, keepdims=True) * inv_cnt               # (CN, 1)
        sq_rows = jnp.sum(jnp.dot(gg, yb * yb, preferred_element_type=jnp.float32),
                          axis=1, keepdims=True) * inv_cnt
        var_rows = sq_rows - m_rows * m_rows
        y = jnp.maximum((yb - m_rows) * jax.lax.rsqrt(var_rows + EPS) * gamma1
                        + beta1, 0.0)

    # --- reducing conv 2x2 / stride 2 / pad 0 -> BatchNorm2d(1 ch) -> ReLU ---
    z_ref[0:4 * N, :] = jnp.dot(krd_ref[...], y, preferred_element_type=jnp.float32)
    r = jnp.dot(z_ref[0:N, :], srd_ref[0:P, :], preferred_element_type=jnp.float32)
    for t in range(1, 4):
        r = r + jnp.dot(z_ref[t * N:(t + 1) * N, :],
                        srd_ref[t * P:(t + 1) * P, :],
                        preferred_element_type=jnp.float32)
    r = r + vrow_ref[0:N, 5:6]                                           # conv bias

    inv_cnt_r = 1.0 / float(N * PR)
    m = jnp.sum(jnp.sum(r, axis=1, keepdims=True), axis=0, keepdims=True) * inv_cnt_r
    sq = jnp.sum(jnp.sum(r * r, axis=1, keepdims=True), axis=0, keepdims=True) * inv_cnt_r
    var = sq - m * m
    g2 = vrow_ref[0:1, 6:7]
    b2 = vrow_ref[0:1, 7:8]
    # rows = image n, columns = (h, w) row-major  ==  torch flatten order of (N,1,3,6)
    out_ref[...] = jnp.maximum((r - m) * jax.lax.rsqrt(var + EPS) * g2 + b2, 0.0)


def branch_features(xin, pk):
    """xin: (3, 4*N, H*W) packed branch inputs -> (3, N, Hr*Wr) branch features."""
    NB, CN, P = xin.shape
    N, PR = pk["N"], pk["PR"]

    def per_branch(shape):
        nd = len(shape)
        return pl.BlockSpec((None,) + tuple(shape[1:]),
                            lambda b: (b,) + (0,) * (nd - 1))

    def shared(shape):
        nd = len(shape)
        return pl.BlockSpec(tuple(shape), lambda b: (0,) * nd)

    return pl.pallas_call(
        branch_kernel,
        out_shape=jax.ShapeDtypeStruct((NB, N, PR), jnp.float32),
        grid=(NB,),
        in_specs=[per_branch(xin.shape),
                  per_branch(pk["kvp"].shape),
                  per_branch(pk["krd"].shape),
                  per_branch(pk["vrow"].shape),
                  shared(pk["svp"].shape),
                  shared(pk["srd"].shape),
                  shared(pk["gg"].shape)],
        out_specs=per_branch((NB, N, PR)),
        scratch_shapes=[pltpu.VMEM((9 * CN, P), jnp.float32)],
        compiler_params=pltpu.CompilerParams(dimension_semantics=("parallel",)),
    )(xin, pk["kvp"], pk["krd"], pk["vrow"], pk["svp"], pk["srd"], pk["gg"])


# ----------------------------------------------------------------------------
# Kernel 2: fused FC head (concat + 3x [Linear+BN1d+ReLU] + final Linear)
# ----------------------------------------------------------------------------
def fc_kernel(feat_ref, w1s_ref, w2_ref, w3_ref, wf_ref, fcv_ref, bf_ref, out_ref):
    def bn_relu(y, l):
        v = fcv_ref[l]                                   # (8, H): rows [bias, gamma, beta, ...]
        yb = y + v[0:1, :]
        m = jnp.mean(yb, axis=0, keepdims=True)          # batch stats (BatchNorm1d)
        var = jnp.mean(yb * yb, axis=0, keepdims=True) - m * m
        return jnp.maximum((yb - m) * jax.lax.rsqrt(var + EPS) * v[1:2, :]
                           + v[2:3, :], 0.0)

    # cat(flatten(b0), flatten(b1), flatten(b2)) @ W1  ==  sum_b feat_b @ W1[18b:18b+18]
    h = jnp.dot(feat_ref[0], w1s_ref[0], preferred_element_type=jnp.float32)
    h = h + jnp.dot(feat_ref[1], w1s_ref[1], preferred_element_type=jnp.float32)
    h = h + jnp.dot(feat_ref[2], w1s_ref[2], preferred_element_type=jnp.float32)
    h = bn_relu(h, 0)
    # TODO(synk): nn.Dropout is modeled as eval-mode identity (deterministic forward).
    h = bn_relu(jnp.dot(h, w2_ref[...], preferred_element_type=jnp.float32), 1)
    h = bn_relu(jnp.dot(h, w3_ref[...], preferred_element_type=jnp.float32), 2)
    out_ref[...] = jnp.dot(h, wf_ref[...], preferred_element_type=jnp.float32) + bf_ref[...]


def fc_head(feats, pk):
    N = feats.shape[1]
    out_dim = pk["out_dim"]

    def full(a):
        nd = a.ndim
        return pl.BlockSpec(tuple(a.shape), lambda i: (0,) * nd)

    return pl.pallas_call(
        fc_kernel,
        out_shape=jax.ShapeDtypeStruct((N, out_dim), jnp.float32),
        grid=(1,),
        in_specs=[full(feats), full(pk["w1s"]), full(pk["w2"]), full(pk["w3"]),
                  full(pk["wf"]), full(pk["fcv"]), full(pk["bf"])],
        out_specs=pl.BlockSpec((N, out_dim), lambda i: (0, 0)),
        compiler_params=pltpu.CompilerParams(dimension_semantics=("arbitrary",)),
    )(feats, pk["w1s"], pk["w2"], pk["w3"], pk["wf"], pk["fcv"], pk["bf"])


# ----------------------------------------------------------------------------
# Forward
# ----------------------------------------------------------------------------
def three_cnn_forward(pk, l0, l1, l2):
    N, H, W = l0.shape[0], l0.shape[2], l0.shape[3]
    P = H * W

    def prep(x):  # (N,1,H,W) -> (4*N, H*W): rows 0..N-1 = image, rest zero channels
        y = x.reshape(N, P)
        return jnp.concatenate([y, jnp.zeros((3 * N, P), x.dtype)], axis=0)

    xin = jnp.stack([prep(l0), prep(l1), prep(l2)], axis=0)     # (3, 4N, P)
    feats = branch_features(xin, pk)                            # (3, N, 18)
    return fc_head(feats, pk)                                   # (N, 4)


# ----------------------------------------------------------------------------
# Parameter construction (PyTorch-analogous) and kernel-ready packing
# ----------------------------------------------------------------------------
def init_params(key):
    F, Fr = 4, 1                               # filters / reduce filters
    h1 = h2 = h3 = 32
    out_dim = 4
    keys = iter(jax.random.split(key, 40))

    def conv_w(cout, cin, a, b):
        s = 1.0 / jnp.sqrt(cin * a * b)
        return jax.random.normal(next(keys), (cout, cin, a, b), jnp.float32) * s

    def lin_w(din, dout):
        s = 1.0 / jnp.sqrt(din)
        return jax.random.normal(next(keys), (din, dout), jnp.float32) * s

    def vec(n, s=0.1):
        return jax.random.normal(next(keys), (n,), jnp.float32) * s

    def branch():
        return dict(
            w1=conv_w(F, 1, 3, 3), b1=vec(F),
            w2=conv_w(F, F, 3, 3), b2=vec(F),
            w3=conv_w(F, F, 3, 3), b3=vec(F),
            w4=conv_w(Fr, F, 2, 2), b4=vec(Fr),
            g1=jnp.ones((F,), jnp.float32), be1=jnp.zeros((F,), jnp.float32),
            g2=jnp.ones((Fr,), jnp.float32), be2=jnp.zeros((Fr,), jnp.float32),
        )

    fc = dict(
        w1=lin_w(54, h1), b1=vec(h1), g1=jnp.ones((h1,), jnp.float32), be1=jnp.zeros((h1,), jnp.float32),
        w2=lin_w(h1, h2), b2=vec(h2), g2=jnp.ones((h2,), jnp.float32), be2=jnp.zeros((h2,), jnp.float32),
        w3=lin_w(h2, h3), b3=vec(h3), g3=jnp.ones((h3,), jnp.float32), be3=jnp.zeros((h3,), jnp.float32),
        wf=lin_w(h3, out_dim), bf=vec(out_dim),
    )
    return dict(br=[branch(), branch(), branch()], fc=fc)


def pack_params(params, N, H, W):
    """One-time packing of PyTorch-style params into kernel-ready operands."""
    F = 4
    P = H * W
    Hr, Wr = (H - 2) // 2 + 1, (W - 2) // 2 + 1
    PR = Hr * Wr
    eyeN = jnp.eye(N, dtype=jnp.float32)

    def kstack(w):  # (Cout, Cin, kh, kw) -> (kh*kw*Cout*N, Cin*N), taps (dy,dx) row-major
        kh, kw = w.shape[2], w.shape[3]
        blocks = [jnp.kron(w[:, :, dy, dx], eyeN) for dy in range(kh) for dx in range(kw)]
        return jnp.concatenate(blocks, axis=0)

    # constant spatial-shift matrices (zero padding built in)
    S = np.zeros((9, P, P), np.float32)
    for dy in range(3):
        for dx in range(3):
            t = 3 * dy + dx
            for y in range(H):
                for x in range(W):
                    ys, xs = y + dy - 1, x + dx - 1
                    if 0 <= ys < H and 0 <= xs < W:
                        S[t, ys * W + xs, y * W + x] = 1.0
    svp = jnp.asarray(S.reshape(9 * P, P))

    S4 = np.zeros((4, P, PR), np.float32)
    for dy in range(2):
        for dx in range(2):
            t = 2 * dy + dx
            for y in range(Hr):
                for x in range(Wr):
                    S4[t, (2 * y + dy) * W + (2 * x + dx), y * Wr + x] = 1.0
    srd = jnp.asarray(S4.reshape(4 * P, PR))

    gg = jnp.asarray(np.kron(np.eye(F, dtype=np.float32), np.ones((N, N), np.float32)))

    kvp_list, krd_list, vrow_list = [], [], []
    for br in params["br"]:
        w1p = jnp.zeros((F, F, 3, 3), jnp.float32).at[:, 0:1].set(br["w1"])
        kvp_list.append(jnp.concatenate(
            [kstack(w1p), kstack(br["w2"]), kstack(br["w3"])], axis=0))    # (3*9*4N, 4N)
        krd_list.append(kstack(br["w4"]))                                  # (4*N, 4N)
        cols = [
            jnp.repeat(br["b1"], N), jnp.repeat(br["b2"], N), jnp.repeat(br["b3"], N),
            jnp.repeat(br["g1"], N), jnp.repeat(br["be1"], N),
            jnp.concatenate([jnp.repeat(br["b4"], N), jnp.zeros(3 * N, jnp.float32)]),
            jnp.broadcast_to(br["g2"], (4 * N,)),
            jnp.broadcast_to(br["be2"], (4 * N,)),
        ]
        vrow_list.append(jnp.stack(cols, axis=1))                          # (4N, 8)

    fc = params["fc"]
    h1 = fc["w1"].shape[1]
    out_dim = fc["wf"].shape[1]
    w1s = fc["w1"].reshape(3, PR, h1)                                      # (3, 18, 32)

    def fcrow(l):
        b, g, be = fc[f"b{l}"], fc[f"g{l}"], fc[f"be{l}"]
        return jnp.concatenate(
            [b[None], g[None], be[None], jnp.zeros((5, b.shape[0]), jnp.float32)], axis=0)

    fcv = jnp.stack([fcrow(1), fcrow(2), fcrow(3)], axis=0)                # (3, 8, 32)

    return dict(
        kvp=jnp.stack(kvp_list, axis=0),     # (3, 864, 32)
        krd=jnp.stack(krd_list, axis=0),     # (3, 32, 32)
        vrow=jnp.stack(vrow_list, axis=0),   # (3, 32, 8)
        svp=svp, srd=srd, gg=gg,
        w1s=w1s, w2=fc["w2"], w3=fc["w3"], wf=fc["wf"], fcv=fcv,
        bf=fc["bf"].reshape(1, out_dim),
        N=N, PR=PR, out_dim=out_dim,
    )


if __name__ == "__main__":
    key = jax.random.PRNGKey(0)
    pkey, k0, k1, k2 = jax.random.split(key, 4)

    N, H, W = 8, 6, 12                       # calorimeter-style images, NCHW; reduce -> (3, 6)
    params = init_params(pkey)
    packed = pack_params(params, N=N, H=H, W=W)

    l0 = jax.random.normal(k0, (N, 1, H, W), jnp.float32)
    l1 = jax.random.normal(k1, (N, 1, H, W), jnp.float32)
    l2 = jax.random.normal(k2, (N, 1, H, W), jnp.float32)

    fwd = jax.jit(functools.partial(three_cnn_forward, packed))
    scores = fwd(l0, l1, l2)
    jax.block_until_ready(scores)

    assert scores.shape == (N, 4) and scores.dtype == jnp.float32
    assert bool(jnp.isfinite(scores).all())
    print("KERNEL_OK")
</pallas_src>

<mosaic_0001>
module attributes {stable_mosaic.version = 11 : i64} {
  func.func @fc_kernel(%arg0: i32, %arg1: memref<3x8x18xf32, #tpu.memory_space<vmem>>, %arg2: memref<3x18x32xf32, #tpu.memory_space<vmem>>, %arg3: memref<32x32xf32, #tpu.memory_space<vmem>>, %arg4: memref<32x32xf32, #tpu.memory_space<vmem>>, %arg5: memref<32x4xf32, #tpu.memory_space<vmem>>, %arg6: memref<3x8x32xf32, #tpu.memory_space<vmem>>, %arg7: memref<1x4xf32, #tpu.memory_space<vmem>>, %arg8: memref<8x4xf32, #tpu.memory_space<vmem>>) attributes {dimension_semantics = [#tpu.dimension_semantics<arbitrary>], iteration_bounds = array<i64: 1>, scalar_prefetch = 0 : i64, scratch_operands = 0 : i64, tpu.core_type = #tpu.core_type<tc>, window_params = [{pipeline_mode = #tpu.pipeline_mode<synchronous>, transform_indices = @transform_0, window_bounds = array<i64: 3, 8, 18>}, {pipeline_mode = #tpu.pipeline_mode<synchronous>, transform_indices = @transform_1, window_bounds = array<i64: 3, 18, 32>}, {pipeline_mode = #tpu.pipeline_mode<synchronous>, transform_indices = @transform_2, window_bounds = array<i64: 32, 32>}, {pipeline_mode = #tpu.pipeline_mode<synchronous>, transform_indices = @transform_3, window_bounds = array<i64: 32, 32>}, {pipeline_mode = #tpu.pipeline_mode<synchronous>, transform_indices = @transform_4, window_bounds = array<i64: 32, 4>}, {pipeline_mode = #tpu.pipeline_mode<synchronous>, transform_indices = @transform_5, window_bounds = array<i64: 3, 8, 32>}, {pipeline_mode = #tpu.pipeline_mode<synchronous>, transform_indices = @transform_6, window_bounds = array<i64: 1, 4>}, {pipeline_mode = #tpu.pipeline_mode<synchronous>, transform_indices = @transform_7, window_bounds = array<i64: 8, 4>}]} {
    %c0 = arith.constant 0 : index
    %c0_0 = arith.constant 0 : index
    %c0_1 = arith.constant 0 : index
    %0 = vector.load %arg1[%c0, %c0_0, %c0_1] : memref<3x8x18xf32, #tpu.memory_space<vmem>>, vector<1x8x18xf32>
    %1 = vector.shape_cast %0 : vector<1x8x18xf32> to vector<8x18xf32>
    %c0_2 = arith.constant 0 : index
    %c0_3 = arith.constant 0 : index
    %c0_4 = arith.constant 0 : index
    %2 = vector.load %arg2[%c0_2, %c0_3, %c0_4] : memref<3x18x32xf32, #tpu.memory_space<vmem>>, vector<1x18x32xf32>
    %3 = vector.shape_cast %2 : vector<1x18x32xf32> to vector<18x32xf32>
    %cst = arith.constant dense<0.000000e+00> : vector<8x32xf32>
    %4 = tpu.matmul %1, %3, %cst {dimension_numbers = #tpu.dot_dimension_numbers<[1], [0], [0], [1], [0, 0, 1, 1], [], []>} : vector<8x18xf32>, vector<18x32xf32>, vector<8x32xf32> -> vector<8x32xf32>
    %c1 = arith.constant 1 : index
    %c0_5 = arith.constant 0 : index
    %c0_6 = arith.constant 0 : index
    %5 = vector.load %arg1[%c1, %c0_5, %c0_6] : memref<3x8x18xf32, #tpu.memory_space<vmem>>, vector<1x8x18xf32>
    %6 = vector.shape_cast %5 : vector<1x8x18xf32> to vector<8x18xf32>
    %c1_7 = arith.constant 1 : index
    %c0_8 = arith.constant 0 : index
    %c0_9 = arith.constant 0 : index
    %7 = vector.load %arg2[%c1_7, %c0_8, %c0_9] : memref<3x18x32xf32, #tpu.memory_space<vmem>>, vector<1x18x32xf32>
    %8 = vector.shape_cast %7 : vector<1x18x32xf32> to vector<18x32xf32>
    %cst_10 = arith.constant dense<0.000000e+00> : vector<8x32xf32>
    %9 = tpu.matmul %6, %8, %cst_10 {dimension_numbers = #tpu.dot_dimension_numbers<[1], [0], [0], [1], [0, 0, 1, 1], [], []>} : vector<8x18xf32>, vector<18x32xf32>, vector<8x32xf32> -> vector<8x32xf32>
    %10 = arith.addf %4, %9 : vector<8x32xf32>
    %c2 = arith.constant 2 : index
    %c0_11 = arith.constant 0 : index
    %c0_12 = arith.constant 0 : index
    %11 = vector.load %arg1[%c2, %c0_11, %c0_12] : memref<3x8x18xf32, #tpu.memory_space<vmem>>, vector<1x8x18xf32>
    %12 = vector.shape_cast %11 : vector<1x8x18xf32> to vector<8x18xf32>
    %c2_13 = arith.constant 2 : index
    %c0_14 = arith.constant 0 : index
    %c0_15 = arith.constant 0 : index
    %13 = vector.load %arg2[%c2_13, %c0_14, %c0_15] : memref<3x18x32xf32, #tpu.memory_space<vmem>>, vector<1x18x32xf32>
    %14 = vector.shape_cast %13 : vector<1x18x32xf32> to vector<18x32xf32>
    %cst_16 = arith.constant dense<0.000000e+00> : vector<8x32xf32>
    %15 = tpu.matmul %12, %14, %cst_16 {dimension_numbers = #tpu.dot_dimension_numbers<[1], [0], [0], [1], [0, 0, 1, 1], [], []>} : vector<8x18xf32>, vector<18x32xf32>, vector<8x32xf32> -> vector<8x32xf32>
    %16 = arith.addf %10, %15 : vector<8x32xf32>
    %c0_17 = arith.constant 0 : index
    %c0_18 = arith.constant 0 : index
    %c0_19 = arith.constant 0 : index
    %17 = vector.load %arg6[%c0_17, %c0_18, %c0_19] : memref<3x8x32xf32, #tpu.memory_space<vmem>>, vector<1x8x32xf32>
    %18 = vector.shape_cast %17 : vector<1x8x32xf32> to vector<8x32xf32>
    %19 = vector.extract_strided_slice %18 {offsets = [0, 0], sizes = [1, 32], strides = [1, 1]} : vector<8x32xf32> to vector<1x32xf32>
    %20 = vector.broadcast %19 : vector<1x32xf32> to vector<8x32xf32>
    %21 = arith.addf %16, %20 : vector<8x32xf32>
    %cst_20 = arith.constant dense<0.000000e+00> : vector<32xf32>
    %22 = vector.multi_reduction <add>, %21, %cst_20 [0] : vector<8x32xf32> to vector<32xf32>
    %23 = vector.shape_cast %22 : vector<32xf32> to vector<1x32xf32>
    %cst_21 = arith.constant 8.000000e+00 : f32
    %24 = vector.broadcast %cst_21 : f32 to vector<1x32xf32>
    %25 = arith.divf %23, %24 : vector<1x32xf32>
    %26 = arith.mulf %21, %21 : vector<8x32xf32>
    %cst_22 = arith.constant dense<0.000000e+00> : vector<32xf32>
    %27 = vector.multi_reduction <add>, %26, %cst_22 [0] : vector<8x32xf32> to vector<32xf32>
    %28 = vector.shape_cast %27 : vector<32xf32> to vector<1x32xf32>
    %cst_23 = arith.constant 8.000000e+00 : f32
    %29 = vector.broadcast %cst_23 : f32 to vector<1x32xf32>
    %30 = arith.divf %28, %29 : vector<1x32xf32>
    %31 = arith.mulf %25, %25 : vector<1x32xf32>
    %32 = arith.subf %30, %31 : vector<1x32xf32>
    %33 = vector.broadcast %25 : vector<1x32xf32> to vector<8x32xf32>
    %34 = arith.subf %21, %33 : vector<8x32xf32>
    %cst_24 = arith.constant 9.99999974E-6 : f32
    %35 = vector.broadcast %cst_24 : f32 to vector<1x32xf32>
    %36 = arith.addf %32, %35 : vector<1x32xf32>
    %37 = math.rsqrt %36 : vector<1x32xf32>
    %38 = vector.broadcast %37 : vector<1x32xf32> to vector<8x32xf32>
    %39 = arith.mulf %34, %38 : vector<8x32xf32>
    %40 = vector.extract_strided_slice %18 {offsets = [1, 0], sizes = [1, 32], strides = [1, 1]} : vector<8x32xf32> to vector<1x32xf32>
    %41 = vector.broadcast %40 : vector<1x32xf32> to vector<8x32xf32>
    %42 = arith.mulf %39, %41 : vector<8x32xf32>
    %43 = vector.extract_strided_slice %18 {offsets = [2, 0], sizes = [1, 32], strides = [1, 1]} : vector<8x32xf32> to vector<1x32xf32>
    %44 = vector.broadcast %43 : vector<1x32xf32> to vector<8x32xf32>
    %45 = arith.addf %42, %44 : vector<8x32xf32>
    %cst_25 = arith.constant 0.000000e+00 : f32
    %46 = vector.broadcast %cst_25 : f32 to vector<8x32xf32>
    %47 = arith.maximumf %45, %46 : vector<8x32xf32>
    %c0_26 = arith.constant 0 : index
    %c0_27 = arith.constant 0 : index
    %48 = vector.load %arg3[%c0_26, %c0_27] : memref<32x32xf32, #tpu.memory_space<vmem>>, vector<32x32xf32>
    %cst_28 = arith.constant dense<0.000000e+00> : vector<8x32xf32>
    %49 = tpu.matmul %47, %48, %cst_28 {dimension_numbers = #tpu.dot_dimension_numbers<[1], [0], [0], [1], [0, 0, 1, 1], [], []>} : vector<8x32xf32>, vector<32x32xf32>, vector<8x32xf32> -> vector<8x32xf32>
    %c1_29 = arith.constant 1 : index
    %c0_30 = arith.constant 0 : index
    %c0_31 = arith.constant 0 : index
    %50 = vector.load %arg6[%c1_29, %c0_30, %c0_31] : memref<3x8x32xf32, #tpu.memory_space<vmem>>, vector<1x8x32xf32>
    %51 = vector.shape_cast %50 : vector<1x8x32xf32> to vector<8x32xf32>
    %52 = vector.extract_strided_slice %51 {offsets = [0, 0], sizes = [1, 32], strides = [1, 1]} : vector<8x32xf32> to vector<1x32xf32>
    %53 = vector.broadcast %52 : vector<1x32xf32> to vector<8x32xf32>
    %54 = arith.addf %49, %53 : vector<8x32xf32>
    %cst_32 = arith.constant dense<0.000000e+00> : vector<32xf32>
    %55 = vector.multi_reduction <add>, %54, %cst_32 [0] : vector<8x32xf32> to vector<32xf32>
    %56 = vector.shape_cast %55 : vector<32xf32> to vector<1x32xf32>
    %cst_33 = arith.constant 8.000000e+00 : f32
    %57 = vector.broadcast %cst_33 : f32 to vector<1x32xf32>
    %58 = arith.divf %56, %57 : vector<1x32xf32>
    %59 = arith.mulf %54, %54 : vector<8x32xf32>
    %cst_34 = arith.constant dense<0.000000e+00> : vector<32xf32>
    %60 = vector.multi_reduction <add>, %59, %cst_34 [0] : vector<8x32xf32> to vector<32xf32>
    %61 = vector.shape_cast %60 : vector<32xf32> to vector<1x32xf32>
    %cst_35 = arith.constant 8.000000e+00 : f32
    %62 = vector.broadcast %cst_35 : f32 to vector<1x32xf32>
    %63 = arith.divf %61, %62 : vector<1x32xf32>
    %64 = arith.mulf %58, %58 : vector<1x32xf32>
    %65 = arith.subf %63, %64 : vector<1x32xf32>
    %66 = vector.broadcast %58 : vector<1x32xf32> to vector<8x32xf32>
    %67 = arith.subf %54, %66 : vector<8x32xf32>
    %cst_36 = arith.constant 9.99999974E-6 : f32
    %68 = vector.broadcast %cst_36 : f32 to vector<1x32xf32>
    %69 = arith.addf %65, %68 : vector<1x32xf32>
    %70 = math.rsqrt %69 : vector<1x32xf32>
    %71 = vector.broadcast %70 : vector<1x32xf32> to vector<8x32xf32>
    %72 = arith.mulf %67, %71 : vector<8x32xf32>
    %73 = vector.extract_strided_slice %51 {offsets = [1, 0], sizes = [1, 32], strides = [1, 1]} : vector<8x32xf32> to vector<1x32xf32>
    %74 = vector.broadcast %73 : vector<1x32xf32> to vector<8x32xf32>
    %75 = arith.mulf %72, %74 : vector<8x32xf32>
    %76 = vector.extract_strided_slice %51 {offsets = [2, 0], sizes = [1, 32], strides = [1, 1]} : vector<8x32xf32> to vector<1x32xf32>
    %77 = vector.broadcast %76 : vector<1x32xf32> to vector<8x32xf32>
    %78 = arith.addf %75, %77 : vector<8x32xf32>
    %cst_37 = arith.constant 0.000000e+00 : f32
    %79 = vector.broadcast %cst_37 : f32 to vector<8x32xf32>
    %80 = arith.maximumf %78, %79 : vector<8x32xf32>
    %c0_38 = arith.constant 0 : index
    %c0_39 = arith.constant 0 : index
    %81 = vector.load %arg4[%c0_38, %c0_39] : memref<32x32xf32, #tpu.memory_space<vmem>>, vector<32x32xf32>
    %cst_40 = arith.constant dense<0.000000e+00> : vector<8x32xf32>
    %82 = tpu.matmul %80, %81, %cst_40 {dimension_numbers = #tpu.dot_dimension_numbers<[1], [0], [0], [1], [0, 0, 1, 1], [], []>} : vector<8x32xf32>, vector<32x32xf32>, vector<8x32xf32> -> vector<8x32xf32>
    %c2_41 = arith.constant 2 : index
    %c0_42 = arith.constant 0 : index
    %c0_43 = arith.constant 0 : index
    %83 = vector.load %arg6[%c2_41, %c0_42, %c0_43] : memref<3x8x32xf32, #tpu.memory_space<vmem>>, vector<1x8x32xf32>
    %84 = vector.shape_cast %83 : vector<1x8x32xf32> to vector<8x32xf32>
    %85 = vector.extract_strided_slice %84 {offsets = [0, 0], sizes = [1, 32], strides = [1, 1]} : vector<8x32xf32> to vector<1x32xf32>
    %86 = vector.broadcast %85 : vector<1x32xf32> to vector<8x32xf32>
    %87 = arith.addf %82, %86 : vector<8x32xf32>
    %cst_44 = arith.constant dense<0.000000e+00> : vector<32xf32>
    %88 = vector.multi_reduction <add>, %87, %cst_44 [0] : vector<8x32xf32> to vector<32xf32>
    %89 = vector.shape_cast %88 : vector<32xf32> to vector<1x32xf32>
    %cst_45 = arith.constant 8.000000e+00 : f32
    %90 = vector.broadcast %cst_45 : f32 to vector<1x32xf32>
    %91 = arith.divf %89, %90 : vector<1x32xf32>
    %92 = arith.mulf %87, %87 : vector<8x32xf32>
    %cst_46 = arith.constant dense<0.000000e+00> : vector<32xf32>
    %93 = vector.multi_reduction <add>, %92, %cst_46 [0] : vector<8x32xf32> to vector<32xf32>
    %94 = vector.shape_cast %93 : vector<32xf32> to vector<1x32xf32>
    %cst_47 = arith.constant 8.000000e+00 : f32
    %95 = vector.broadcast %cst_47 : f32 to vector<1x32xf32>
    %96 = arith.divf %94, %95 : vector<1x32xf32>
    %97 = arith.mulf %91, %91 : vector<1x32xf32>
    %98 = arith.subf %96, %97 : vector<1x32xf32>
    %99 = vector.broadcast %91 : vector<1x32xf32> to vector<8x32xf32>
    %100 = arith.subf %87, %99 : vector<8x32xf32>
    %cst_48 = arith.constant 9.99999974E-6 : f32
    %101 = vector.broadcast %cst_48 : f32 to vector<1x32xf32>
    %102 = arith.addf %98, %101 : vector<1x32xf32>
    %103 = math.rsqrt %102 : vector<1x32xf32>
    %104 = vector.broadcast %103 : vector<1x32xf32> to vector<8x32xf32>
    %105 = arith.mulf %100, %104 : vector<8x32xf32>
    %106 = vector.extract_strided_slice %84 {offsets = [1, 0], sizes = [1, 32], strides = [1, 1]} : vector<8x32xf32> to vector<1x32xf32>
    %107 = vector.broadcast %106 : vector<1x32xf32> to vector<8x32xf32>
    %108 = arith.mulf %105, %107 : vector<8x32xf32>
    %109 = vector.extract_strided_slice %84 {offsets = [2, 0], sizes = [1, 32], strides = [1, 1]} : vector<8x32xf32> to vector<1x32xf32>
    %110 = vector.broadcast %109 : vector<1x32xf32> to vector<8x32xf32>
    %111 = arith.addf %108, %110 : vector<8x32xf32>
    %cst_49 = arith.constant 0.000000e+00 : f32
    %112 = vector.broadcast %cst_49 : f32 to vector<8x32xf32>
    %113 = arith.maximumf %111, %112 : vector<8x32xf32>
    %c0_50 = arith.constant 0 : index
    %c0_51 = arith.constant 0 : index
    %114 = vector.load %arg5[%c0_50, %c0_51] : memref<32x4xf32, #tpu.memory_space<vmem>>, vector<32x4xf32>
    %cst_52 = arith.constant dense<0.000000e+00> : vector<8x4xf32>
    %115 = tpu.matmul %113, %114, %cst_52 {dimension_numbers = #tpu.dot_dimension_numbers<[1], [0], [0], [1], [0, 0, 1, 1], [], []>} : vector<8x32xf32>, vector<32x4xf32>, vector<8x4xf32> -> vector<8x4xf32>
    %c0_53 = arith.constant 0 : index
    %c0_54 = arith.constant 0 : index
    %116 = vector.load %arg7[%c0_53, %c0_54] : memref<1x4xf32, #tpu.memory_space<vmem>>, vector<1x4xf32>
    %117 = vector.broadcast %116 : vector<1x4xf32> to vector<8x4xf32>
    %118 = arith.addf %115, %117 : vector<8x4xf32>
    %c0_55 = arith.constant 0 : index
    %c0_56 = arith.constant 0 : index
    %119 = vector.load %arg8[%c0_55, %c0_56] : memref<8x4xf32, #tpu.memory_space<vmem>>, vector<8x4xf32>
    tpu.vector_store %arg8[%c0_55, %c0_56], %118 {strides = array<i32>} : memref<8x4xf32, #tpu.memory_space<vmem>>, vector<8x4xf32>,
    return
  }
  func.func @transform_0(%arg0: i32) -> (i32, i32, i32) {
    %c0_i32 = arith.constant 0 : i32
    %c0_i32_0 = arith.constant 0 : i32
    %c0_i32_1 = arith.constant 0 : i32
    %c0_i32_2 = arith.constant 0 : i32
    return %c0_i32, %c0_i32_0, %c0_i32_1 : i32, i32, i32
  }
  func.func @transform_1(%arg0: i32) -> (i32, i32, i32) {
    %c0_i32 = arith.constant 0 : i32
    %c0_i32_0 = arith.constant 0 : i32
    %c0_i32_1 = arith.constant 0 : i32
    %c0_i32_2 = arith.constant 0 : i32
    return %c0_i32, %c0_i32_0, %c0_i32_1 : i32, i32, i32
  }
  func.func @transform_2(%arg0: i32) -> (i32, i32) {
    %c0_i32 = arith.constant 0 : i32
    %c0_i32_0 = arith.constant 0 : i32
    %c0_i32_1 = arith.constant 0 : i32
    return %c0_i32, %c0_i32_0 : i32, i32
  }
  func.func @transform_3(%arg0: i32) -> (i32, i32) {
    %c0_i32 = arith.constant 0 : i32
    %c0_i32_0 = arith.constant 0 : i32
    %c0_i32_1 = arith.constant 0 : i32
    return %c0_i32, %c0_i32_0 : i32, i32
  }
  func.func @transform_4(%arg0: i32) -> (i32, i32) {
    %c0_i32 = arith.constant 0 : i32
    %c0_i32_0 = arith.constant 0 : i32
    %c0_i32_1 = arith.constant 0 : i32
    return %c0_i32, %c0_i32_0 : i32, i32
  }
  func.func @transform_5(%arg0: i32) -> (i32, i32, i32) {
    %c0_i32 = arith.constant 0 : i32
    %c0_i32_0 = arith.constant 0 : i32
    %c0_i32_1 = arith.constant 0 : i32
    %c0_i32_2 = arith.constant 0 : i32
    return %c0_i32, %c0_i32_0, %c0_i32_1 : i32, i32, i32
  }
  func.func @transform_6(%arg0: i32) -> (i32, i32) {
    %c0_i32 = arith.constant 0 : i32
    %c0_i32_0 = arith.constant 0 : i32
    %c0_i32_1 = arith.constant 0 : i32
    return %c0_i32, %c0_i32_0 : i32, i32
  }
  func.func @transform_7(%arg0: i32) -> (i32, i32) {
    %c0_i32 = arith.constant 0 : i32
    %c0_i32_0 = arith.constant 0 : i32
    %c0_i32_1 = arith.constant 0 : i32
    return %c0_i32, %c0_i32_0 : i32, i32
  }
}

module attributes {stable_mosaic.version = 11 : i64} {
  func.func @branch_kernel(%arg0: i32, %arg1: memref<1x32x72xf32, #tpu.memory_space<vmem>>, %arg2: memref<1x864x32xf32, #tpu.memory_space<vmem>>, %arg3: memref<1x32x32xf32, #tpu.memory_space<vmem>>, %arg4: memref<1x32x8xf32, #tpu.memory_space<vmem>>, %arg5: memref<648x72xf32, #tpu.memory_space<vmem>>, %arg6: memref<288x18xf32, #tpu.memory_space<vmem>>, %arg7: memref<32x32xf32, #tpu.memory_space<vmem>>, %arg8: memref<1x8x18xf32, #tpu.memory_space<vmem>>, %arg9: memref<288x72xf32, #tpu.memory_space<vmem>>) attributes {dimension_semantics = [#tpu.dimension_semantics<parallel>], iteration_bounds = array<i64: 3>, scalar_prefetch = 0 : i64, scratch_operands = 1 : i64, tpu.core_type = #tpu.core_type<tc>, window_params = [{transform_indices = @transform_0, window_bounds = array<i64: 1, 32, 72>}, {transform_indices = @transform_1, window_bounds = array<i64: 1, 864, 32>}, {transform_indices = @transform_2, window_bounds = array<i64: 1, 32, 32>}, {transform_indices = @transform_3, window_bounds = array<i64: 1, 32, 8>}, {pipeline_mode = #tpu.pipeline_mode<synchronous>, transform_indices = @transform_4, window_bounds = array<i64: 648, 72>}, {pipeline_mode = #tpu.pipeline_mode<synchronous>, transform_indices = @transform_5, window_bounds = array<i64: 288, 18>}, {pipeline_mode = #tpu.pipeline_mode<synchronous>, transform_indices = @transform_6, window_bounds = array<i64: 32, 32>}, {transform_indices = @transform_7, window_bounds = array<i64: 1, 8, 18>}]} {
    %c0 = arith.constant 0 : index
    %c0_0 = arith.constant 0 : index
    %0 = vector.load %arg7[%c0, %c0_0] : memref<32x32xf32, #tpu.memory_space<vmem>>, vector<32x32xf32>
    %c0_1 = arith.constant 0 : index
    %c0_2 = arith.constant 0 : index
    %c3 = arith.constant 3 : index
    %1 = vector.load %arg4[%c0_1, %c0_2, %c3] : memref<1x32x8xf32, #tpu.memory_space<vmem>>, vector<1x32x1xf32>
    %2 = vector.shape_cast %1 : vector<1x32x1xf32> to vector<32x1xf32>
    %c0_3 = arith.constant 0 : index
    %c0_4 = arith.constant 0 : index
    %c4 = arith.constant 4 : index
    %3 = vector.load %arg4[%c0_3, %c0_4, %c4] : memref<1x32x8xf32, #tpu.memory_space<vmem>>, vector<1x32x1xf32>
    %4 = vector.shape_cast %3 : vector<1x32x1xf32> to vector<32x1xf32>
    %c0_5 = arith.constant 0 : index
    %c0_6 = arith.constant 0 : index
    %c0_7 = arith.constant 0 : index
    %5 = vector.load %arg1[%c0_5, %c0_6, %c0_7] : memref<1x32x72xf32, #tpu.memory_space<vmem>>, vector<1x32x72xf32>
    %6 = vector.shape_cast %5 : vector<1x32x72xf32> to vector<32x72xf32>
    %c0_8 = arith.constant 0 : index
    %c0_9 = arith.constant 0 : index
    %c0_10 = arith.constant 0 : index
    %7 = vector.load %arg2[%c0_8, %c0_9, %c0_10] : memref<1x864x32xf32, #tpu.memory_space<vmem>>, vector<1x288x32xf32>
    %8 = vector.shape_cast %7 : vector<1x288x32xf32> to vector<288x32xf32>
    %cst = arith.constant dense<0.000000e+00> : vector<288x72xf32>
    %9 = tpu.matmul %8, %6, %cst {dimension_numbers = #tpu.dot_dimension_numbers<[1], [0], [0], [1], [0, 0, 1, 1], [], []>} : vector<288x32xf32>, vector<32x72xf32>, vector<288x72xf32> -> vector<288x72xf32>
    %c0_11 = arith.constant 0 : index
    %c0_12 = arith.constant 0 : index
    %10 = vector.load %arg9[%c0_11, %c0_12] : memref<288x72xf32, #tpu.memory_space<vmem>>, vector<288x72xf32>
    tpu.vector_store %arg9[%c0_11, %c0_12], %9 {strides = array<i32>} : memref<288x72xf32, #tpu.memory_space<vmem>>, vector<288x72xf32>,
    %c0_13 = arith.constant 0 : index
    %c0_14 = arith.constant 0 : index
    %11 = vector.load %arg9[%c0_13, %c0_14] : memref<288x72xf32, #tpu.memory_space<vmem>>, vector<32x72xf32>
    %c0_15 = arith.constant 0 : index
    %c0_16 = arith.constant 0 : index
    %12 = vector.load %arg5[%c0_15, %c0_16] : memref<648x72xf32, #tpu.memory_space<vmem>>, vector<72x72xf32>
    %cst_17 = arith.constant dense<0.000000e+00> : vector<32x72xf32>
    %13 = tpu.matmul %11, %12, %cst_17 {dimension_numbers = #tpu.dot_dimension_numbers<[1], [0], [0], [1], [0, 0, 1, 1], [], []>} : vector<32x72xf32>, vector<72x72xf32>, vector<32x72xf32> -> vector<32x72xf32>
    %c32 = arith.constant 32 : index
    %c0_18 = arith.constant 0 : index
    %14 = vector.load %arg9[%c32, %c0_18] : memref<288x72xf32, #tpu.memory_space<vmem>>, vector<32x72xf32>
    %c72 = arith.constant 72 : index
    %c0_19 = arith.constant 0 : index
    %15 = vector.load %arg5[%c72, %c0_19] : memref<648x72xf32, #tpu.memory_space<vmem>>, vector<72x72xf32>
    %cst_20 = arith.constant dense<0.000000e+00> : vector<32x72xf32>
    %16 = tpu.matmul %14, %15, %cst_20 {dimension_numbers = #tpu.dot_dimension_numbers<[1], [0], [0], [1], [0, 0, 1, 1], [], []>} : vector<32x72xf32>, vector<72x72xf32>, vector<32x72xf32> -> vector<32x72xf32>
    %17 = arith.addf %13, %16 : vector<32x72xf32>
    %c64 = arith.constant 64 : index
    %c0_21 = arith.constant 0 : index
    %18 = vector.load %arg9[%c64, %c0_21] : memref<288x72xf32, #tpu.memory_space<vmem>>, vector<32x72xf32>
    %c144 = arith.constant 144 : index
    %c0_22 = arith.constant 0 : index
    %19 = vector.load %arg5[%c144, %c0_22] : memref<648x72xf32, #tpu.memory_space<vmem>>, vector<72x72xf32>
    %cst_23 = arith.constant dense<0.000000e+00> : vector<32x72xf32>
    %20 = tpu.matmul %18, %19, %cst_23 {dimension_numbers = #tpu.dot_dimension_numbers<[1], [0], [0], [1], [0, 0, 1, 1], [], []>} : vector<32x72xf32>, vector<72x72xf32>, vector<32x72xf32> -> vector<32x72xf32>
    %21 = arith.addf %17, %20 : vector<32x72xf32>
    %c96 = arith.constant 96 : index
    %c0_24 = arith.constant 0 : index
    %22 = vector.load %arg9[%c96, %c0_24] : memref<288x72xf32, #tpu.memory_space<vmem>>, vector<32x72xf32>
    %c216 = arith.constant 216 : index
    %c0_25 = arith.constant 0 : index
    %23 = vector.load %arg5[%c216, %c0_25] : memref<648x72xf32, #tpu.memory_space<vmem>>, vector<72x72xf32>
    %cst_26 = arith.constant dense<0.000000e+00> : vector<32x72xf32>
    %24 = tpu.matmul %22, %23, %cst_26 {dimension_numbers = #tpu.dot_dimension_numbers<[1], [0], [0], [1], [0, 0, 1, 1], [], []>} : vector<32x72xf32>, vector<72x72xf32>, vector<32x72xf32> -> vector<32x72xf32>
    %25 = arith.addf %21, %24 : vector<32x72xf32>
    %c128 = arith.constant 128 : index
    %c0_27 = arith.constant 0 : index
    %26 = vector.load %arg9[%c128, %c0_27] : memref<288x72xf32, #tpu.memory_space<vmem>>, vector<32x72xf32>
    %c288 = arith.constant 288 : index
    %c0_28 = arith.constant 0 : index
    %27 = vector.load %arg5[%c288, %c0_28] : memref<648x72xf32, #tpu.memory_space<vmem>>, vector<72x72xf32>
    %cst_29 = arith.constant dense<0.000000e+00> : vector<32x72xf32>
    %28 = tpu.matmul %26, %27, %cst_29 {dimension_numbers = #tpu.dot_dimension_numbers<[1], [0], [0], [1], [0, 0, 1, 1], [], []>} : vector<32x72xf32>, vector<72x72xf32>, vector<32x72xf32> -> vector<32x72xf32>
    %29 = arith.addf %25, %28 : vector<32x72xf32>
    %c160 = arith.constant 160 : index
    %c0_30 = arith.constant 0 : index
    %30 = vector.load %arg9[%c160, %c0_30] : memref<288x72xf32, #tpu.memory_space<vmem>>, vector<32x72xf32>
    %c360 = arith.constant 360 : index
    %c0_31 = arith.constant 0 : index
    %31 = vector.load %arg5[%c360, %c0_31] : memref<648x72xf32, #tpu.memory_space<vmem>>, vector<72x72xf32>
    %cst_32 = arith.constant dense<0.000000e+00> : vector<32x72xf32>
    %32 = tpu.matmul %30, %31, %cst_32 {dimension_numbers = #tpu.dot_dimension_numbers<[1], [0], [0], [1], [0, 0, 1, 1], [], []>} : vector<32x72xf32>, vector<72x72xf32>, vector<32x72xf32> -> vector<32x72xf32>
    %33 = arith.addf %29, %32 : vector<32x72xf32>
    %c192 = arith.constant 192 : index
    %c0_33 = arith.constant 0 : index
    %34 = vector.load %arg9[%c192, %c0_33] : memref<288x72xf32, #tpu.memory_space<vmem>>, vector<32x72xf32>
    %c432 = arith.constant 432 : index
    %c0_34 = arith.constant 0 : index
    %35 = vector.load %arg5[%c432, %c0_34] : memref<648x72xf32, #tpu.memory_space<vmem>>, vector<72x72xf32>
    %cst_35 = arith.constant dense<0.000000e+00> : vector<32x72xf32>
    %36 = tpu.matmul %34, %35, %cst_35 {dimension_numbers = #tpu.dot_dimension_numbers<[1], [0], [0], [1], [0, 0, 1, 1], [], []>} : vector<32x72xf32>, vector<72x72xf32>, vector<32x72xf32> -> vector<32x72xf32>
    %37 = arith.addf %33, %36 : vector<32x72xf32>
    %c224 = arith.constant 224 : index
    %c0_36 = arith.constant 0 : index
    %38 = vector.load %arg9[%c224, %c0_36] : memref<288x72xf32, #tpu.memory_space<vmem>>, vector<32x72xf32>
    %c504 = arith.constant 504 : index
    %c0_37 = arith.constant 0 : index
    %39 = vector.load %arg5[%c504, %c0_37] : memref<648x72xf32, #tpu.memory_space<vmem>>, vector<72x72xf32>
    %cst_38 = arith.constant dense<0.000000e+00> : vector<32x72xf32>
    %40 = tpu.matmul %38, %39, %cst_38 {dimension_numbers = #tpu.dot_dimension_numbers<[1], [0], [0], [1], [0, 0, 1, 1], [], []>} : vector<32x72xf32>, vector<72x72xf32>, vector<32x72xf32> -> vector<32x72xf32>
    %41 = arith.addf %37, %40 : vector<32x72xf32>
    %c256 = arith.constant 256 : index
    %c0_39 = arith.constant 0 : index
    %42 = vector.load %arg9[%c256, %c0_39] : memref<288x72xf32, #tpu.memory_space<vmem>>, vector<32x72xf32>
    %c576 = arith.constant 576 : index
    %c0_40 = arith.constant 0 : index
    %43 = vector.load %arg5[%c576, %c0_40] : memref<648x72xf32, #tpu.memory_space<vmem>>, vector<72x72xf32>
    %cst_41 = arith.constant dense<0.000000e+00> : vector<32x72xf32>
    %44 = tpu.matmul %42, %43, %cst_41 {dimension_numbers = #tpu.dot_dimension_numbers<[1], [0], [0], [1], [0, 0, 1, 1], [], []>} : vector<32x72xf32>, vector<72x72xf32>, vector<32x72xf32> -> vector<32x72xf32>
    %45 = arith.addf %41, %44 : vector<32x72xf32>
    %c0_42 = arith.constant 0 : index
    %c0_43 = arith.constant 0 : index
    %c0_44 = arith.constant 0 : index
    %46 = vector.load %arg4[%c0_42, %c0_43, %c0_44] : memref<1x32x8xf32, #tpu.memory_space<vmem>>, vector<1x32x1xf32>
    %47 = vector.shape_cast %46 : vector<1x32x1xf32> to vector<32x1xf32>
    %48 = vector.broadcast %47 : vector<32x1xf32> to vector<32x72xf32>
    %49 = arith.addf %45, %48 : vector<32x72xf32>
    %cst_45 = arith.constant dense<0.000000e+00> : vector<32x72xf32>
    %50 = tpu.matmul %0, %49, %cst_45 {dimension_numbers = #tpu.dot_dimension_numbers<[1], [0], [0], [1], [0, 0, 1, 1], [], []>} : vector<32x32xf32>, vector<32x72xf32>, vector<32x72xf32> -> vector<32x72xf32>
    %cst_46 = arith.constant dense<0.000000e+00> : vector<32xf32>
    %51 = vector.multi_reduction <add>, %50, %cst_46 [1] : vector<32x72xf32> to vector<32xf32>
    %52 = vector.shape_cast %51 : vector<32xf32> to vector<32x1xf32>
    %cst_47 = arith.constant 0.00173611112 : f32
    %53 = vector.broadcast %cst_47 : f32 to vector<32x1xf32>
    %54 = arith.mulf %52, %53 : vector<32x1xf32>
    %55 = arith.mulf %49, %49 : vector<32x72xf32>
    %cst_48 = arith.constant dense<0.000000e+00> : vector<32x72xf32>
    %56 = tpu.matmul %0, %55, %cst_48 {dimension_numbers = #tpu.dot_dimension_numbers<[1], [0], [0], [1], [0, 0, 1, 1], [], []>} : vector<32x32xf32>, vector<32x72xf32>, vector<32x72xf32> -> vector<32x72xf32>
    %cst_49 = arith.constant dense<0.000000e+00> : vector<32xf32>
    %57 = vector.multi_reduction <add>, %56, %cst_49 [1] : vector<32x72xf32> to vector<32xf32>
    %58 = vector.shape_cast %57 : vector<32xf32> to vector<32x1xf32>
    %cst_50 = arith.constant 0.00173611112 : f32
    %59 = vector.broadcast %cst_50 : f32 to vector<32x1xf32>
    %60 = arith.mulf %58, %59 : vector<32x1xf32>
    %61 = arith.mulf %54, %54 : vector<32x1xf32>
    %62 = arith.subf %60, %61 : vector<32x1xf32>
    %63 = vector.broadcast %54 : vector<32x1xf32> to vector<32x72xf32>
    %64 = arith.subf %49, %63 : vector<32x72xf32>
    %cst_51 = arith.constant 9.99999974E-6 : f32
    %65 = vector.broadcast %cst_51 : f32 to vector<32x1xf32>
    %66 = arith.addf %62, %65 : vector<32x1xf32>
    %67 = math.rsqrt %66 : vector<32x1xf32>
    %68 = vector.broadcast %67 : vector<32x1xf32> to vector<32x72xf32>
    %69 = arith.mulf %64, %68 : vector<32x72xf32>
    %70 = vector.broadcast %2 : vector<32x1xf32> to vector<32x72xf32>
    %71 = arith.mulf %69, %70 : vector<32x72xf32>
    %72 = vector.broadcast %4 : vector<32x1xf32> to vector<32x72xf32>
    %73 = arith.addf %71, %72 : vector<32x72xf32>
    %cst_52 = arith.constant 0.000000e+00 : f32
    %74 = vector.broadcast %cst_52 : f32 to vector<32x72xf32>
    %75 = arith.maximumf %73, %74 : vector<32x72xf32>
    %c0_53 = arith.constant 0 : index
    %c288_54 = arith.constant 288 : index
    %c0_55 = arith.constant 0 : index
    %76 = vector.load %arg2[%c0_53, %c288_54, %c0_55] : memref<1x864x32xf32, #tpu.memory_space<vmem>>, vector<1x288x32xf32>
    %77 = vector.shape_cast %76 : vector<1x288x32xf32> to vector<288x32xf32>
    %cst_56 = arith.constant dense<0.000000e+00> : vector<288x72xf32>
    %78 = tpu.matmul %77, %75, %cst_56 {dimension_numbers = #tpu.dot_dimension_numbers<[1], [0], [0], [1], [0, 0, 1, 1], [], []>} : vector<288x32xf32>, vector<32x72xf32>, vector<288x72xf32> -> vector<288x72xf32>
    %c0_57 = arith.constant 0 : index
    %c0_58 = arith.constant 0 : index
    %79 = vector.load %arg9[%c0_57, %c0_58] : memref<288x72xf32, #tpu.memory_space<vmem>>, vector<288x72xf32>
    tpu.vector_store %arg9[%c0_57, %c0_58], %78 {strides = array<i32>} : memref<288x72xf32, #tpu.memory_space<vmem>>, vector<288x72xf32>,
    %c0_59 = arith.constant 0 : index
    %c0_60 = arith.constant 0 : index
    %80 = vector.load %arg9[%c0_59, %c0_60] : memref<288x72xf32, #tpu.memory_space<vmem>>, vector<32x72xf32>
    %c0_61 = arith.constant 0 : index
    %c0_62 = arith.constant 0 : index
    %81 = vector.load %arg5[%c0_61, %c0_62] : memref<648x72xf32, #tpu.memory_space<vmem>>, vector<72x72xf32>
    %cst_63 = arith.constant dense<0.000000e+00> : vector<32x72xf32>
    %82 = tpu.matmul %80, %81, %cst_63 {dimension_numbers = #tpu.dot_dimension_numbers<[1], [0], [0], [1], [0, 0, 1, 1], [], []>} : vector<32x72xf32>, vector<72x72xf32>, vector<32x72xf32> -> vector<32x72xf32>
    %c32_64 = arith.constant 32 : index
    %c0_65 = arith.constant 0 : index
    %83 = vector.load %arg9[%c32_64, %c0_65] : memref<288x72xf32, #tpu.memory_space<vmem>>, vector<32x72xf32>
    %c72_66 = arith.constant 72 : index
    %c0_67 = arith.constant 0 : index
    %84 = vector.load %arg5[%c72_66, %c0_67] : memref<648x72xf32, #tpu.memory_space<vmem>>, vector<72x72xf32>
    %cst_68 = arith.constant dense<0.000000e+00> : vector<32x72xf32>
    %85 = tpu.matmul %83, %84, %cst_68 {dimension_numbers = #tpu.dot_dimension_numbers<[1], [0], [0], [1], [0, 0, 1, 1], [], []>} : vector<32x72xf32>, vector<72x72xf32>, vector<32x72xf32> -> vector<32x72xf32>
    %86 = arith.addf %82, %85 : vector<32x72xf32>
    %c64_69 = arith.constant 64 : index
    %c0_70 = arith.constant 0 : index
    %87 = vector.load %arg9[%c64_69, %c0_70] : memref<288x72xf32, #tpu.memory_space<vmem>>, vector<32x72xf32>
    %c144_71 = arith.constant 144 : index
    %c0_72 = arith.constant 0 : index
    %88 = vector.load %arg5[%c144_71, %c0_72] : memref<648x72xf32, #tpu.memory_space<vmem>>, vector<72x72xf32>
    %cst_73 = arith.constant dense<0.000000e+00> : vector<32x72xf32>
    %89 = tpu.matmul %87, %88, %cst_73 {dimension_numbers = #tpu.dot_dimension_numbers<[1], [0], [0], [1], [0, 0, 1, 1], [], []>} : vector<32x72xf32>, vector<72x72xf32>, vector<32x72xf32> -> vector<32x72xf32>
    %90 = arith.addf %86, %89 : vector<32x72xf32>
    %c96_74 = arith.constant 96 : index
    %c0_75 = arith.constant 0 : index
    %91 = vector.load %arg9[%c96_74, %c0_75] : memref<288x72xf32, #tpu.memory_space<vmem>>, vector<32x72xf32>
    %c216_76 = arith.constant 216 : index
    %c0_77 = arith.constant 0 : index
    %92 = vector.load %arg5[%c216_76, %c0_77] : memref<648x72xf32, #tpu.memory_space<vmem>>, vector<72x72xf32>
    %cst_78 = arith.constant dense<0.000000e+00> : vector<32x72xf32>
    %93 = tpu.matmul %91, %92, %cst_78 {dimension_numbers = #tpu.dot_dimension_numbers<[1], [0], [0], [1], [0, 0, 1, 1], [], []>} : vector<32x72xf32>, vector<72x72xf32>, vector<32x72xf32> -> vector<32x72xf32>
    %94 = arith.addf %90, %93 : vector<32x72xf32>
    %c128_79 = arith.constant 128 : index
    %c0_80 = arith.constant 0 : index
    %95 = vector.load %arg9[%c128_79, %c0_80] : memref<288x72xf32, #tpu.memory_space<vmem>>, vector<32x72xf32>
    %c288_81 = arith.constant 288 : index
    %c0_82 = arith.constant 0 : index
    %96 = vector.load %arg5[%c288_81, %c0_82] : memref<648x72xf32, #tpu.memory_space<vmem>>, vector<72x72xf32>
    %cst_83 = arith.constant dense<0.000000e+00> : vector<32x72xf32>
    %97 = tpu.matmul %95, %96, %cst_83 {dimension_numbers = #tpu.dot_dimension_numbers<[1], [0], [0], [1], [0, 0, 1, 1], [], []>} : vector<32x72xf32>, vector<72x72xf32>, vector<32x72xf32> -> vector<32x72xf32>
    %98 = arith.addf %94, %97 : vector<32x72xf32>
    %c160_84 = arith.constant 160 : index
    %c0_85 = arith.constant 0 : index
    %99 = vector.load %arg9[%c160_84, %c0_85] : memref<288x72xf32, #tpu.memory_space<vmem>>, vector<32x72xf32>
    %c360_86 = arith.constant 360 : index
    %c0_87 = arith.constant 0 : index
    %100 = vector.load %arg5[%c360_86, %c0_87] : memref<648x72xf32, #tpu.memory_space<vmem>>, vector<72x72xf32>
    %cst_88 = arith.constant dense<0.000000e+00> : vector<32x72xf32>
    %101 = tpu.matmul %99, %100, %cst_88 {dimension_numbers = #tpu.dot_dimension_numbers<[1], [0], [0], [1], [0, 0, 1, 1], [], []>} : vector<32x72xf32>, vector<72x72xf32>, vector<32x72xf32> -> vector<32x72xf32>
    %102 = arith.addf %98, %101 : vector<32x72xf32>
    %c192_89 = arith.constant 192 : index
    %c0_90 = arith.constant 0 : index
    %103 = vector.load %arg9[%c192_89, %c0_90] : memref<288x72xf32, #tpu.memory_space<vmem>>, vector<32x72xf32>
    %c432_91 = arith.constant 432 : index
    %c0_92 = arith.constant 0 : index
    %104 = vector.load %arg5[%c432_91, %c0_92] : memref<648x72xf32, #tpu.memory_space<vmem>>, vector<72x72xf32>
    %cst_93 = arith.constant dense<0.000000e+00> : vector<32x72xf32>
    %105 = tpu.matmul %103, %104, %cst_93 {dimension_numbers = #tpu.dot_dimension_numbers<[1], [0], [0], [1], [0, 0, 1, 1], [], []>} : vector<32x72xf32>, vector<72x72xf32>, vector<32x72xf32> -> vector<32x72xf32>
    %106 = arith.addf %102, %105 : vector<32x72xf32>
    %c224_94 = arith.constant 224 : index
    %c0_95 = arith.constant 0 : index
    %107 = vector.load %arg9[%c224_94, %c0_95] : memref<288x72xf32, #tpu.memory_space<vmem>>, vector<32x72xf32>
    %c504_96 = arith.constant 504 : index
    %c0_97 = arith.constant 0 : index
    %108 = vector.load %arg5[%c504_96, %c0_97] : memref<648x72xf32, #tpu.memory_space<vmem>>, vector<72x72xf32>
    %cst_98 = arith.constant dense<0.000000e+00> : vector<32x72xf32>
    %109 = tpu.matmul %107, %108, %cst_98 {dimension_numbers = #tpu.dot_dimension_numbers<[1], [0], [0], [1], [0, 0, 1, 1], [], []>} : vector<32x72xf32>, vector<72x72xf32>, vector<32x72xf32> -> vector<32x72xf32>
    %110 = arith.addf %106, %109 : vector<32x72xf32>
    %c256_99 = arith.constant 256 : index
    %c0_100 = arith.constant 0 : index
    %111 = vector.load %arg9[%c256_99, %c0_100] : memref<288x72xf32, #tpu.memory_space<vmem>>, vector<32x72xf32>
    %c576_101 = arith.constant 576 : index
    %c0_102 = arith.constant 0 : index
    %112 = vector.load %arg5[%c576_101, %c0_102] : memref<648x72xf32, #tpu.memory_space<vmem>>, vector<72x72xf32>
    %cst_103 = arith.constant dense<0.000000e+00> : vector<32x72xf32>
    %113 = tpu.matmul %111, %112, %cst_103 {dimension_numbers = #tpu.dot_dimension_numbers<[1], [0], [0], [1], [0, 0, 1, 1], [], []>} : vector<32x72xf32>, vector<72x72xf32>, vector<32x72xf32> -> vector<32x72xf32>
    %114 = arith.addf %110, %113 : vector<32x72xf32>
    %c0_104 = arith.constant 0 : index
    %c0_105 = arith.constant 0 : index
    %c1 = arith.constant 1 : index
    %115 = vector.load %arg4[%c0_104, %c0_105, %c1] : memref<1x32x8xf32, #tpu.memory_space<vmem>>, vector<1x32x1xf32>
    %116 = vector.shape_cast %115 : vector<1x32x1xf32> to vector<32x1xf32>
    %117 = vector.broadcast %116 : vector<32x1xf32> to vector<32x72xf32>
    %118 = arith.addf %114, %117 : vector<32x72xf32>
    %cst_106 = arith.constant dense<0.000000e+00> : vector<32x72xf32>
    %119 = tpu.matmul %0, %118, %cst_106 {dimension_numbers = #tpu.dot_dimension_numbers<[1], [0], [0], [1], [0, 0, 1, 1], [], []>} : vector<32x32xf32>, vector<32x72xf32>, vector<32x72xf32> -> vector<32x72xf32>
    %cst_107 = arith.constant dense<0.000000e+00> : vector<32xf32>
    %120 = vector.multi_reduction <add>, %119, %cst_107 [1] : vector<32x72xf32> to vector<32xf32>
    %121 = vector.shape_cast %120 : vector<32xf32> to vector<32x1xf32>
    %cst_108 = arith.constant 0.00173611112 : f32
    %122 = vector.broadcast %cst_108 : f32 to vector<32x1xf32>
    %123 = arith.mulf %121, %122 : vector<32x1xf32>
    %124 = arith.mulf %118, %118 : vector<32x72xf32>
    %cst_109 = arith.constant dense<0.000000e+00> : vector<32x72xf32>
    %125 = tpu.matmul %0, %124, %cst_109 {dimension_numbers = #tpu.dot_dimension_numbers<[1], [0], [0], [1], [0, 0, 1, 1], [], []>} : vector<32x32xf32>, vector<32x72xf32>, vector<32x72xf32> -> vector<32x72xf32>
    %cst_110 = arith.constant dense<0.000000e+00> : vector<32xf32>
    %126 = vector.multi_reduction <add>, %125, %cst_110 [1] : vector<32x72xf32> to vector<32xf32>
    %127 = vector.shape_cast %126 : vector<32xf32> to vector<32x1xf32>
    %cst_111 = arith.constant 0.00173611112 : f32
    %128 = vector.broadcast %cst_111 : f32 to vector<32x1xf32>
    %129 = arith.mulf %127, %128 : vector<32x1xf32>
    %130 = arith.mulf %123, %123 : vector<32x1xf32>
    %131 = arith.subf %129, %130 : vector<32x1xf32>
    %132 = vector.broadcast %123 : vector<32x1xf32> to vector<32x72xf32>
    %133 = arith.subf %118, %132 : vector<32x72xf32>
    %cst_112 = arith.constant 9.99999974E-6 : f32
    %134 = vector.broadcast %cst_112 : f32 to vector<32x1xf32>
    %135 = arith.addf %131, %134 : vector<32x1xf32>
    %136 = math.rsqrt %135 : vector<32x1xf32>
    %137 = vector.broadcast %136 : vector<32x1xf32> to vector<32x72xf32>
    %138 = arith.mulf %133, %137 : vector<32x72xf32>
    %139 = vector.broadcast %2 : vector<32x1xf32> to vector<32x72xf32>
    %140 = arith.mulf %138, %139 : vector<32x72xf32>
    %141 = vector.broadcast %4 : vector<32x1xf32> to vector<32x72xf32>
    %142 = arith.addf %140, %141 : vector<32x72xf32>
    %cst_113 = arith.constant 0.000000e+00 : f32
    %143 = vector.broadcast %cst_113 : f32 to vector<32x72xf32>
    %144 = arith.maximumf %142, %143 : vector<32x72xf32>
    %c0_114 = arith.constant 0 : index
    %c576_115 = arith.constant 576 : index
    %c0_116 = arith.constant 0 : index
    %145 = vector.load %arg2[%c0_114, %c576_115, %c0_116] : memref<1x864x32xf32, #tpu.memory_space<vmem>>, vector<1x288x32xf32>
    %146 = vector.shape_cast %145 : vector<1x288x32xf32> to vector<288x32xf32>
    %cst_117 = arith.constant dense<0.000000e+00> : vector<288x72xf32>
    %147 = tpu.matmul %146, %144, %cst_117 {dimension_numbers = #tpu.dot_dimension_numbers<[1], [0], [0], [1], [0, 0, 1, 1], [], []>} : vector<288x32xf32>, vector<32x72xf32>, vector<288x72xf32> -> vector<288x72xf32>
    %c0_118 = arith.constant 0 : index
    %c0_119 = arith.constant 0 : index
    %148 = vector.load %arg9[%c0_118, %c0_119] : memref<288x72xf32, #tpu.memory_space<vmem>>, vector<288x72xf32>
    tpu.vector_store %arg9[%c0_118, %c0_119], %147 {strides = array<i32>} : memref<288x72xf32, #tpu.memory_space<vmem>>, vector<288x72xf32>,
    %c0_120 = arith.constant 0 : index
    %c0_121 = arith.constant 0 : index
    %149 = vector.load %arg9[%c0_120, %c0_121] : memref<288x72xf32, #tpu.memory_space<vmem>>, vector<32x72xf32>
    %c0_122 = arith.constant 0 : index
    %c0_123 = arith.constant 0 : index
    %150 = vector.load %arg5[%c0_122, %c0_123] : memref<648x72xf32, #tpu.memory_space<vmem>>, vector<72x72xf32>
    %cst_124 = arith.constant dense<0.000000e+00> : vector<32x72xf32>
    %151 = tpu.matmul %149, %150, %cst_124 {dimension_numbers = #tpu.dot_dimension_numbers<[1], [0], [0], [1], [0, 0, 1, 1], [], []>} : vector<32x72xf32>, vector<72x72xf32>, vector<32x72xf32> -> vector<32x72xf32>
    %c32_125 = arith.constant 32 : index
    %c0_126 = arith.constant 0 : index
    %152 = vector.load %arg9[%c32_125, %c0_126] : memref<288x72xf32, #tpu.memory_space<vmem>>, vector<32x72xf32>
    %c72_127 = arith.constant 72 : index
    %c0_128 = arith.constant 0 : index
    %153 = vector.load %arg5[%c72_127, %c0_128] : memref<648x72xf32, #tpu.memory_space<vmem>>, vector<72x72xf32>
    %cst_129 = arith.constant dense<0.000000e+00> : vector<32x72xf32>
    %154 = tpu.matmul %152, %153, %cst_129 {dimension_numbers = #tpu.dot_dimension_numbers<[1], [0], [0], [1], [0, 0, 1, 1], [], []>} : vector<32x72xf32>, vector<72x72xf32>, vector<32x72xf32> -> vector<32x72xf32>
    %155 = arith.addf %151, %154 : vector<32x72xf32>
    %c64_130 = arith.constant 64 : index
    %c0_131 = arith.constant 0 : index
    %156 = vector.load %arg9[%c64_130, %c0_131] : memref<288x72xf32, #tpu.memory_space<vmem>>, vector<32x72xf32>
    %c144_132 = arith.constant 144 : index
    %c0_133 = arith.constant 0 : index
    %157 = vector.load %arg5[%c144_132, %c0_133] : memref<648x72xf32, #tpu.memory_space<vmem>>, vector<72x72xf32>
    %cst_134 = arith.constant dense<0.000000e+00> : vector<32x72xf32>
    %158 = tpu.matmul %156, %157, %cst_134 {dimension_numbers = #tpu.dot_dimension_numbers<[1], [0], [0], [1], [0, 0, 1, 1], [], []>} : vector<32x72xf32>, vector<72x72xf32>, vector<32x72xf32> -> vector<32x72xf32>
    %159 = arith.addf %155, %158 : vector<32x72xf32>
    %c96_135 = arith.constant 96 : index
    %c0_136 = arith.constant 0 : index
    %160 = vector.load %arg9[%c96_135, %c0_136] : memref<288x72xf32, #tpu.memory_space<vmem>>, vector<32x72xf32>
    %c216_137 = arith.constant 216 : index
    %c0_138 = arith.constant 0 : index
    %161 = vector.load %arg5[%c216_137, %c0_138] : memref<648x72xf32, #tpu.memory_space<vmem>>, vector<72x72xf32>
    %cst_139 = arith.constant dense<0.000000e+00> : vector<32x72xf32>
    %162 = tpu.matmul %160, %161, %cst_139 {dimension_numbers = #tpu.dot_dimension_numbers<[1], [0], [0], [1], [0, 0, 1, 1], [], []>} : vector<32x72xf32>, vector<72x72xf32>, vector<32x72xf32> -> vector<32x72xf32>
    %163 = arith.addf %159, %162 : vector<32x72xf32>
    %c128_140 = arith.constant 128 : index
    %c0_141 = arith.constant 0 : index
    %164 = vector.load %arg9[%c128_140, %c0_141] : memref<288x72xf32, #tpu.memory_space<vmem>>, vector<32x72xf32>
    %c288_142 = arith.constant 288 : index
    %c0_143 = arith.constant 0 : index
    %165 = vector.load %arg5[%c288_142, %c0_143] : memref<648x72xf32, #tpu.memory_space<vmem>>, vector<72x72xf32>
    %cst_144 = arith.constant dense<0.000000e+00> : vector<32x72xf32>
    %166 = tpu.matmul %164, %165, %cst_144 {dimension_numbers = #tpu.dot_dimension_numbers<[1], [0], [0], [1], [0, 0, 1, 1], [], []>} : vector<32x72xf32>, vector<72x72xf32>, vector<32x72xf32> -> vector<32x72xf32>
    %167 = arith.addf %163, %166 : vector<32x72xf32>
    %c160_145 = arith.constant 160 : index
    %c0_146 = arith.constant 0 : index
    %168 = vector.load %arg9[%c160_145, %c0_146] : memref<288x72xf32, #tpu.memory_space<vmem>>, vector<32x72xf32>
    %c360_147 = arith.constant 360 : index
    %c0_148 = arith.constant 0 : index
    %169 = vector.load %arg5[%c360_147, %c0_148] : memref<648x72xf32, #tpu.memory_space<vmem>>, vector<72x72xf32>
    %cst_149 = arith.constant dense<0.000000e+00> : vector<32x72xf32>
    %170 = tpu.matmul %168, %169, %cst_149 {dimension_numbers = #tpu.dot_dimension_numbers<[1], [0], [0], [1], [0, 0, 1, 1], [], []>} : vector<32x72xf32>, vector<72x72xf32>, vector<32x72xf32> -> vector<32x72xf32>
    %171 = arith.addf %167, %170 : vector<32x72xf32>
    %c192_150 = arith.constant 192 : index
    %c0_151 = arith.constant 0 : index
    %172 = vector.load %arg9[%c192_150, %c0_151] : memref<288x72xf32, #tpu.memory_space<vmem>>, vector<32x72xf32>
    %c432_152 = arith.constant 432 : index
    %c0_153 = arith.constant 0 : index
    %173 = vector.load %arg5[%c432_152, %c0_153] : memref<648x72xf32, #tpu.memory_space<vmem>>, vector<72x72xf32>
    %cst_154 = arith.constant dense<0.000000e+00> : vector<32x72xf32>
    %174 = tpu.matmul %172, %173, %cst_154 {dimension_numbers = #tpu.dot_dimension_numbers<[1], [0], [0], [1], [0, 0, 1, 1], [], []>} : vector<32x72xf32>, vector<72x72xf32>, vector<32x72xf32> -> vector<32x72xf32>
    %175 = arith.addf %171, %174 : vector<32x72xf32>
    %c224_155 = arith.constant 224 : index
    %c0_156 = arith.constant 0 : index
    %176 = vector.load %arg9[%c224_155, %c0_156] : memref<288x72xf32, #tpu.memory_space<vmem>>, vector<32x72xf32>
    %c504_157 = arith.constant 504 : index
    %c0_158 = arith.constant 0 : index
    %177 = vector.load %arg5[%c504_157, %c0_158] : memref<648x72xf32, #tpu.memory_space<vmem>>, vector<72x72xf32>
    %cst_159 = arith.constant dense<0.000000e+00> : vector<32x72xf32>
    %178 = tpu.matmul %176, %177, %cst_159 {dimension_numbers = #tpu.dot_dimension_numbers<[1], [0], [0], [1], [0, 0, 1, 1], [], []>} : vector<32x72xf32>, vector<72x72xf32>, vector<32x72xf32> -> vector<32x72xf32>
    %179 = arith.addf %175, %178 : vector<32x72xf32>
    %c256_160 = arith.constant 256 : index
    %c0_161 = arith.constant 0 : index
    %180 = vector.load %arg9[%c256_160, %c0_161] : memref<288x72xf32, #tpu.memory_space<vmem>>, vector<32x72xf32>
    %c576_162 = arith.constant 576 : index
    %c0_163 = arith.constant 0 : index
    %181 = vector.load %arg5[%c576_162, %c0_163] : memref<648x72xf32, #tpu.memory_space<vmem>>, vector<72x72xf32>
    %cst_164 = arith.constant dense<0.000000e+00> : vector<32x72xf32>
    %182 = tpu.matmul %180, %181, %cst_164 {dimension_numbers = #tpu.dot_dimension_numbers<[1], [0], [0], [1], [0, 0, 1, 1], [], []>} : vector<32x72xf32>, vector<72x72xf32>, vector<32x72xf32> -> vector<32x72xf32>
    %183 = arith.addf %179, %182 : vector<32x72xf32>
    %c0_165 = arith.constant 0 : index
    %c0_166 = arith.constant 0 : index
    %c2 = arith.constant 2 : index
    %184 = vector.load %arg4[%c0_165, %c0_166, %c2] : memref<1x32x8xf32, #tpu.memory_space<vmem>>, vector<1x32x1xf32>
    %185 = vector.shape_cast %184 : vector<1x32x1xf32> to vector<32x1xf32>
    %186 = vector.broadcast %185 : vector<32x1xf32> to vector<32x72xf32>
    %187 = arith.addf %183, %186 : vector<32x72xf32>
    %cst_167 = arith.constant dense<0.000000e+00> : vector<32x72xf32>
    %188 = tpu.matmul %0, %187, %cst_167 {dimension_numbers = #tpu.dot_dimension_numbers<[1], [0], [0], [1], [0, 0, 1, 1], [], []>} : vector<32x32xf32>, vector<32x72xf32>, vector<32x72xf32> -> vector<32x72xf32>
    %cst_168 = arith.constant dense<0.000000e+00> : vector<32xf32>
    %189 = vector.multi_reduction <add>, %188, %cst_168 [1] : vector<32x72xf32> to vector<32xf32>
    %190 = vector.shape_cast %189 : vector<32xf32> to vector<32x1xf32>
    %cst_169 = arith.constant 0.00173611112 : f32
    %191 = vector.broadcast %cst_169 : f32 to vector<32x1xf32>
    %192 = arith.mulf %190, %191 : vector<32x1xf32>
    %193 = arith.mulf %187, %187 : vector<32x72xf32>
    %cst_170 = arith.constant dense<0.000000e+00> : vector<32x72xf32>
    %194 = tpu.matmul %0, %193, %cst_170 {dimension_numbers = #tpu.dot_dimension_numbers<[1], [0], [0], [1], [0, 0, 1, 1], [], []>} : vector<32x32xf32>, vector<32x72xf32>, vector<32x72xf32> -> vector<32x72xf32>
    %cst_171 = arith.constant dense<0.000000e+00> : vector<32xf32>
    %195 = vector.multi_reduction <add>, %194, %cst_171 [1] : vector<32x72xf32> to vector<32xf32>
    %196 = vector.shape_cast %195 : vector<32xf32> to vector<32x1xf32>
    %cst_172 = arith.constant 0.00173611112 : f32
    %197 = vector.broadcast %cst_172 : f32 to vector<32x1xf32>
    %198 = arith.mulf %196, %197 : vector<32x1xf32>
    %199 = arith.mulf %192, %192 : vector<32x1xf32>
    %200 = arith.subf %198, %199 : vector<32x1xf32>
    %201 = vector.broadcast %192 : vector<32x1xf32> to vector<32x72xf32>
    %202 = arith.subf %187, %201 : vector<32x72xf32>
    %cst_173 = arith.constant 9.99999974E-6 : f32
    %203 = vector.broadcast %cst_173 : f32 to vector<32x1xf32>
    %204 = arith.addf %200, %203 : vector<32x1xf32>
    %205 = math.rsqrt %204 : vector<32x1xf32>
    %206 = vector.broadcast %205 : vector<32x1xf32> to vector<32x72xf32>
    %207 = arith.mulf %202, %206 : vector<32x72xf32>
    %208 = vector.broadcast %2 : vector<32x1xf32> to vector<32x72xf32>
    %209 = arith.mulf %207, %208 : vector<32x72xf32>
    %210 = vector.broadcast %4 : vector<32x1xf32> to vector<32x72xf32>
    %211 = arith.addf %209, %210 : vector<32x72xf32>
    %cst_174 = arith.constant 0.000000e+00 : f32
    %212 = vector.broadcast %cst_174 : f32 to vector<32x72xf32>
    %213 = arith.maximumf %211, %212 : vector<32x72xf32>
    %c0_175 = arith.constant 0 : index
    %c0_176 = arith.constant 0 : index
    %c0_177 = arith.constant 0 : index
    %214 = vector.load %arg3[%c0_175, %c0_176, %c0_177] : memref<1x32x32xf32, #tpu.memory_space<vmem>>, vector<1x32x32xf32>
    %215 = vector.shape_cast %214 : vector<1x32x32xf32> to vector<32x32xf32>
    %cst_178 = arith.constant dense<0.000000e+00> : vector<32x72xf32>
    %216 = tpu.matmul %215, %213, %cst_178 {dimension_numbers = #tpu.dot_dimension_numbers<[1], [0], [0], [1], [0, 0, 1, 1], [], []>} : vector<32x32xf32>, vector<32x72xf32>, vector<32x72xf32> -> vector<32x72xf32>
    %c0_179 = arith.constant 0 : index
    %c0_180 = arith.constant 0 : index
    %217 = vector.load %arg9[%c0_179, %c0_180] : memref<288x72xf32, #tpu.memory_space<vmem>>, vector<32x72xf32>
    tpu.vector_store %arg9[%c0_179, %c0_180], %216 {strides = array<i32>} : memref<288x72xf32, #tpu.memory_space<vmem>>, vector<32x72xf32>,
    %c0_181 = arith.constant 0 : index
    %c0_182 = arith.constant 0 : index
    %218 = vector.load %arg9[%c0_181, %c0_182] : memref<288x72xf32, #tpu.memory_space<vmem>>, vector<8x72xf32>
    %c0_183 = arith.constant 0 : index
    %c0_184 = arith.constant 0 : index
    %219 = vector.load %arg6[%c0_183, %c0_184] : memref<288x18xf32, #tpu.memory_space<vmem>>, vector<72x18xf32>
    %cst_185 = arith.constant dense<0.000000e+00> : vector<8x18xf32>
    %220 = tpu.matmul %218, %219, %cst_185 {dimension_numbers = #tpu.dot_dimension_numbers<[1], [0], [0], [1], [0, 0, 1, 1], [], []>} : vector<8x72xf32>, vector<72x18xf32>, vector<8x18xf32> -> vector<8x18xf32>
    %c8 = arith.constant 8 : index
    %c0_186 = arith.constant 0 : index
    %221 = vector.load %arg9[%c8, %c0_186] : memref<288x72xf32, #tpu.memory_space<vmem>>, vector<8x72xf32>
    %c72_187 = arith.constant 72 : index
    %c0_188 = arith.constant 0 : index
    %222 = vector.load %arg6[%c72_187, %c0_188] : memref<288x18xf32, #tpu.memory_space<vmem>>, vector<72x18xf32>
    %cst_189 = arith.constant dense<0.000000e+00> : vector<8x18xf32>
    %223 = tpu.matmul %221, %222, %cst_189 {dimension_numbers = #tpu.dot_dimension_numbers<[1], [0], [0], [1], [0, 0, 1, 1], [], []>} : vector<8x72xf32>, vector<72x18xf32>, vector<8x18xf32> -> vector<8x18xf32>
    %224 = arith.addf %220, %223 : vector<8x18xf32>
    %c16 = arith.constant 16 : index
    %c0_190 = arith.constant 0 : index
    %225 = vector.load %arg9[%c16, %c0_190] : memref<288x72xf32, #tpu.memory_space<vmem>>, vector<8x72xf32>
    %c144_191 = arith.constant 144 : index
    %c0_192 = arith.constant 0 : index
    %226 = vector.load %arg6[%c144_191, %c0_192] : memref<288x18xf32, #tpu.memory_space<vmem>>, vector<72x18xf32>
    %cst_193 = arith.constant dense<0.000000e+00> : vector<8x18xf32>
    %227 = tpu.matmul %225, %226, %cst_193 {dimension_numbers = #tpu.dot_dimension_numbers<[1], [0], [0], [1], [0, 0, 1, 1], [], []>} : vector<8x72xf32>, vector<72x18xf32>, vector<8x18xf32> -> vector<8x18xf32>
    %228 = arith.addf %224, %227 : vector<8x18xf32>
    %c24 = arith.constant 24 : index
    %c0_194 = arith.constant 0 : index
    %229 = vector.load %arg9[%c24, %c0_194] : memref<288x72xf32, #tpu.memory_space<vmem>>, vector<8x72xf32>
    %c216_195 = arith.constant 216 : index
    %c0_196 = arith.constant 0 : index
    %230 = vector.load %arg6[%c216_195, %c0_196] : memref<288x18xf32, #tpu.memory_space<vmem>>, vector<72x18xf32>
    %cst_197 = arith.constant dense<0.000000e+00> : vector<8x18xf32>
    %231 = tpu.matmul %229, %230, %cst_197 {dimension_numbers = #tpu.dot_dimension_numbers<[1], [0], [0], [1], [0, 0, 1, 1], [], []>} : vector<8x72xf32>, vector<72x18xf32>, vector<8x18xf32> -> vector<8x18xf32>
    %232 = arith.addf %228, %231 : vector<8x18xf32>
    %c0_198 = arith.constant 0 : index
    %c0_199 = arith.constant 0 : index
    %c5 = arith.constant 5 : index
    %233 = vector.load %arg4[%c0_198, %c0_199, %c5] : memref<1x32x8xf32, #tpu.memory_space<vmem>>, vector<1x8x1xf32>
    %234 = vector.shape_cast %233 : vector<1x8x1xf32> to vector<8x1xf32>
    %235 = vector.broadcast %234 : vector<8x1xf32> to vector<8x18xf32>
    %236 = arith.addf %232, %235 : vector<8x18xf32>
    %cst_200 = arith.constant dense<0.000000e+00> : vector<8xf32>
    %237 = vector.multi_reduction <add>, %236, %cst_200 [1] : vector<8x18xf32> to vector<8xf32>
    %238 = vector.shape_cast %237 : vector<8xf32> to vector<8x1xf32>
    %cst_201 = arith.constant dense<0.000000e+00> : vector<1xf32>
    %239 = vector.multi_reduction <add>, %238, %cst_201 [0] : vector<8x1xf32> to vector<1xf32>
    %240 = vector.shape_cast %239 : vector<1xf32> to vector<1x1xf32>
    %cst_202 = arith.constant 0.0069444445 : f32
    %241 = vector.broadcast %cst_202 : f32 to vector<1x1xf32>
    %242 = arith.mulf %240, %241 : vector<1x1xf32>
    %243 = arith.mulf %236, %236 : vector<8x18xf32>
    %cst_203 = arith.constant dense<0.000000e+00> : vector<8xf32>
    %244 = vector.multi_reduction <add>, %243, %cst_203 [1] : vector<8x18xf32> to vector<8xf32>
    %245 = vector.shape_cast %244 : vector<8xf32> to vector<8x1xf32>
    %cst_204 = arith.constant dense<0.000000e+00> : vector<1xf32>
    %246 = vector.multi_reduction <add>, %245, %cst_204 [0] : vector<8x1xf32> to vector<1xf32>
    %247 = vector.shape_cast %246 : vector<1xf32> to vector<1x1xf32>
    %cst_205 = arith.constant 0.0069444445 : f32
    %248 = vector.broadcast %cst_205 : f32 to vector<1x1xf32>
    %249 = arith.mulf %247, %248 : vector<1x1xf32>
    %250 = arith.mulf %242, %242 : vector<1x1xf32>
    %251 = arith.subf %249, %250 : vector<1x1xf32>
    %c0_206 = arith.constant 0 : index
    %c0_207 = arith.constant 0 : index
    %c6 = arith.constant 6 : index
    %252 = vector.load %arg4[%c0_206, %c0_207, %c6] : memref<1x32x8xf32, #tpu.memory_space<vmem>>, vector<1x1x1xf32>
    %253 = vector.shape_cast %252 : vector<1x1x1xf32> to vector<1x1xf32>
    %c0_208 = arith.constant 0 : index
    %c0_209 = arith.constant 0 : index
    %c7 = arith.constant 7 : index
    %254 = vector.load %arg4[%c0_208, %c0_209, %c7] : memref<1x32x8xf32, #tpu.memory_space<vmem>>, vector<1x1x1xf32>
    %255 = vector.shape_cast %254 : vector<1x1x1xf32> to vector<1x1xf32>
    %256 = vector.broadcast %242 : vector<1x1xf32> to vector<8x18xf32>
    %257 = arith.subf %236, %256 : vector<8x18xf32>
    %cst_210 = arith.constant 9.99999974E-6 : f32
    %258 = vector.broadcast %cst_210 : f32 to vector<1x1xf32>
    %259 = arith.addf %251, %258 : vector<1x1xf32>
    %260 = math.rsqrt %259 : vector<1x1xf32>
    %261 = vector.broadcast %260 : vector<1x1xf32> to vector<8x18xf32>
    %262 = arith.mulf %257, %261 : vector<8x18xf32>
    %263 = vector.broadcast %253 : vector<1x1xf32> to vector<8x18xf32>
    %264 = arith.mulf %262, %263 : vector<8x18xf32>
    %265 = vector.broadcast %255 : vector<1x1xf32> to vector<8x18xf32>
    %266 = arith.addf %264, %265 : vector<8x18xf32>
    %cst_211 = arith.constant 0.000000e+00 : f32
    %267 = vector.broadcast %cst_211 : f32 to vector<8x18xf32>
    %268 = arith.maximumf %266, %267 : vector<8x18xf32>
    %c0_212 = arith.constant 0 : index
    %c0_213 = arith.constant 0 : index
    %c0_214 = arith.constant 0 : index
    %269 = vector.load %arg8[%c0_212, %c0_213, %c0_214] : memref<1x8x18xf32, #tpu.memory_space<vmem>>, vector<1x8x18xf32>
    %270 = vector.shape_cast %269 : vector<1x8x18xf32> to vector<8x18xf32>
    %271 = vector.shape_cast %268 : vector<8x18xf32> to vector<1x8x18xf32>
    tpu.vector_store %arg8[%c0_212, %c0_213, %c0_214], %271 {strides = array<i32>} : memref<1x8x18xf32, #tpu.memory_space<vmem>>, vector<1x8x18xf32>,
    return
  }
  func.func @transform_0(%arg0: i32) -> (i32, i32, i32) {
    %c0_i32 = arith.constant 0 : i32
    %c0_i32_0 = arith.constant 0 : i32
    %c0_i32_1 = arith.constant 0 : i32
    return %arg0, %c0_i32, %c0_i32_0 : i32, i32, i32
  }
  func.func @transform_1(%arg0: i32) -> (i32, i32, i32) {
    %c0_i32 = arith.constant 0 : i32
    %c0_i32_0 = arith.constant 0 : i32
    %c0_i32_1 = arith.constant 0 : i32
    return %arg0, %c0_i32, %c0_i32_0 : i32, i32, i32
  }
  func.func @transform_2(%arg0: i32) -> (i32, i32, i32) {
    %c0_i32 = arith.constant 0 : i32
    %c0_i32_0 = arith.constant 0 : i32
    %c0_i32_1 = arith.constant 0 : i32
    return %arg0, %c0_i32, %c0_i32_0 : i32, i32, i32
  }
  func.func @transform_3(%arg0: i32) -> (i32, i32, i32) {
    %c0_i32 = arith.constant 0 : i32
    %c0_i32_0 = arith.constant 0 : i32
    %c0_i32_1 = arith.constant 0 : i32
    return %arg0, %c0_i32, %c0_i32_0 : i32, i32, i32
  }
  func.func @transform_4(%arg0: i32) -> (i32, i32) {
    %c0_i32 = arith.constant 0 : i32
    %c0_i32_0 = arith.constant 0 : i32
    %c0_i32_1 = arith.constant 0 : i32
    return %c0_i32, %c0_i32_0 : i32, i32
  }
  func.func @transform_5(%arg0: i32) -> (i32, i32) {
    %c0_i32 = arith.constant 0 : i32
    %c0_i32_0 = arith.constant 0 : i32
    %c0_i32_1 = arith.constant 0 : i32
    return %c0_i32, %c0_i32_0 : i32, i32
  }
  func.func @transform_6(%arg0: i32) -> (i32, i32) {
    %c0_i32 = arith.constant 0 : i32
    %c0_i32_0 = arith.constant 0 : i32
    %c0_i32_1 = arith.constant 0 : i32
    return %c0_i32, %c0_i32_0 : i32, i32
  }
  func.func @transform_7(%arg0: i32) -> (i32, i32, i32) {
    %c0_i32 = arith.constant 0 : i32
    %c0_i32_0 = arith.constant 0 : i32
    %c0_i32_1 = arith.constant 0 : i32
    return %arg0, %c0_i32, %c0_i32_0 : i32, i32, i32
  }
}

</mosaic_0001>

<llo_original>
// kernel: three_cnn_forward.3
$region0: #{three_cnn_forward.3}
  #allocation0 [shape = 'u32[]', space=smem, size = 0x4, offset = 0x4, fixed_abs, tag = 'smem constant byte address 0x4 - core index']
  #allocation1 [shape = 'u32[72,128]{1,0:T(1,128)}', space=vmem, size = 0x9000, scoped, tag = 'internal scratch']
  %s0 = inlined_call_operand.vmem [shape: f32[3,8,18], index: 0, kind: input, shape index: {}]
  %s1 = inlined_call_operand.hbm [shape: f32[3,18,32], index: 1, kind: input, shape index: {}]
  %s2 = inlined_call_operand.hbm [shape: f32[32,32], index: 2, kind: input, shape index: {}]
  %s3 = inlined_call_operand.hbm [shape: f32[32,32], index: 3, kind: input, shape index: {}]
  %s4 = inlined_call_operand.hbm [shape: f32[32,4], index: 4, kind: input, shape index: {}]
  %s5 = inlined_call_operand.hbm [shape: f32[3,8,32], index: 5, kind: input, shape index: {}]
  %s6 = inlined_call_operand.hbm [shape: f32[1,4], index: 6, kind: input, shape index: {}]
  %s7 = inlined_call_operand.vmem [shape: f32[8,4], index: 7, kind: output, shape index: {}]
  %s8 = sld [smem:[#allocation0]]
  $region62: #{three_cnn_forward.3} parent=0
    _
  %s10 = ssub.s32 1, %s8
  %s11 = scalar_select 0, %s10, %s8
  $region1: #{three_cnn_forward.3} parent=0
    #allocation2 [shape = 'u8[36864]{0}', space=vmem, size = 0x9000, scoped, tag = 'input window, operand 1, single buffered']
    #allocation3 [shape = 's32[1]{0}', space=sflag, size = 0x4, scoped, tag = 'scoped memory for three_cnn_forward.3']
    #allocation4 [shape = 'u8[16384]{0}', space=vmem, size = 0x4000, scoped, tag = 'input window, operand 2, single buffered']
    #allocation5 [shape = 's32[1]{0}', space=sflag, size = 0x4, scoped, tag = 'scoped memory for three_cnn_forward.3']
    #allocation6 [shape = 'u8[16384]{0}', space=vmem, size = 0x4000, scoped, tag = 'input window, operand 3, single buffered']
    #allocation7 [shape = 'u8[16384]{0}', space=vmem, size = 0x4000, scoped, tag = 'input window, operand 4, single buffered']
    #allocation8 [shape = 's32[1]{0}', space=sflag, size = 0x4, scoped, tag = 'scoped memory for three_cnn_forward.3']
    #allocation9 [shape = 'u8[12288]{0}', space=vmem, size = 0x3000, scoped, tag = 'input window, operand 5, single buffered']
    #allocation10 [shape = 'u8[512]{0}', space=vmem, size = 0x400, scoped, tag = 'input window, operand 6, single buffered']
    #allocation11 [shape = 's32[1]{0}', space=sflag, size = 0x4, scoped, tag = 'scoped memory for three_cnn_forward.3']
    %12 = vsyncpa [#allocation3], 0
    %13 = vsyncpa [#allocation5], 0
    %14 = vsyncpa [#allocation8], 0
    %15 = vsyncpa [#allocation11], 0
    // Predicated region
    $region2: #{three_cnn_forward.3} parent=1 // pred_check
      _
    $region3: #{three_cnn_forward.3} parent=1 // pred_check_branch
      %17 = sbr.rel (0) target = $region5
    $region4: #{three_cnn_forward.3} parent=1 // pred_region
      _
    $region5: #{three_cnn_forward.3} parent=1 // pred_fallthru
      _
    // Predicated region
    $region6: #{three_cnn_forward.3} parent=1 // pred_check
      _
    $region7: #{three_cnn_forward.3} parent=1 // pred_check_branch
      %19 = sbr.rel (0) target = $region9
    $region8: #{three_cnn_forward.3} parent=1 // pred_region
      %21 = vsyncadd [#allocation3], 0
      %s22 = sshll.u32 %s1, 4
      %s23 = int_to_ptr.hbm [resolvable:$true] %s22
      %s24 = sshll.u32 [#allocation2], 4
      %s25 = int_to_ptr.vmem [resolvable:$true] %s24
      %30 = dma.hbm_to_vmem [thread:$0]  %s23, 1152, %s25, [#allocation3], 128, 128, 8
    $region9: #{three_cnn_forward.3} parent=1 // pred_fallthru
      _
    // Predicated region
    $region10: #{three_cnn_forward.3} parent=1 // pred_check
      _
    $region11: #{three_cnn_forward.3} parent=1 // pred_check_branch
      %32 = sbr.rel (0) target = $region13
    $region12: #{three_cnn_forward.3} parent=1 // pred_region
      %34 = vsyncadd [#allocation5], 0
      %s35 = sshll.u32 %s2, 4
      %s36 = int_to_ptr.hbm [resolvable:$true] %s35
      %s37 = sshll.u32 [#allocation4], 4
      %s38 = int_to_ptr.vmem [resolvable:$true] %s37
      %43 = dma.hbm_to_vmem [thread:$0]  %s36, 512, %s38, [#allocation5], 128, 128, 8
    $region13: #{three_cnn_forward.3} parent=1 // pred_fallthru
      _
    // Predicated region
    $region14: #{three_cnn_forward.3} parent=1 // pred_check
      _
    $region15: #{three_cnn_forward.3} parent=1 // pred_check_branch
      %45 = sbr.rel (0) target = $region17
    $region16: #{three_cnn_forward.3} parent=1 // pred_region
      %47 = vsyncadd [#allocation5], 0
      %s48 = sshll.u32 %s3, 4
      %s49 = int_to_ptr.hbm [resolvable:$true] %s48
      %s50 = sshll.u32 [#allocation6], 4
      %s51 = int_to_ptr.vmem [resolvable:$true] %s50
      %56 = dma.hbm_to_vmem [thread:$0]  %s49, 512, %s51, [#allocation5], 128, 128, 8
    $region17: #{three_cnn_forward.3} parent=1 // pred_fallthru
      _
    // Predicated region
    $region18: #{three_cnn_forward.3} parent=1 // pred_check
      _
    $region19: #{three_cnn_forward.3} parent=1 // pred_check_branch
      %58 = sbr.rel (0) target = $region21
    $region20: #{three_cnn_forward.3} parent=1 // pred_region
      %60 = vsyncadd [#allocation8], 0
      %s61 = sshll.u32 %s4, 4
      %s62 = int_to_ptr.hbm [resolvable:$true] %s61
      %s63 = sshll.u32 [#allocation7], 4
      %s64 = int_to_ptr.vmem [resolvable:$true] %s63
      %69 = dma.hbm_to_vmem [thread:$0]  %s62, 512, %s64, [#allocation8], 128, 128, 8
    $region21: #{three_cnn_forward.3} parent=1 // pred_fallthru
      _
    // Predicated region
    $region22: #{three_cnn_forward.3} parent=1 // pred_check
      _
    $region23: #{three_cnn_forward.3} parent=1 // pred_check_branch
      %71 = sbr.rel (0) target = $region25
    $region24: #{three_cnn_forward.3} parent=1 // pred_region
      %73 = vsyncadd [#allocation8], 0
      %s74 = sshll.u32 %s5, 4
      %s75 = int_to_ptr.hbm [resolvable:$true] %s74
      %s76 = sshll.u32 [#allocation9], 4
      %s77 = int_to_ptr.vmem [resolvable:$true] %s76
      %82 = dma.hbm_to_vmem [thread:$0]  %s75, 384, %s77, [#allocation8], 128, 128, 8
    $region25: #{three_cnn_forward.3} parent=1 // pred_fallthru
      _
    // Predicated region
    $region26: #{three_cnn_forward.3} parent=1 // pred_check
      _
    $region27: #{three_cnn_forward.3} parent=1 // pred_check_branch
      %84 = sbr.rel (0) target = $region29
    $region28: #{three_cnn_forward.3} parent=1 // pred_region
      %86 = vsyncadd [#allocation11], 0
      %s88 = sshll.u32 %s6, 4
      %s89 = int_to_ptr.hbm [resolvable:$true] %s88
      %s90 = sshll.u32 [#allocation10], 4
      %s91 = int_to_ptr.vmem [resolvable:$true] %s90
      %93 = dma.hbm_to_vmem [thread:$0]  %s89, 16, %s91, [#allocation11]
    $region29: #{three_cnn_forward.3} parent=1 // pred_fallthru
      _
    // Predicated region
    $region30: #{three_cnn_forward.3} parent=1 // pred_check
      _
    $region31: #{three_cnn_forward.3} parent=1 // pred_check_branch
      %95 = sbr.rel (0) target = $region33
    $region32: #{three_cnn_forward.3} parent=1 // pred_region
      %97 = dma.done [#allocation3], 1152
    $region33: #{three_cnn_forward.3} parent=1 // pred_fallthru
      _
    // Predicated region
    $region34: #{three_cnn_forward.3} parent=1 // pred_check
      _
    $region35: #{three_cnn_forward.3} parent=1 // pred_check_branch
      %99 = sbr.rel (0) target = $region37
    $region36: #{three_cnn_forward.3} parent=1 // pred_region
      %101 = dma.done [#allocation5], 512
    $region37: #{three_cnn_forward.3} parent=1 // pred_fallthru
      _
    // Predicated region
    $region38: #{three_cnn_forward.3} parent=1 // pred_check
      _
    $region39: #{three_cnn_forward.3} parent=1 // pred_check_branch
      %103 = sbr.rel (0) target = $region41
    $region40: #{three_cnn_forward.3} parent=1 // pred_region
      %105 = dma.done [#allocation5], 512
    $region41: #{three_cnn_forward.3} parent=1 // pred_fallthru
      _
    // Predicated region
    $region42: #{three_cnn_forward.3} parent=1 // pred_check
      _
    $region43: #{three_cnn_forward.3} parent=1 // pred_check_branch
      %107 = sbr.rel (0) target = $region45
    $region44: #{three_cnn_forward.3} parent=1 // pred_region
      %109 = dma.done [#allocation8], 512
    $region45: #{three_cnn_forward.3} parent=1 // pred_fallthru
      _
    // Predicated region
    $region46: #{three_cnn_forward.3} parent=1 // pred_check
      _
    $region47: #{three_cnn_forward.3} parent=1 // pred_check_branch
      %111 = sbr.rel (0) target = $region49
    $region48: #{three_cnn_forward.3} parent=1 // pred_region
      %113 = dma.done [#allocation8], 384
    $region49: #{three_cnn_forward.3} parent=1 // pred_fallthru
      _
    // Predicated region
    $region50: #{three_cnn_forward.3} parent=1 // pred_check
      _
    $region51: #{three_cnn_forward.3} parent=1 // pred_check_branch
      %115 = sbr.rel (0) target = $region53
    $region52: #{three_cnn_forward.3} parent=1 // pred_region
      %117 = dma.done [#allocation11], 16
    $region53: #{three_cnn_forward.3} parent=1 // pred_fallthru
      _
    %v118 = vld [vmem:[%s0] sm:$0xff]
    %v119 = vld [vmem:[#allocation2] sm:$0xff]
    %v120 = vld [vmem:[#allocation2 + $0x8] sm:$0xff]
    %v121 = vld [vmem:[#allocation2 + $0x10] sm:$0x3]
    %s122 = scalar_lea.vmem %s0, 8
    %v123 = vld [vmem:[%s122] sm:$0xff]
    %s124 = scalar_lea.vmem [#allocation2], 24
    %v125 = vld [vmem:[%s124] sm:$0xff]
    %v126 = vld [vmem:[%s124 + $0x8] sm:$0xff]
    %v127 = vld [vmem:[%s124 + $0x10] sm:$0x3]
    %vm128 = vcmask 146432
    %v130 = vsel %vm128, %v123, 0
    %vm132 = vcmask 1041408
    %v134 = vsel %vm132, %v127, 0
    %136 = vmatpush.msra.mxu0 0.0
    %137 = vmatpush.msra.mxu0 0.0
    %138 = vmatpush.msra.mxu0 0.0
    %139 = vmatpush.msra.mxu0 0.0
    %140 = vmatpush.msra.mxu0 0.0
    %141 = vmatpush.msra.mxu0 0.0
    %142 = vmatpush.msra.mxu0 0.0
    %143 = vmatpush.msra.mxu0 0.0
    %144 = vmatpush.msra.mxu0 0.0
    %145 = vmatpush.msra.mxu0 0.0
    %146 = vmatpush.msra.mxu0 0.0
    %147 = vmatpush.msra.mxu0 0.0
    %148 = vmatpush.msra.mxu0 0.0
    %149 = vmatpush.msra.mxu0 %v134
    %150 = vmatpush.msra.mxu0 %v126
    %151 = vmatpush.msra.mxu0 %v125
    %152 = vmatmul.f32.gmra.mxu0 %v130
    %v153 = vpop.f32.mrf.mxu0
    %v154 = vadd.f32 0.0, %v153
    %155 = vdwg.mxu0
    %v157 = vsel %vm128, %v118, 0
    %v160 = vsel %vm132, %v121, 0
    %162 = vmatpush.msra.mxu0 0.0
    %163 = vmatpush.msra.mxu0 0.0
    %164 = vmatpush.msra.mxu0 0.0
    %165 = vmatpush.msra.mxu0 0.0
    %166 = vmatpush.msra.mxu0 0.0
    %167 = vmatpush.msra.mxu0 0.0
    %168 = vmatpush.msra.mxu0 0.0
    %169 = vmatpush.msra.mxu0 0.0
    %170 = vmatpush.msra.mxu0 0.0
    %171 = vmatpush.msra.mxu0 0.0
    %172 = vmatpush.msra.mxu0 0.0
    %173 = vmatpush.msra.mxu0 0.0
    %174 = vmatpush.msra.mxu0 0.0
    %175 = vmatpush.msra.mxu0 %v160
    %176 = vmatpush.msra.mxu0 %v120
    %177 = vmatpush.msra.mxu0 %v119
    %178 = vmatmul.f32.gmra.mxu0 %v157
    %v179 = vpop.f32.mrf.mxu0
    %v180 = vadd.f32 %v154, %v179
    %181 = vdwg.mxu0
    %s182 = scalar_lea.vmem %s0, 16
    %v183 = vld [vmem:[%s182] sm:$0xff]
    %s184 = scalar_lea.vmem [#allocation2], 48
    %v185 = vld [vmem:[%s184] sm:$0xff]
    %v186 = vld [vmem:[%s184 + $0x8] sm:$0xff]
    %v187 = vld [vmem:[%s184 + $0x10] sm:$0x3]
    %v189 = vsel %vm128, %v183, 0
    %v192 = vsel %vm132, %v187, 0
    %194 = vmatpush.msra.mxu0 0.0
    %195 = vmatpush.msra.mxu0 0.0
    %196 = vmatpush.msra.mxu0 0.0
    %197 = vmatpush.msra.mxu0 0.0
    %198 = vmatpush.msra.mxu0 0.0
    %199 = vmatpush.msra.mxu0 0.0
    %200 = vmatpush.msra.mxu0 0.0
    %201 = vmatpush.msra.mxu0 0.0
    %202 = vmatpush.msra.mxu0 0.0
    %203 = vmatpush.msra.mxu0 0.0
    %204 = vmatpush.msra.mxu0 0.0
    %205 = vmatpush.msra.mxu0 0.0
    %206 = vmatpush.msra.mxu0 0.0
    %207 = vmatpush.msra.mxu0 %v192
    %208 = vmatpush.msra.mxu0 %v186
    %209 = vmatpush.msra.mxu0 %v185
    %210 = vmatmul.f32.gmra.mxu0 %v189
    %v211 = vpop.f32.mrf.mxu0
    %v212 = vadd.f32 0.0, %v211
    %213 = vdwg.mxu0
    %v214 = vadd.f32 %v180, %v212
    %v215 = vld [vmem:[#allocation9] sm:$0xff]
    %v216 = vperm.slane %v215, 0
    %v217 = vadd.f32 %v214, %v216
    %vm218 = vcmask 261120
    %v219 = vsel %vm218, %v217, 0.0
    %v220 = vrot.slane %v219, 4
    %v221 = vadd.f32 %v219, %v220
    %v222 = vrot.slane %v221, 2
    %v223 = vadd.f32 %v221, %v222
    %v224 = vrot.slane %v223, 1
    %v225 = vadd.f32 %v223, %v224
    %v226 = vrcp.pop 8.0
    %v227 = vmul.f32 8.0, %v226
    %v228 = vsub.f32 1.0, %v227
    %v229 = vmul.f32 %v226, %v228
    %v230 = vadd.f32 %v226, %v229
    %vm231 = vweird.f32 %v226
    %v232 = vsel %vm231, %v226, %v230
    %v233 = vmul.f32 %v225, %v232
    %v234 = vmul.f32 %v217, %v217
    %v235 = vsel %vm218, %v234, 0.0
    %v236 = vrot.slane %v235, 4
    %v237 = vadd.f32 %v235, %v236
    %v238 = vrot.slane %v237, 2
    %v239 = vadd.f32 %v237, %v238
    %v240 = vrot.slane %v239, 1
    %v241 = vadd.f32 %v239, %v240
    %v242 = vmul.f32 %v241, %v232
    %v243 = vmul.f32 %v233, %v233
    %v244 = vsub.f32 %v242, %v243
    %v245 = vsub.f32 %v217, %v233
    %v246 = vadd.f32 %v244, 1e-05
    %v247 = vrsqrt.pop %v246
    %v248 = vmul.f32 %v247, %v246
    %v249 = vmul.f32 %v248, %v247
    %v250 = vmul.f32 0.5, %v249
    %v251 = vsub.f32 1.5, %v250
    %v252 = vmul.f32 %v247, %v251
    %vm253 = vweird.f32 %v246
    %vm254 = vweird.f32 %v247
    %vm255 = vmor %vm253, %vm254
    %v256 = vsel %vm255, %v247, %v252
    %v257 = vmul.f32 %v245, %v256
    %v258 = vperm.slane %v215, 1
    %v259 = vmul.f32 %v257, %v258
    %v260 = vperm.slane %v215, 2
    %v261 = vadd.f32 %v259, %v260
    %v262 = vmax.f32 %v261, 0.0
    %v263 = vld [vmem:[#allocation4] sm:$0xff]
    %v264 = vld [vmem:[#allocation4 + $0x8] sm:$0xff]
    %v265 = vld [vmem:[#allocation4 + $0x10] sm:$0xff]
    %v266 = vld [vmem:[#allocation4 + $0x18] sm:$0xff]
    %s267 = scalar_lea.vmem [#allocation9], 8
    %v268 = vld [vmem:[%s267] sm:$0xff]
    %v269 = vperm.slane %v268, 0
    %v271 = vsel %vm218, %v262, 0
    %273 = vmatpush.msra.mxu0 0.0
    %274 = vmatpush.msra.mxu0 0.0
    %275 = vmatpush.msra.mxu0 0.0
    %276 = vmatpush.msra.mxu0 0.0
    %277 = vmatpush.msra.mxu0 0.0
    %278 = vmatpush.msra.mxu0 0.0
    %279 = vmatpush.msra.mxu0 0.0
    %280 = vmatpush.msra.mxu0 0.0
    %281 = vmatpush.msra.mxu0 0.0
    %282 = vmatpush.msra.mxu0 0.0
    %283 = vmatpush.msra.mxu0 0.0
    %284 = vmatpush.msra.mxu0 0.0
    %285 = vmatpush.msra.mxu0 %v266
    %286 = vmatpush.msra.mxu0 %v265
    %287 = vmatpush.msra.mxu0 %v264
    %288 = vmatpush.msra.mxu0 %v263
    %289 = vmatmul.f32.gmra.mxu0 %v271
    %v290 = vpop.f32.mrf.mxu0
    %v291 = vadd.f32 %v269, %v290
    %292 = vdwg.mxu0
    %v293 = vsel %vm218, %v291, 0.0
    %v294 = vrot.slane %v293, 4
    %v295 = vadd.f32 %v293, %v294
    %v296 = vrot.slane %v295, 2
    %v297 = vadd.f32 %v295, %v296
    %v298 = vrot.slane %v297, 1
    %v299 = vadd.f32 %v297, %v298
    %v300 = vmul.f32 %v299, %v232
    %v301 = vmul.f32 %v291, %v291
    %v302 = vsel %vm218, %v301, 0.0
    %v303 = vrot.slane %v302, 4
    %v304 = vadd.f32 %v302, %v303
    %v305 = vrot.slane %v304, 2
    %v306 = vadd.f32 %v304, %v305
    %v307 = vrot.slane %v306, 1
    %v308 = vadd.f32 %v306, %v307
    %v309 = vmul.f32 %v308, %v232
    %v310 = vmul.f32 %v300, %v300
    %v311 = vsub.f32 %v309, %v310
    %v312 = vsub.f32 %v291, %v300
    %v313 = vadd.f32 %v311, 1e-05
    %v314 = vrsqrt.pop %v313
    %v315 = vmul.f32 %v314, %v313
    %v316 = vmul.f32 %v315, %v314
    %v317 = vmul.f32 0.5, %v316
    %v318 = vsub.f32 1.5, %v317
    %v319 = vmul.f32 %v314, %v318
    %vm320 = vweird.f32 %v313
    %vm321 = vweird.f32 %v314
    %vm322 = vmor %vm320, %vm321
    %v323 = vsel %vm322, %v314, %v319
    %v324 = vmul.f32 %v312, %v323
    %v325 = vperm.slane %v268, 1
    %v326 = vmul.f32 %v324, %v325
    %v327 = vperm.slane %v268, 2
    %v328 = vadd.f32 %v326, %v327
    %v329 = vmax.f32 %v328, 0.0
    %v330 = vld [vmem:[#allocation6] sm:$0xff]
    %v331 = vld [vmem:[#allocation6 + $0x8] sm:$0xff]
    %v332 = vld [vmem:[#allocation6 + $0x10] sm:$0xff]
    %v333 = vld [vmem:[#allocation6 + $0x18] sm:$0xff]
    %s334 = scalar_lea.vmem [#allocation9], 16
    %v335 = vld [vmem:[%s334] sm:$0xff]
    %v336 = vperm.slane %v335, 0
    %v338 = vsel %vm218, %v329, 0
    %340 = vmatpush.msra.mxu0 0.0
    %341 = vmatpush.msra.mxu0 0.0
    %342 = vmatpush.msra.mxu0 0.0
    %343 = vmatpush.msra.mxu0 0.0
    %344 = vmatpush.msra.mxu0 0.0
    %345 = vmatpush.msra.mxu0 0.0
    %346 = vmatpush.msra.mxu0 0.0
    %347 = vmatpush.msra.mxu0 0.0
    %348 = vmatpush.msra.mxu0 0.0
    %349 = vmatpush.msra.mxu0 0.0
    %350 = vmatpush.msra.mxu0 0.0
    %351 = vmatpush.msra.mxu0 0.0
    %352 = vmatpush.msra.mxu0 %v333
    %353 = vmatpush.msra.mxu0 %v332
    %354 = vmatpush.msra.mxu0 %v331
    %355 = vmatpush.msra.mxu0 %v330
    %356 = vmatmul.f32.gmra.mxu0 %v338
    %v357 = vpop.f32.mrf.mxu0
    %v358 = vadd.f32 %v336, %v357
    %359 = vdwg.mxu0
    %v360 = vsel %vm218, %v358, 0.0
    %v361 = vrot.slane %v360, 4
    %v362 = vadd.f32 %v360, %v361
    %v363 = vrot.slane %v362, 2
    %v364 = vadd.f32 %v362, %v363
    %v365 = vrot.slane %v364, 1
    %v366 = vadd.f32 %v364, %v365
    %v367 = vmul.f32 %v366, %v232
    %v368 = vmul.f32 %v358, %v358
    %v369 = vsel %vm218, %v368, 0.0
    %v370 = vrot.slane %v369, 4
    %v371 = vadd.f32 %v369, %v370
    %v372 = vrot.slane %v371, 2
    %v373 = vadd.f32 %v371, %v372
    %v374 = vrot.slane %v373, 1
    %v375 = vadd.f32 %v373, %v374
    %v376 = vmul.f32 %v375, %v232
    %v377 = vmul.f32 %v367, %v367
    %v378 = vsub.f32 %v376, %v377
    %v379 = vsub.f32 %v358, %v367
    %v380 = vadd.f32 %v378, 1e-05
    %v381 = vrsqrt.pop %v380
    %v382 = vmul.f32 %v381, %v380
    %v383 = vmul.f32 %v382, %v381
    %v384 = vmul.f32 0.5, %v383
    %v385 = vsub.f32 1.5, %v384
    %v386 = vmul.f32 %v381, %v385
    %vm387 = vweird.f32 %v380
    %vm388 = vweird.f32 %v381
    %vm389 = vmor %vm387, %vm388
    %v390 = vsel %vm389, %v381, %v386
    %v391 = vmul.f32 %v379, %v390
    %v392 = vperm.slane %v335, 1
    %v393 = vmul.f32 %v391, %v392
    %v394 = vperm.slane %v335, 2
    %v395 = vadd.f32 %v393, %v394
    %v396 = vmax.f32 %v395, 0.0
    %v397 = vld [vmem:[#allocation7] sm:$0xff]
    %v398 = vld [vmem:[#allocation7 + $0x8] sm:$0xff]
    %v399 = vld [vmem:[#allocation7 + $0x10] sm:$0xff]
    %v400 = vld [vmem:[#allocation7 + $0x18] sm:$0xff]
    %v401 = vld [vmem:[#allocation10] sm:$0x1]
    %v403 = vperm.slane %v401, 0
    %v406 = vsel %vm218, %v396, 0
    %408 = vmatpush.msra.mxu0 0.0
    %409 = vmatpush.msra.mxu0 0.0
    %410 = vmatpush.msra.mxu0 0.0
    %411 = vmatpush.msra.mxu0 0.0
    %412 = vmatpush.msra.mxu0 0.0
    %413 = vmatpush.msra.mxu0 0.0
    %414 = vmatpush.msra.mxu0 0.0
    %415 = vmatpush.msra.mxu0 0.0
    %416 = vmatpush.msra.mxu0 0.0
    %417 = vmatpush.msra.mxu0 0.0
    %418 = vmatpush.msra.mxu0 0.0
    %419 = vmatpush.msra.mxu0 0.0
    %420 = vmatpush.msra.mxu0 %v400
    %421 = vmatpush.msra.mxu0 %v399
    %422 = vmatpush.msra.mxu0 %v398
    %423 = vmatpush.msra.mxu0 %v397
    %424 = vmatmul.f32.gmra.mxu0 %v406
    %v425 = vpop.f32.mrf.mxu0
    %v426 = vadd.f32 %v403, %v425
    %427 = vdwg.mxu0
    %vm428 = vcmask 31744
    %429 = vst.msk [vmem:[%s7] sm:$0xff] %vm428, %v426
    // Predicated region
    $region54: #{three_cnn_forward.3} parent=1 // pred_check
      _
    $region55: #{three_cnn_forward.3} parent=1 // pred_check_branch
      %431 = sbr.rel (0) target = $region57
    $region56: #{three_cnn_forward.3} parent=1 // pred_region
      _
    $region57: #{three_cnn_forward.3} parent=1 // pred_fallthru
      _
    // Predicated region
    $region58: #{three_cnn_forward.3} parent=1 // pred_check
      _
    $region59: #{three_cnn_forward.3} parent=1 // pred_check_branch
      %433 = sbr.rel (0) target = $region61
    $region60: #{three_cnn_forward.3} parent=1 // pred_region
      _
    $region61: #{three_cnn_forward.3} parent=1 // pred_fallthru
      _
    %434 = vsyncpa [#allocation3], 1
    %435 = vsyncpa [#allocation5], 1
    %436 = vsyncpa [#allocation8], 1
    %437 = vsyncpa [#allocation11], 1

// kernel: three_cnn_forward.2
$region0: #{three_cnn_forward.2}
  #allocation0 [shape = 'u32[]', space=smem, size = 0x4, offset = 0x4, fixed_abs, tag = 'smem constant byte address 0x4 - core index']
  #allocation1 [shape = 'u32[72,128]{1,0:T(1,128)}', space=vmem, size = 0x9000, scoped, tag = 'internal scratch']
  #allocation2 [shape = 'f32[288,72]{1,0:T(8,128)}', space=vmem, size = 0x24000, scoped, tag = 'scratch operand']
  %s0 = inlined_call_operand.vmem [shape: f32[3,32,72], index: 0, kind: input, shape index: {}]
  %s1 = inlined_call_operand.hbm [shape: f32[3,864,32], index: 1, kind: input, shape index: {}]
  %s2 = inlined_call_operand.hbm [shape: f32[3,32,32], index: 2, kind: input, shape index: {}]
  %s3 = inlined_call_operand.hbm [shape: f32[3,32,8], index: 3, kind: input, shape index: {}]
  %s4 = inlined_call_operand.hbm [shape: f32[648,72], index: 4, kind: input, shape index: {}]
  %s5 = inlined_call_operand.hbm [shape: f32[288,18], index: 5, kind: input, shape index: {}]
  %s6 = inlined_call_operand.hbm [shape: f32[32,32], index: 6, kind: input, shape index: {}]
  %s7 = inlined_call_operand.vmem [shape: f32[3,8,18], index: 7, kind: output, shape index: {}]
  %s8 = sld [smem:[#allocation0]]
  $region85: #{three_cnn_forward.2} parent=0
    _
  %s10 = ssub.s32 1, %s8
  %s11 = scalar_select 0, %s10, %s8
  $region1: #{three_cnn_forward.2} parent=0
    #allocation3 [shape = 'u8[884736]{0}', space=vmem, size = 0xd8000, scoped, tag = 'input window, operand 1']
    #allocation4 [shape = 's32[2]{0}', space=sflag, size = 0x8, scoped, tag = 'scoped memory for three_cnn_forward.2']
    #allocation5 [shape = 'u8[32768]{0}', space=vmem, size = 0x8000, scoped, tag = 'input window, operand 2']
    #allocation6 [shape = 's32[2]{0}', space=sflag, size = 0x8, scoped, tag = 'scoped memory for three_cnn_forward.2']
    #allocation7 [shape = 'u8[32768]{0}', space=vmem, size = 0x8000, scoped, tag = 'input window, operand 3']
    #allocation8 [shape = 'u8[331776]{0}', space=vmem, size = 0x51000, scoped, tag = 'input window, operand 4, single buffered']
    #allocation9 [shape = 's32[1]{0}', space=sflag, size = 0x4, scoped, tag = 'scoped memory for three_cnn_forward.2']
    #allocation10 [shape = 'u8[147456]{0}', space=vmem, size = 0x24000, scoped, tag = 'input window, operand 5, single buffered']
    #allocation11 [shape = 'u8[16384]{0}', space=vmem, size = 0x4000, scoped, tag = 'input window, operand 6, single buffered']
    #allocation12 [shape = 's32[1]{0}', space=sflag, size = 0x4, scoped, tag = 'scoped memory for three_cnn_forward.2']
    %12 = vsyncpa [#allocation4], 0
    %s13 = scalar_lea.sflag [#allocation4], 1
    %14 = vsyncpa %s13, 0
    %15 = vsyncpa [#allocation6], 0
    %s16 = scalar_lea.sflag [#allocation6], 1
    %17 = vsyncpa %s16, 0
    %18 = vsyncpa [#allocation9], 0
    %19 = vsyncpa [#allocation12], 0
    loop: start=0, step=1, limit=5
    $region2: #{three_cnn_forward.2} parent=1 // loop_pre_header
      _
    $region3: #{three_cnn_forward.2} parent=1 // loop_header
      %s21 = sphi 0, %s25
      %p22 = scmp.ge.s32.totalorder %s21, 5
      %s31 = sphi 0, %s33
      %s34 = sphi 0, %s31
      %s35 = sphi 0, %s34
      %s51 = sphi 0, %s35
      %s57 = sphi 0, %s59
      %s60 = sphi 0, %s57
      %s61 = sphi 0, %s60
      %s77 = sphi 0, %s61
      %s83 = sphi 0, %s85
      %s86 = sphi 0, %s83
      %s87 = sphi 0, %s86
      %s103 = sphi 0, %s87
      %s109 = sphi 0, %s111
      %s112 = sphi 0, %s109
      %s113 = sphi 0, %s112
      %s129 = sphi 0, %s113
      %s133 = sphi 0, %s133
      %s135 = sphi 0, %s133
      %s136 = sphi 0, %s135
      %s150 = sphi 0, %s136
      %s154 = sphi 0, %s154
      %s156 = sphi 0, %s154
      %s157 = sphi 0, %s156
      %s171 = sphi 0, %s157
      %s175 = sphi 0, %s175
      %s177 = sphi 0, %s175
      %s178 = sphi 0, %s177
      %s192 = sphi 0, %s178
      %s198 = sphi 0, %s200
      %s201 = sphi 0, %s198
      %s202 = sphi 0, %s201
      %s218 = sphi 0, %s202
    $region4: #{three_cnn_forward.2} parent=1 // loop_header_branch
      %24 = sbr.rel (%p22) target = $region8
    $region5: #{three_cnn_forward.2} parent=1 // loop_body
      %s26 = ssub.s32 %s21, 1
      %s27 = ssub.s32 %s21, 2
      %s28 = sadd.s32 %s21, 1
      %s29 = ssub.s32 %s21, %s28
      %p30 = scmp.eq.s32.totalorder %s29, 0
      %s32 = sadd.s32 %s31, 1
      %s33 = scalar_select %p30, %s31, %s32
      %p36 = pneg %p30
      %p37 = scmp.eq.s32.totalorder %s21, 2
      %p38 = por %p36, %p37
      %p39 = scmp.ne.s32.totalorder %s31, %s34
      %p40 = scmp.eq.s32.totalorder %s21, 0
      %p41 = por %p39, %p40
      %p42 = scmp.ne.s32.totalorder %s31, %s34
      %p43 = scmp.eq.s32.totalorder %s26, 2
      %p44 = por %p42, %p43
      %p45 = scmp.ne.s32.totalorder %s34, %s35
      %p46 = scmp.eq.s32.totalorder %s26, 0
      %p47 = por %p45, %p46
      %p48 = scmp.ne.s32.totalorder %s34, %s35
      %p49 = scmp.eq.s32.totalorder %s27, 2
      %p50 = por %p48, %p49
      %p52 = scmp.ne.s32.totalorder %s35, %s51
      %p53 = scmp.eq.s32.totalorder %s27, 0
      %p54 = por %p52, %p53
      %s55 = ssub.s32 %s21, %s28
      %p56 = scmp.eq.s32.totalorder %s55, 0
      %s58 = sadd.s32 %s57, 1
      %s59 = scalar_select %p56, %s57, %s58
      %p62 = pneg %p56
      %p63 = scmp.eq.s32.totalorder %s21, 2
      %p64 = por %p62, %p63
      %p65 = scmp.ne.s32.totalorder %s57, %s60
      %p66 = scmp.eq.s32.totalorder %s21, 0
      %p67 = por %p65, %p66
      %p68 = scmp.ne.s32.totalorder %s57, %s60
      %p69 = scmp.eq.s32.totalorder %s26, 2
      %p70 = por %p68, %p69
      %p71 = scmp.ne.s32.totalorder %s60, %s61
      %p72 = scmp.eq.s32.totalorder %s26, 0
      %p73 = por %p71, %p72
      %p74 = scmp.ne.s32.totalorder %s60, %s61
      %p75 = scmp.eq.s32.totalorder %s27, 2
      %p76 = por %p74, %p75
      %p78 = scmp.ne.s32.totalorder %s61, %s77
      %p79 = scmp.eq.s32.totalorder %s27, 0
      %p80 = por %p78, %p79
      %s81 = ssub.s32 %s21, %s28
      %p82 = scmp.eq.s32.totalorder %s81, 0
      %s84 = sadd.s32 %s83, 1
      %s85 = scalar_select %p82, %s83, %s84
      %p88 = pneg %p82
      %p89 = scmp.eq.s32.totalorder %s21, 2
      %p90 = por %p88, %p89
      %p91 = scmp.ne.s32.totalorder %s83, %s86
      %p92 = scmp.eq.s32.totalorder %s21, 0
      %p93 = por %p91, %p92
      %p94 = scmp.ne.s32.totalorder %s83, %s86
      %p95 = scmp.eq.s32.totalorder %s26, 2
      %p96 = por %p94, %p95
      %p97 = scmp.ne.s32.totalorder %s86, %s87
      %p98 = scmp.eq.s32.totalorder %s26, 0
      %p99 = por %p97, %p98
      %p100 = scmp.ne.s32.totalorder %s86, %s87
      %p101 = scmp.eq.s32.totalorder %s27, 2
      %p102 = por %p100, %p101
      %p104 = scmp.ne.s32.totalorder %s87, %s103
      %p105 = scmp.eq.s32.totalorder %s27, 0
      %p106 = por %p104, %p105
      %s107 = ssub.s32 %s21, %s28
      %p108 = scmp.eq.s32.totalorder %s107, 0
      %s110 = sadd.s32 %s109, 1
      %s111 = scalar_select %p108, %s109, %s110
      %p114 = pneg %p108
      %p115 = scmp.eq.s32.totalorder %s21, 2
      %p116 = por %p114, %p115
      %p117 = scmp.ne.s32.totalorder %s109, %s112
      %p118 = scmp.eq.s32.totalorder %s21, 0
      %p119 = por %p117, %p118
      %p120 = scmp.ne.s32.totalorder %s109, %s112
      %p121 = scmp.eq.s32.totalorder %s26, 2
      %p122 = por %p120, %p121
      %p123 = scmp.ne.s32.totalorder %s112, %s113
      %p124 = scmp.eq.s32.totalorder %s26, 0
      %p125 = por %p123, %p124
      %p126 = scmp.ne.s32.totalorder %s112, %s113
      %p127 = scmp.eq.s32.totalorder %s27, 2
      %p128 = por %p126, %p127
      %p130 = scmp.ne.s32.totalorder %s113, %s129
      %p131 = scmp.eq.s32.totalorder %s27, 0
      %p132 = por %p130, %p131
      %s134 = sadd.s32 %s133, 1
      %p137 = scmp.eq.s32.totalorder %s21, 2
      %p138 = scmp.ne.s32.totalorder %s133, %s135
      %p139 = scmp.eq.s32.totalorder %s21, 0
      %p140 = por %p138, %p139
      %p141 = scmp.ne.s32.totalorder %s133, %s135
      %p142 = scmp.eq.s32.totalorder %s26, 2
      %p143 = por %p141, %p142
      %p144 = scmp.ne.s32.totalorder %s135, %s136
      %p145 = scmp.eq.s32.totalorder %s26, 0
      %p146 = por %p144, %p145
      %p147 = scmp.ne.s32.totalorder %s135, %s136
      %p148 = scmp.eq.s32.totalorder %s27, 2
      %p149 = por %p147, %p148
      %p151 = scmp.ne.s32.totalorder %s136, %s150
      %p152 = scmp.eq.s32.totalorder %s27, 0
      %p153 = por %p151, %p152
      %s155 = sadd.s32 %s154, 1
      %p158 = scmp.eq.s32.totalorder %s21, 2
      %p159 = scmp.ne.s32.totalorder %s154, %s156
      %p160 = scmp.eq.s32.totalorder %s21, 0
      %p161 = por %p159, %p160
      %p162 = scmp.ne.s32.totalorder %s154, %s156
      %p163 = scmp.eq.s32.totalorder %s26, 2
      %p164 = por %p162, %p163
      %p165 = scmp.ne.s32.totalorder %s156, %s157
      %p166 = scmp.eq.s32.totalorder %s26, 0
      %p167 = por %p165, %p166
      %p168 = scmp.ne.s32.totalorder %s156, %s157
      %p169 = scmp.eq.s32.totalorder %s27, 2
      %p170 = por %p168, %p169
      %p172 = scmp.ne.s32.totalorder %s157, %s171
      %p173 = scmp.eq.s32.totalorder %s27, 0
      %p174 = por %p172, %p173
      %s176 = sadd.s32 %s175, 1
      %p179 = scmp.eq.s32.totalorder %s21, 2
      %p180 = scmp.ne.s32.totalorder %s175, %s177
      %p181 = scmp.eq.s32.totalorder %s21, 0
      %p182 = por %p180, %p181
      %p183 = scmp.ne.s32.totalorder %s175, %s177
      %p184 = scmp.eq.s32.totalorder %s26, 2
      %p185 = por %p183, %p184
      %p186 = scmp.ne.s32.totalorder %s177, %s178
      %p187 = scmp.eq.s32.totalorder %s26, 0
      %p188 = por %p186, %p187
      %p189 = scmp.ne.s32.totalorder %s177, %s178
      %p190 = scmp.eq.s32.totalorder %s27, 2
      %p191 = por %p189, %p190
      %p193 = scmp.ne.s32.totalorder %s178, %s192
      %p194 = scmp.eq.s32.totalorder %s27, 0
      %p195 = por %p193, %p194
      %s196 = ssub.s32 %s21, %s28
      %p197 = scmp.eq.s32.totalorder %s196, 0
      %s199 = sadd.s32 %s198, 1
      %s200 = scalar_select %p197, %s198, %s199
      %p203 = pneg %p197
      %p204 = scmp.eq.s32.totalorder %s21, 2
      %p205 = por %p203, %p204
      %p206 = scmp.ne.s32.totalorder %s198, %s201
      %p207 = scmp.eq.s32.totalorder %s21, 0
      %p208 = por %p206, %p207
      %p209 = scmp.ne.s32.totalorder %s198, %s201
      %p210 = scmp.eq.s32.totalorder %s26, 2
      %p211 = por %p209, %p210
      %p212 = scmp.ne.s32.totalorder %s201, %s202
      %p213 = scmp.eq.s32.totalorder %s26, 0
      %p214 = por %p212, %p213
      %p215 = scmp.ne.s32.totalorder %s201, %s202
      %p216 = scmp.eq.s32.totalorder %s27, 2
      %p217 = por %p215, %p216
      %p219 = scmp.ne.s32.totalorder %s202, %s218
      %p220 = scmp.eq.s32.totalorder %s27, 0
      %p221 = por %p219, %p220
      %p222 = scmp.le.s32.totalorder 1, %s21
      %p223 = scmp.lt.s32.totalorder %s21, 4
      %p224 = pnand %p222, %p223
      %p225 = pneg %p224
      // Predicated region
      $region9: #{three_cnn_forward.2} parent=5 // pred_check
        _
      $region10: #{three_cnn_forward.2} parent=5 // pred_check_branch
        %227 = sbr.rel (%p224) target = $region12
      $region11: #{three_cnn_forward.2} parent=5 // pred_region
        %s228 = ssub.s32 %s21, 1
        // Predicated region
        $region13: #{three_cnn_forward.2} parent=11 // pred_check
          %p229 = pneg %p146
        $region14: #{three_cnn_forward.2} parent=11 // pred_check_branch
          %231 = sbr.rel (%p229) target = $region16
        $region15: #{three_cnn_forward.2} parent=11 // pred_region
          %233 = vsyncadd [#allocation9], 0
          %s234 = sshll.u32 %s4, 4
          %s235 = int_to_ptr.hbm [resolvable:$true] %s234
          %s236 = sshll.u32 [#allocation8], 4
          %s237 = int_to_ptr.vmem [resolvable:$true] %s236
          %242 = dma.hbm_to_vmem [thread:$0]  %s235, 10368, %s237, [#allocation9], 128, 128, 8
        $region16: #{three_cnn_forward.2} parent=11 // pred_fallthru
          _
        // Predicated region
        $region17: #{three_cnn_forward.2} parent=11 // pred_check
          %p243 = pneg %p167
        $region18: #{three_cnn_forward.2} parent=11 // pred_check_branch
          %245 = sbr.rel (%p243) target = $region20
        $region19: #{three_cnn_forward.2} parent=11 // pred_region
          %247 = vsyncadd [#allocation9], 0
          %s248 = sshll.u32 %s5, 4
          %s249 = int_to_ptr.hbm [resolvable:$true] %s248
          %s250 = sshll.u32 [#allocation10], 4
          %s251 = int_to_ptr.vmem [resolvable:$true] %s250
          %256 = dma.hbm_to_vmem [thread:$0]  %s249, 4608, %s251, [#allocation9], 128, 128, 8
        $region20: #{three_cnn_forward.2} parent=11 // pred_fallthru
          _
        // Predicated region
        $region21: #{three_cnn_forward.2} parent=11 // pred_check
          %p257 = pneg %p188
        $region22: #{three_cnn_forward.2} parent=11 // pred_check_branch
          %259 = sbr.rel (%p257) target = $region24
        $region23: #{three_cnn_forward.2} parent=11 // pred_region
          %261 = vsyncadd [#allocation12], 0
          %s262 = sshll.u32 %s6, 4
          %s263 = int_to_ptr.hbm [resolvable:$true] %s262
          %s264 = sshll.u32 [#allocation11], 4
          %s265 = int_to_ptr.vmem [resolvable:$true] %s264
          %270 = dma.hbm_to_vmem [thread:$0]  %s263, 512, %s265, [#allocation12], 128, 128, 8
        $region24: #{three_cnn_forward.2} parent=11 // pred_fallthru
          _
      $region12: #{three_cnn_forward.2} parent=5 // pred_fallthru
        _
      %p271 = scmp.lt.s32.totalorder %s21, 3
      // Predicated region
      $region25: #{three_cnn_forward.2} parent=5 // pred_check
        %p272 = pneg %p271
      $region26: #{three_cnn_forward.2} parent=5 // pred_check_branch
        %274 = sbr.rel (%p272) target = $region28
      $region27: #{three_cnn_forward.2} parent=5 // pred_region
        // Predicated region
        $region29: #{three_cnn_forward.2} parent=27 // pred_check
          %p275 = pneg %p41
        $region30: #{three_cnn_forward.2} parent=27 // pred_check_branch
          %277 = sbr.rel (%p275) target = $region32
        $region31: #{three_cnn_forward.2} parent=27 // pred_region
          %p278 = scmp.lt.s32.totalorder %s21, 2
          %s279 = scalar_select %p278, %s21, 2
          %s280 = smul.addr %s279, 4
          %s281 = smul.addr %s280, 8
          %s282 = scalar_lea.vmem %s0, %s281
        $region32: #{three_cnn_forward.2} parent=27 // pred_fallthru
          _
        // Predicated region
        $region33: #{three_cnn_forward.2} parent=27 // pred_check
          %p283 = pneg %p67
        $region34: #{three_cnn_forward.2} parent=27 // pred_check_branch
          %285 = sbr.rel (%p283) target = $region36
        $region35: #{three_cnn_forward.2} parent=27 // pred_region
          %s286 = sand.u32 %s57, 1
          %s287 = scalar_lea.sflag [#allocation4], %s286
          %s288 = sand.u32 %s57, 1
          %s289 = smul.addr %s288, 864
          %s290 = scalar_lea.vmem [#allocation3], %s289
          %292 = vsyncadd %s287, 0
          %s293 = smul.addr %s21, 108
          %s294 = smul.addr %s293, 8
          %s295 = scalar_lea.hbm %s1, %s294
          %s296 = sshll.u32 %s295, 4
          %s297 = int_to_ptr.hbm [resolvable:$true] %s296
          %s298 = sshll.u32 %s290, 4
          %s299 = int_to_ptr.vmem [resolvable:$true] %s298
          %304 = dma.hbm_to_vmem [thread:$0]  %s297, 13824, %s299, %s287, 128, 128, 8
        $region36: #{three_cnn_forward.2} parent=27 // pred_fallthru
          _
        // Predicated region
        $region37: #{three_cnn_forward.2} parent=27 // pred_check
          %p305 = pneg %p93
        $region38: #{three_cnn_forward.2} parent=27 // pred_check_branch
          %307 = sbr.rel (%p305) target = $region40
        $region39: #{three_cnn_forward.2} parent=27 // pred_region
          %s308 = sand.u32 %s21, 1
          %s309 = scalar_lea.sflag [#allocation6], %s308
          %s310 = sand.u32 %s83, 1
          %s311 = smul.addr %s310, 32
          %s312 = scalar_lea.vmem [#allocation5], %s311
          %314 = vsyncadd %s309, 0
          %s315 = smul.addr %s21, 4
          %s316 = smul.addr %s315, 8
          %s317 = scalar_lea.hbm %s2, %s316
          %s318 = sshll.u32 %s317, 4
          %s319 = int_to_ptr.hbm [resolvable:$true] %s318
          %s320 = sshll.u32 %s312, 4
          %s321 = int_to_ptr.vmem [resolvable:$true] %s320
          %326 = dma.hbm_to_vmem [thread:$0]  %s319, 512, %s321, %s309, 128, 128, 8
        $region40: #{three_cnn_forward.2} parent=27 // pred_fallthru
          _
        // Predicated region
        $region41: #{three_cnn_forward.2} parent=27 // pred_check
          %p327 = pneg %p119
        $region42: #{three_cnn_forward.2} parent=27 // pred_check_branch
          %329 = sbr.rel (%p327) target = $region44
        $region43: #{three_cnn_forward.2} parent=27 // pred_region
          %s330 = sand.u32 %s21, 1
          %s331 = scalar_lea.sflag [#allocation6], %s330
          %s332 = sand.u32 %s109, 1
          %s333 = smul.addr %s332, 32
          %s334 = scalar_lea.vmem [#allocation7], %s333
          %336 = vsyncadd %s331, 0
          %s337 = smul.addr %s21, 4
          %s338 = smul.addr %s337, 8
          %s339 = scalar_lea.hbm %s3, %s338
          %s340 = sshll.u32 %s339, 4
          %s341 = int_to_ptr.hbm [resolvable:$true] %s340
          %s342 = sshll.u32 %s334, 4
          %s343 = int_to_ptr.vmem [resolvable:$true] %s342
          %348 = dma.hbm_to_vmem [thread:$0]  %s341, 512, %s343, %s331, 128, 128, 8
        $region44: #{three_cnn_forward.2} parent=27 // pred_fallthru
          _
      $region28: #{three_cnn_forward.2} parent=5 // pred_fallthru
        _
      %p349 = scmp.le.s32.totalorder 1, %s21
      %p350 = scmp.lt.s32.totalorder %s21, 4
      %p351 = pnand %p349, %p350
      %p352 = pneg %p351
      // Predicated region
      $region45: #{three_cnn_forward.2} parent=5 // pred_check
        _
      $region46: #{three_cnn_forward.2} parent=5 // pred_check_branch
        %354 = sbr.rel (%p351) target = $region48
      $region47: #{three_cnn_forward.2} parent=5 // pred_region
        %s355 = ssub.s32 %s21, 1
        %s356 = sand.u32 %s60, 1
        %s357 = scalar_lea.sflag [#allocation4], %s356
        %s358 = sand.u32 %s60, 1
        %s359 = smul.addr %s358, 864
        %s360 = scalar_lea.vmem [#allocation3], %s359
        // Predicated region
        $region49: #{three_cnn_forward.2} parent=47 // pred_check
          %p361 = pneg %p73
        $region50: #{three_cnn_forward.2} parent=47 // pred_check_branch
          %363 = sbr.rel (%p361) target = $region52
        $region51: #{three_cnn_forward.2} parent=47 // pred_region
          %365 = dma.done %s357, 13824
        $region52: #{three_cnn_forward.2} parent=47 // pred_fallthru
          _
        %s366 = sand.u32 %s26, 1
        %s367 = scalar_lea.sflag [#allocation6], %s366
        %s368 = sand.u32 %s86, 1
        %s369 = smul.addr %s368, 32
        %s370 = scalar_lea.vmem [#allocation5], %s369
        // Predicated region
        $region53: #{three_cnn_forward.2} parent=47 // pred_check
          %p371 = pneg %p99
        $region54: #{three_cnn_forward.2} parent=47 // pred_check_branch
          %373 = sbr.rel (%p371) target = $region56
        $region55: #{three_cnn_forward.2} parent=47 // pred_region
          %375 = dma.done %s367, 512
        $region56: #{three_cnn_forward.2} parent=47 // pred_fallthru
          _
        %s376 = sand.u32 %s26, 1
        %s377 = scalar_lea.sflag [#allocation6], %s376
        %s378 = sand.u32 %s112, 1
        %s379 = smul.addr %s378, 32
        %s380 = scalar_lea.vmem [#allocation7], %s379
        // Predicated region
        $region57: #{three_cnn_forward.2} parent=47 // pred_check
          %p381 = pneg %p125
        $region58: #{three_cnn_forward.2} parent=47 // pred_check_branch
          %383 = sbr.rel (%p381) target = $region60
        $region59: #{three_cnn_forward.2} parent=47 // pred_region
          %385 = dma.done %s377, 512
        $region60: #{three_cnn_forward.2} parent=47 // pred_fallthru
          _
        // Predicated region
        $region61: #{three_cnn_forward.2} parent=47 // pred_check
          %p386 = pneg %p146
        $region62: #{three_cnn_forward.2} parent=47 // pred_check_branch
          %388 = sbr.rel (%p386) target = $region64
        $region63: #{three_cnn_forward.2} parent=47 // pred_region
          %390 = dma.done [#allocation9], 10368
        $region64: #{three_cnn_forward.2} parent=47 // pred_fallthru
          _
        // Predicated region
        $region65: #{three_cnn_forward.2} parent=47 // pred_check
          %p391 = pneg %p167
        $region66: #{three_cnn_forward.2} parent=47 // pred_check_branch
          %393 = sbr.rel (%p391) target = $region68
        $region67: #{three_cnn_forward.2} parent=47 // pred_region
          %395 = dma.done [#allocation9], 4608
        $region68: #{three_cnn_forward.2} parent=47 // pred_fallthru
          _
        // Predicated region
        $region69: #{three_cnn_forward.2} parent=47 // pred_check
          %p396 = pneg %p188
        $region70: #{three_cnn_forward.2} parent=47 // pred_check_branch
          %398 = sbr.rel (%p396) target = $region72
        $region71: #{three_cnn_forward.2} parent=47 // pred_region
          %400 = dma.done [#allocation12], 512
        $region72: #{three_cnn_forward.2} parent=47 // pred_fallthru
          _
        %p401 = scmp.lt.s32.totalorder %s26, 2
        %s402 = scalar_select %p401, %s26, 2
        %s403 = smul.addr %s402, 4
        %s404 = smul.addr %s403, 8
        %s405 = scalar_lea.vmem %s0, %s404
        %p406 = pneg %p47
        %p407 = pneg %p44
        %s408 = sand.u32 %s60, 1
        %s409 = scalar_lea.sflag [#allocation4], %s408
        %s410 = sand.u32 %s60, 1
        %s411 = smul.addr %s410, 864
        %s412 = scalar_lea.vmem [#allocation3], %s411
        %p413 = pneg %p73
        %p414 = pneg %p70
        %s415 = sand.u32 %s26, 1
        %s416 = scalar_lea.sflag [#allocation6], %s415
        %s417 = sand.u32 %s86, 1
        %s418 = smul.addr %s417, 32
        %s419 = scalar_lea.vmem [#allocation5], %s418
        %p420 = pneg %p99
        %p421 = pneg %p96
        %s422 = sand.u32 %s26, 1
        %s423 = scalar_lea.sflag [#allocation6], %s422
        %s424 = sand.u32 %s112, 1
        %s425 = smul.addr %s424, 32
        %s426 = scalar_lea.vmem [#allocation7], %s425
        %p427 = pneg %p125
        %p428 = pneg %p122
        %p429 = pneg %p146
        %p430 = pneg %p143
        %p431 = pneg %p167
        %p432 = pneg %p164
        %p433 = pneg %p188
        %p434 = pneg %p185
        %p435 = pneg %p214
        %p436 = pneg %p211
        %p437 = scmp.lt.s32.totalorder %s26, 2
        %s438 = scalar_select %p437, %s26, 2
        %s439 = smul.addr %s438, 8
        %s440 = scalar_lea.vmem %s7, %s439
        %p441 = scmp.lt.s32.totalorder %s26, 2
        %s442 = scalar_select %p441, %s26, 2
        %s443 = smul.addr %s442, 4
        %s444 = smul.addr %s443, 8
        %s445 = scalar_lea.vmem %s0, %s444
        %p446 = scmp.lt.s32.totalorder %s26, 2
        %s447 = scalar_select %p446, %s26, 2
        %s448 = smul.addr %s447, 8
        %s449 = scalar_lea.vmem %s7, %s448
        %v450 = vld [vmem:[#allocation11] sm:$0xff]
        %v451 = vld [vmem:[#allocation11 + $0x8] sm:$0xff]
        %v452 = vld [vmem:[#allocation11 + $0x10] sm:$0xff]
        %v453 = vld [vmem:[#allocation11 + $0x18] sm:$0xff]
        %v454 = vld [vmem:[%s380] sm:$0xff]
        %v455 = vld [vmem:[%s380 + $0x8] sm:$0xff]
        %v456 = vld [vmem:[%s380 + $0x10] sm:$0xff]
        %v457 = vld [vmem:[%s380 + $0x18] sm:$0xff]
        %v458 = vld [vmem:[%s445] sm:$0xff]
        %v459 = vld [vmem:[%s445 + $0x8] sm:$0xff]
        %v460 = vld [vmem:[%s445 + $0x10] sm:$0xff]
        %v461 = vld [vmem:[%s445 + $0x18] sm:$0xff]
        %v462 = vld [vmem:[%s360] sm:$0xff]
        %v463 = vld [vmem:[%s360 + $0x8] sm:$0xff]
        %v464 = vld [vmem:[%s360 + $0x10] sm:$0xff]
        %v465 = vld [vmem:[%s360 + $0x18] sm:$0xff]
        %v466 = vld [vmem:[%s360 + $0x20] sm:$0xff]
        %v467 = vld [vmem:[%s360 + $0x28] sm:$0xff]
        %v468 = vld [vmem:[%s360 + $0x30] sm:$0xff]
        %v469 = vld [vmem:[%s360 + $0x38] sm:$0xff]
        %v470 = vld [vmem:[%s360 + $0x40] sm:$0xff]
        %v471 = vld [vmem:[%s360 + $0x48] sm:$0xff]
        %v472 = vld [vmem:[%s360 + $0x50] sm:$0xff]
        %v473 = vld [vmem:[%s360 + $0x58] sm:$0xff]
        %v474 = vld [vmem:[%s360 + $0x60] sm:$0xff]
        %v475 = vld [vmem:[%s360 + $0x68] sm:$0xff]
        %v476 = vld [vmem:[%s360 + $0x70] sm:$0xff]
        %v477 = vld [vmem:[%s360 + $0x78] sm:$0xff]
        %v478 = vld [vmem:[%s360 + $0x80] sm:$0xff]
        %v479 = vld [vmem:[%s360 + $0x88] sm:$0xff]
        %v480 = vld [vmem:[%s360 + $0x90] sm:$0xff]
        %v481 = vld [vmem:[%s360 + $0x98] sm:$0xff]
        %v482 = vld [vmem:[%s360 + $0xa0] sm:$0xff]
        %v483 = vld [vmem:[%s360 + $0xa8] sm:$0xff]
        %v484 = vld [vmem:[%s360 + $0xb0] sm:$0xff]
        %v485 = vld [vmem:[%s360 + $0xb8] sm:$0xff]
        %v486 = vld [vmem:[%s360 + $0xc0] sm:$0xff]
        %v487 = vld [vmem:[%s360 + $0xc8] sm:$0xff]
        %v488 = vld [vmem:[%s360 + $0xd0] sm:$0xff]
        %v489 = vld [vmem:[%s360 + $0xd8] sm:$0xff]
        %v490 = vld [vmem:[%s360 + $0xe0] sm:$0xff]
        %v491 = vld [vmem:[%s360 + $0xe8] sm:$0xff]
        %v492 = vld [vmem:[%s360 + $0xf0] sm:$0xff]
        %v493 = vld [vmem:[%s360 + $0xf8] sm:$0xff]
        %v494 = vld [vmem:[%s360 + $0x100] sm:$0xff]
        %v495 = vld [vmem:[%s360 + $0x108] sm:$0xff]
        %v496 = vld [vmem:[%s360 + $0x110] sm:$0xff]
        %v497 = vld [vmem:[%s360 + $0x118] sm:$0xff]
        %vm498 = vcmask 261120
        %v500 = vsel %vm498, %v462, 0
        %v503 = vsel %vm498, %v463, 0
        %v506 = vsel %vm498, %v464, 0
        %v509 = vsel %vm498, %v465, 0
        %v512 = vsel %vm498, %v466, 0
        %v515 = vsel %vm498, %v467, 0
        %v518 = vsel %vm498, %v468, 0
        %v521 = vsel %vm498, %v469, 0
        %v524 = vsel %vm498, %v470, 0
        %v527 = vsel %vm498, %v471, 0
        %v530 = vsel %vm498, %v472, 0
        %v533 = vsel %vm498, %v473, 0
        %v536 = vsel %vm498, %v474, 0
        %v539 = vsel %vm498, %v475, 0
        %v542 = vsel %vm498, %v476, 0
        %v545 = vsel %vm498, %v477, 0
        %v548 = vsel %vm498, %v478, 0
        %v551 = vsel %vm498, %v479, 0
        %v554 = vsel %vm498, %v480, 0
        %v557 = vsel %vm498, %v481, 0
        %v560 = vsel %vm498, %v482, 0
        %v563 = vsel %vm498, %v483, 0
        %v566 = vsel %vm498, %v484, 0
        %v569 = vsel %vm498, %v485, 0
        %v572 = vsel %vm498, %v486, 0
        %v575 = vsel %vm498, %v487, 0
        %v578 = vsel %vm498, %v488, 0
        %v581 = vsel %vm498, %v489, 0
        %v584 = vsel %vm498, %v490, 0
        %v587 = vsel %vm498, %v491, 0
        %v590 = vsel %vm498, %v492, 0
        %v593 = vsel %vm498, %v493, 0
        %v596 = vsel %vm498, %v494, 0
        %v599 = vsel %vm498, %v495, 0
        %v602 = vsel %vm498, %v496, 0
        %v605 = vsel %vm498, %v497, 0
        %607 = vmatpush.msra.mxu0 0.0
        %608 = vmatpush.msra.mxu0 0.0
        %609 = vmatpush.msra.mxu0 0.0
        %610 = vmatpush.msra.mxu0 0.0
        %611 = vmatpush.msra.mxu0 0.0
        %612 = vmatpush.msra.mxu0 0.0
        %613 = vmatpush.msra.mxu0 0.0
        %614 = vmatpush.msra.mxu0 0.0
        %615 = vmatpush.msra.mxu0 0.0
        %616 = vmatpush.msra.mxu0 0.0
        %617 = vmatpush.msra.mxu0 0.0
        %618 = vmatpush.msra.mxu0 0.0
        %619 = vmatpush.msra.mxu0 %v461
        %620 = vmatpush.msra.mxu0 %v460
        %621 = vmatpush.msra.mxu0 %v459
        %622 = vmatpush.msra.mxu0 %v458
        %623 = vmatmul.f32.gmra.mxu0 %v500
        %v624 = vpop.f32.mrf.mxu0
        %v625 = vadd.f32 0.0, %v624
        %626 = vmatmul.f32.gmra.mxu0 %v503
        %v627 = vpop.f32.mrf.mxu0
        %v628 = vadd.f32 0.0, %v627
        %629 = vmatmul.f32.gmra.mxu0 %v506
        %v630 = vpop.f32.mrf.mxu0
        %v631 = vadd.f32 0.0, %v630
        %632 = vmatmul.f32.gmra.mxu0 %v509
        %v633 = vpop.f32.mrf.mxu0
        %v634 = vadd.f32 0.0, %v633
        %635 = vmatmul.f32.gmra.mxu0 %v512
        %v636 = vpop.f32.mrf.mxu0
        %v637 = vadd.f32 0.0, %v636
        %638 = vmatmul.f32.gmra.mxu0 %v515
        %v639 = vpop.f32.mrf.mxu0
        %v640 = vadd.f32 0.0, %v639
        %641 = vmatmul.f32.gmra.mxu0 %v518
        %v642 = vpop.f32.mrf.mxu0
        %v643 = vadd.f32 0.0, %v642
        %644 = vmatmul.f32.gmra.mxu0 %v521
        %v645 = vpop.f32.mrf.mxu0
        %v646 = vadd.f32 0.0, %v645
        %647 = vmatmul.f32.gmra.mxu0 %v524
        %v648 = vpop.f32.mrf.mxu0
        %v649 = vadd.f32 0.0, %v648
        %650 = vmatmul.f32.gmra.mxu0 %v527
        %v651 = vpop.f32.mrf.mxu0
        %v652 = vadd.f32 0.0, %v651
        %653 = vmatmul.f32.gmra.mxu0 %v530
        %v654 = vpop.f32.mrf.mxu0
        %v655 = vadd.f32 0.0, %v654
        %656 = vmatmul.f32.gmra.mxu0 %v533
        %v657 = vpop.f32.mrf.mxu0
        %v658 = vadd.f32 0.0, %v657
        %659 = vmatmul.f32.gmra.mxu0 %v536
        %v660 = vpop.f32.mrf.mxu0
        %v661 = vadd.f32 0.0, %v660
        %662 = vmatmul.f32.gmra.mxu0 %v539
        %v663 = vpop.f32.mrf.mxu0
        %v664 = vadd.f32 0.0, %v663
        %665 = vmatmul.f32.gmra.mxu0 %v542
        %v666 = vpop.f32.mrf.mxu0
        %v667 = vadd.f32 0.0, %v666
        %668 = vmatmul.f32.gmra.mxu0 %v545
        %v669 = vpop.f32.mrf.mxu0
        %v670 = vadd.f32 0.0, %v669
        %671 = vmatmul.f32.gmra.mxu0 %v548
        %v672 = vpop.f32.mrf.mxu0
        %v673 = vadd.f32 0.0, %v672
        %674 = vmatmul.f32.gmra.mxu0 %v551
        %v675 = vpop.f32.mrf.mxu0
        %v676 = vadd.f32 0.0, %v675
        %677 = vmatmul.f32.gmra.mxu0 %v554
        %v678 = vpop.f32.mrf.mxu0
        %v679 = vadd.f32 0.0, %v678
        %680 = vmatmul.f32.gmra.mxu0 %v557
        %v681 = vpop.f32.mrf.mxu0
        %v682 = vadd.f32 0.0, %v681
        %683 = vmatmul.f32.gmra.mxu0 %v560
        %v684 = vpop.f32.mrf.mxu0
        %v685 = vadd.f32 0.0, %v684
        %686 = vmatmul.f32.gmra.mxu0 %v563
        %v687 = vpop.f32.mrf.mxu0
        %v688 = vadd.f32 0.0, %v687
        %689 = vmatmul.f32.gmra.mxu0 %v566
        %v690 = vpop.f32.mrf.mxu0
        %v691 = vadd.f32 0.0, %v690
        %692 = vmatmul.f32.gmra.mxu0 %v569
        %v693 = vpop.f32.mrf.mxu0
        %v694 = vadd.f32 0.0, %v693
        %695 = vmatmul.f32.gmra.mxu0 %v572
        %v696 = vpop.f32.mrf.mxu0
        %v697 = vadd.f32 0.0, %v696
        %698 = vmatmul.f32.gmra.mxu0 %v575
        %v699 = vpop.f32.mrf.mxu0
        %v700 = vadd.f32 0.0, %v699
        %701 = vmatmul.f32.gmra.mxu0 %v578
        %v702 = vpop.f32.mrf.mxu0
        %v703 = vadd.f32 0.0, %v702
        %704 = vmatmul.f32.gmra.mxu0 %v581
        %v705 = vpop.f32.mrf.mxu0
        %v706 = vadd.f32 0.0, %v705
        %707 = vmatmul.f32.gmra.mxu0 %v584
        %v708 = vpop.f32.mrf.mxu0
        %v709 = vadd.f32 0.0, %v708
        %710 = vmatmul.f32.gmra.mxu0 %v587
        %v711 = vpop.f32.mrf.mxu0
        %v712 = vadd.f32 0.0, %v711
        %713 = vmatmul.f32.gmra.mxu0 %v590
        %v714 = vpop.f32.mrf.mxu0
        %v715 = vadd.f32 0.0, %v714
        %716 = vmatmul.f32.gmra.mxu0 %v593
        %v717 = vpop.f32.mrf.mxu0
        %v718 = vadd.f32 0.0, %v717
        %719 = vmatmul.f32.gmra.mxu0 %v596
        %v720 = vpop.f32.mrf.mxu0
        %v721 = vadd.f32 0.0, %v720
        %722 = vmatmul.f32.gmra.mxu0 %v599
        %v723 = vpop.f32.mrf.mxu0
        %v724 = vadd.f32 0.0, %v723
        %725 = vmatmul.f32.gmra.mxu0 %v602
        %v726 = vpop.f32.mrf.mxu0
        %v727 = vadd.f32 0.0, %v726
        %728 = vmatmul.f32.gmra.mxu0 %v605
        %v729 = vpop.f32.mrf.mxu0
        %v730 = vadd.f32 0.0, %v729
        %731 = vdwg.mxu0
        %vm732 = vcmask 588800
        %733 = vst.msk [vmem:[#allocation2] sm:$0xff] %vm732, %v625
        %734 = vst.msk [vmem:[#allocation2 + $0x8] sm:$0xff] %vm732, %v628
        %735 = vst.msk [vmem:[#allocation2 + $0x10] sm:$0xff] %vm732, %v631
        %736 = vst.msk [vmem:[#allocation2 + $0x18] sm:$0xff] %vm732, %v634
        %737 = vst.msk [vmem:[#allocation2 + $0x20] sm:$0xff] %vm732, %v637
        %738 = vst.msk [vmem:[#allocation2 + $0x28] sm:$0xff] %vm732, %v640
        %739 = vst.msk [vmem:[#allocation2 + $0x30] sm:$0xff] %vm732, %v643
        %740 = vst.msk [vmem:[#allocation2 + $0x38] sm:$0xff] %vm732, %v646
        %741 = vst.msk [vmem:[#allocation2 + $0x40] sm:$0xff] %vm732, %v649
        %742 = vst.msk [vmem:[#allocation2 + $0x48] sm:$0xff] %vm732, %v652
        %743 = vst.msk [vmem:[#allocation2 + $0x50] sm:$0xff] %vm732, %v655
        %744 = vst.msk [vmem:[#allocation2 + $0x58] sm:$0xff] %vm732, %v658
        %745 = vst.msk [vmem:[#allocation2 + $0x60] sm:$0xff] %vm732, %v661
        %746 = vst.msk [vmem:[#allocation2 + $0x68] sm:$0xff] %vm732, %v664
        %747 = vst.msk [vmem:[#allocation2 + $0x70] sm:$0xff] %vm732, %v667
        %748 = vst.msk [vmem:[#allocation2 + $0x78] sm:$0xff] %vm732, %v670
        %749 = vst.msk [vmem:[#allocation2 + $0x80] sm:$0xff] %vm732, %v673
        %750 = vst.msk [vmem:[#allocation2 + $0x88] sm:$0xff] %vm732, %v676
        %751 = vst.msk [vmem:[#allocation2 + $0x90] sm:$0xff] %vm732, %v679
        %752 = vst.msk [vmem:[#allocation2 + $0x98] sm:$0xff] %vm732, %v682
        %753 = vst.msk [vmem:[#allocation2 + $0xa0] sm:$0xff] %vm732, %v685
        %754 = vst.msk [vmem:[#allocation2 + $0xa8] sm:$0xff] %vm732, %v688
        %755 = vst.msk [vmem:[#allocation2 + $0xb0] sm:$0xff] %vm732, %v691
        %756 = vst.msk [vmem:[#allocation2 + $0xb8] sm:$0xff] %vm732, %v694
        %757 = vst.msk [vmem:[#allocation2 + $0xc0] sm:$0xff] %vm732, %v697
        %758 = vst.msk [vmem:[#allocation2 + $0xc8] sm:$0xff] %vm732, %v700
        %759 = vst.msk [vmem:[#allocation2 + $0xd0] sm:$0xff] %vm732, %v703
        %760 = vst.msk [vmem:[#allocation2 + $0xd8] sm:$0xff] %vm732, %v706
        %761 = vst.msk [vmem:[#allocation2 + $0xe0] sm:$0xff] %vm732, %v709
        %762 = vst.msk [vmem:[#allocation2 + $0xe8] sm:$0xff] %vm732, %v712
        %763 = vst.msk [vmem:[#allocation2 + $0xf0] sm:$0xff] %vm732, %v715
        %764 = vst.msk [vmem:[#allocation2 + $0xf8] sm:$0xff] %vm732, %v718
        %765 = vst.msk [vmem:[#allocation2 + $0x100] sm:$0xff] %vm732, %v721
        %766 = vst.msk [vmem:[#allocation2 + $0x108] sm:$0xff] %vm732, %v724
        %767 = vst.msk [vmem:[#allocation2 + $0x110] sm:$0xff] %vm732, %v727
        %768 = vst.msk [vmem:[#allocation2 + $0x118] sm:$0xff] %vm732, %v730
        %v769 = vld [vmem:[#allocation2] sm:$0xff]
        %v770 = vld [vmem:[#allocation2 + $0x8] sm:$0xff]
        %v771 = vld [vmem:[#allocation2 + $0x10] sm:$0xff]
        %v772 = vld [vmem:[#allocation2 + $0x18] sm:$0xff]
        %v773 = vld [vmem:[#allocation8] sm:$0xff]
        %v774 = vld [vmem:[#allocation8 + $0x8] sm:$0xff]
        %v775 = vld [vmem:[#allocation8 + $0x10] sm:$0xff]
        %v776 = vld [vmem:[#allocation8 + $0x18] sm:$0xff]
        %v777 = vld [vmem:[#allocation8 + $0x20] sm:$0xff]
        %v778 = vld [vmem:[#allocation8 + $0x28] sm:$0xff]
        %v779 = vld [vmem:[#allocation8 + $0x30] sm:$0xff]
        %v780 = vld [vmem:[#allocation8 + $0x38] sm:$0xff]
        %v781 = vld [vmem:[#allocation8 + $0x40] sm:$0xff]
        %v782 = vld [vmem:[#allocation2 + $0x20] sm:$0xff]
        %v783 = vld [vmem:[#allocation2 + $0x28] sm:$0xff]
        %v784 = vld [vmem:[#allocation2 + $0x30] sm:$0xff]
        %v785 = vld [vmem:[#allocation2 + $0x38] sm:$0xff]
        %v786 = vld [vmem:[#allocation8 + $0x48] sm:$0xff]
        %v787 = vld [vmem:[#allocation8 + $0x50] sm:$0xff]
        %v788 = vld [vmem:[#allocation8 + $0x58] sm:$0xff]
        %v789 = vld [vmem:[#allocation8 + $0x60] sm:$0xff]
        %v790 = vld [vmem:[#allocation8 + $0x68] sm:$0xff]
        %v791 = vld [vmem:[#allocation8 + $0x70] sm:$0xff]
        %v792 = vld [vmem:[#allocation8 + $0x78] sm:$0xff]
        %v793 = vld [vmem:[#allocation8 + $0x80] sm:$0xff]
        %v794 = vld [vmem:[#allocation8 + $0x88] sm:$0xff]
        %v796 = vsel %vm732, %v782, 0
        %v799 = vsel %vm732, %v783, 0
        %v802 = vsel %vm732, %v784, 0
        %v805 = vsel %vm732, %v785, 0
        %807 = vmatpush.msra.mxu0 0.0
        %808 = vmatpush.msra.mxu0 0.0
        %809 = vmatpush.msra.mxu0 0.0
        %810 = vmatpush.msra.mxu0 0.0
        %811 = vmatpush.msra.mxu0 0.0
        %812 = vmatpush.msra.mxu0 0.0
        %813 = vmatpush.msra.mxu0 0.0
        %814 = vmatpush.msra.mxu0 %v794
        %815 = vmatpush.msra.mxu0 %v793
        %816 = vmatpush.msra.mxu0 %v792
        %817 = vmatpush.msra.mxu0 %v791
        %818 = vmatpush.msra.mxu0 %v790
        %819 = vmatpush.msra.mxu0 %v789
        %820 = vmatpush.msra.mxu0 %v788
        %821 = vmatpush.msra.mxu0 %v787
        %822 = vmatpush.msra.mxu0 %v786
        %823 = vmatmul.f32.gmra.mxu0 %v796
        %v824 = vpop.f32.mrf.mxu0
        %v825 = vadd.f32 0.0, %v824
        %826 = vmatmul.f32.gmra.mxu0 %v799
        %v827 = vpop.f32.mrf.mxu0
        %v828 = vadd.f32 0.0, %v827
        %829 = vmatmul.f32.gmra.mxu0 %v802
        %v830 = vpop.f32.mrf.mxu0
        %v831 = vadd.f32 0.0, %v830
        %832 = vmatmul.f32.gmra.mxu0 %v805
        %v833 = vpop.f32.mrf.mxu0
        %v834 = vadd.f32 0.0, %v833
        %835 = vdwg.mxu0
        %v837 = vsel %vm732, %v769, 0
        %v840 = vsel %vm732, %v770, 0
        %v843 = vsel %vm732, %v771, 0
        %v846 = vsel %vm732, %v772, 0
        %848 = vmatpush.msra.mxu0 0.0
        %849 = vmatpush.msra.mxu0 0.0
        %850 = vmatpush.msra.mxu0 0.0
        %851 = vmatpush.msra.mxu0 0.0
        %852 = vmatpush.msra.mxu0 0.0
        %853 = vmatpush.msra.mxu0 0.0
        %854 = vmatpush.msra.mxu0 0.0
        %855 = vmatpush.msra.mxu0 %v781
        %856 = vmatpush.msra.mxu0 %v780
        %857 = vmatpush.msra.mxu0 %v779
        %858 = vmatpush.msra.mxu0 %v778
        %859 = vmatpush.msra.mxu0 %v777
        %860 = vmatpush.msra.mxu0 %v776
        %861 = vmatpush.msra.mxu0 %v775
        %862 = vmatpush.msra.mxu0 %v774
        %863 = vmatpush.msra.mxu0 %v773
        %864 = vmatmul.f32.gmra.mxu0 %v837
        %v865 = vpop.f32.mrf.mxu0
        %v866 = vadd.f32 %v825, %v865
        %867 = vmatmul.f32.gmra.mxu0 %v840
        %v868 = vpop.f32.mrf.mxu0
        %v869 = vadd.f32 %v828, %v868
        %870 = vmatmul.f32.gmra.mxu0 %v843
        %v871 = vpop.f32.mrf.mxu0
        %v872 = vadd.f32 %v831, %v871
        %873 = vmatmul.f32.gmra.mxu0 %v846
        %v874 = vpop.f32.mrf.mxu0
        %v875 = vadd.f32 %v834, %v874
        %876 = vdwg.mxu0
        %v877 = vld [vmem:[#allocation2 + $0x40] sm:$0xff]
        %v878 = vld [vmem:[#allocation2 + $0x48] sm:$0xff]
        %v879 = vld [vmem:[#allocation2 + $0x50] sm:$0xff]
        %v880 = vld [vmem:[#allocation2 + $0x58] sm:$0xff]
        %v881 = vld [vmem:[#allocation8 + $0x90] sm:$0xff]
        %v882 = vld [vmem:[#allocation8 + $0x98] sm:$0xff]
        %v883 = vld [vmem:[#allocation8 + $0xa0] sm:$0xff]
        %v884 = vld [vmem:[#allocation8 + $0xa8] sm:$0xff]
        %v885 = vld [vmem:[#allocation8 + $0xb0] sm:$0xff]
        %v886 = vld [vmem:[#allocation8 + $0xb8] sm:$0xff]
        %v887 = vld [vmem:[#allocation8 + $0xc0] sm:$0xff]
        %v888 = vld [vmem:[#allocation8 + $0xc8] sm:$0xff]
        %v889 = vld [vmem:[#allocation8 + $0xd0] sm:$0xff]
        %v891 = vsel %vm732, %v877, 0
        %v894 = vsel %vm732, %v878, 0
        %v897 = vsel %vm732, %v879, 0
        %v900 = vsel %vm732, %v880, 0
        %902 = vmatpush.msra.mxu0 0.0
        %903 = vmatpush.msra.mxu0 0.0
        %904 = vmatpush.msra.mxu0 0.0
        %905 = vmatpush.msra.mxu0 0.0
        %906 = vmatpush.msra.mxu0 0.0
        %907 = vmatpush.msra.mxu0 0.0
        %908 = vmatpush.msra.mxu0 0.0
        %909 = vmatpush.msra.mxu0 %v889
        %910 = vmatpush.msra.mxu0 %v888
        %911 = vmatpush.msra.mxu0 %v887
        %912 = vmatpush.msra.mxu0 %v886
        %913 = vmatpush.msra.mxu0 %v885
        %914 = vmatpush.msra.mxu0 %v884
        %915 = vmatpush.msra.mxu0 %v883
        %916 = vmatpush.msra.mxu0 %v882
        %917 = vmatpush.msra.mxu0 %v881
        %918 = vmatmul.f32.gmra.mxu0 %v891
        %v919 = vpop.f32.mrf.mxu0
        %v920 = vadd.f32 0.0, %v919
        %921 = vmatmul.f32.gmra.mxu0 %v894
        %v922 = vpop.f32.mrf.mxu0
        %v923 = vadd.f32 0.0, %v922
        %924 = vmatmul.f32.gmra.mxu0 %v897
        %v925 = vpop.f32.mrf.mxu0
        %v926 = vadd.f32 0.0, %v925
        %927 = vmatmul.f32.gmra.mxu0 %v900
        %v928 = vpop.f32.mrf.mxu0
        %v929 = vadd.f32 0.0, %v928
        %930 = vdwg.mxu0
        %v931 = vadd.f32 %v866, %v920
        %v932 = vadd.f32 %v869, %v923
        %v933 = vadd.f32 %v872, %v926
        %v934 = vadd.f32 %v875, %v929
        %v935 = vld [vmem:[#allocation2 + $0x60] sm:$0xff]
        %v936 = vld [vmem:[#allocation2 + $0x68] sm:$0xff]
        %v937 = vld [vmem:[#allocation2 + $0x70] sm:$0xff]
        %v938 = vld [vmem:[#allocation2 + $0x78] sm:$0xff]
        %v939 = vld [vmem:[#allocation8 + $0xd8] sm:$0xff]
        %v940 = vld [vmem:[#allocation8 + $0xe0] sm:$0xff]
        %v941 = vld [vmem:[#allocation8 + $0xe8] sm:$0xff]
        %v942 = vld [vmem:[#allocation8 + $0xf0] sm:$0xff]
        %v943 = vld [vmem:[#allocation8 + $0xf8] sm:$0xff]
        %v944 = vld [vmem:[#allocation8 + $0x100] sm:$0xff]
        %v945 = vld [vmem:[#allocation8 + $0x108] sm:$0xff]
        %v946 = vld [vmem:[#allocation8 + $0x110] sm:$0xff]
        %v947 = vld [vmem:[#allocation8 + $0x118] sm:$0xff]
        %v949 = vsel %vm732, %v935, 0
        %v952 = vsel %vm732, %v936, 0
        %v955 = vsel %vm732, %v937, 0
        %v958 = vsel %vm732, %v938, 0
        %960 = vmatpush.msra.mxu0 0.0
        %961 = vmatpush.msra.mxu0 0.0
        %962 = vmatpush.msra.mxu0 0.0
        %963 = vmatpush.msra.mxu0 0.0
        %964 = vmatpush.msra.mxu0 0.0
        %965 = vmatpush.msra.mxu0 0.0
        %966 = vmatpush.msra.mxu0 0.0
        %967 = vmatpush.msra.mxu0 %v947
        %968 = vmatpush.msra.mxu0 %v946
        %969 = vmatpush.msra.mxu0 %v945
        %970 = vmatpush.msra.mxu0 %v944
        %971 = vmatpush.msra.mxu0 %v943
        %972 = vmatpush.msra.mxu0 %v942
        %973 = vmatpush.msra.mxu0 %v941
        %974 = vmatpush.msra.mxu0 %v940
        %975 = vmatpush.msra.mxu0 %v939
        %976 = vmatmul.f32.gmra.mxu0 %v949
        %v977 = vpop.f32.mrf.mxu0
        %v978 = vadd.f32 0.0, %v977
        %979 = vmatmul.f32.gmra.mxu0 %v952
        %v980 = vpop.f32.mrf.mxu0
        %v981 = vadd.f32 0.0, %v980
        %982 = vmatmul.f32.gmra.mxu0 %v955
        %v983 = vpop.f32.mrf.mxu0
        %v984 = vadd.f32 0.0, %v983
        %985 = vmatmul.f32.gmra.mxu0 %v958
        %v986 = vpop.f32.mrf.mxu0
        %v987 = vadd.f32 0.0, %v986
        %988 = vdwg.mxu0
        %v989 = vadd.f32 %v931, %v978
        %v990 = vadd.f32 %v932, %v981
        %v991 = vadd.f32 %v933, %v984
        %v992 = vadd.f32 %v934, %v987
        %v993 = vld [vmem:[#allocation2 + $0x80] sm:$0xff]
        %v994 = vld [vmem:[#allocation2 + $0x88] sm:$0xff]
        %v995 = vld [vmem:[#allocation2 + $0x90] sm:$0xff]
        %v996 = vld [vmem:[#allocation2 + $0x98] sm:$0xff]
        %v997 = vld [vmem:[#allocation8 + $0x120] sm:$0xff]
        %v998 = vld [vmem:[#allocation8 + $0x128] sm:$0xff]
        %v999 = vld [vmem:[#allocation8 + $0x130] sm:$0xff]
        %v1000 = vld [vmem:[#allocation8 + $0x138] sm:$0xff]
        %v1001 = vld [vmem:[#allocation8 + $0x140] sm:$0xff]
        %v1002 = vld [vmem:[#allocation8 + $0x148] sm:$0xff]
        %v1003 = vld [vmem:[#allocation8 + $0x150] sm:$0xff]
        %v1004 = vld [vmem:[#allocation8 + $0x158] sm:$0xff]
        %v1005 = vld [vmem:[#allocation8 + $0x160] sm:$0xff]
        %v1007 = vsel %vm732, %v993, 0
        %v1010 = vsel %vm732, %v994, 0
        %v1013 = vsel %vm732, %v995, 0
        %v1016 = vsel %vm732, %v996, 0
        %1018 = vmatpush.msra.mxu0 0.0
        %1019 = vmatpush.msra.mxu0 0.0
        %1020 = vmatpush.msra.mxu0 0.0
        %1021 = vmatpush.msra.mxu0 0.0
        %1022 = vmatpush.msra.mxu0 0.0
        %1023 = vmatpush.msra.mxu0 0.0
        %1024 = vmatpush.msra.mxu0 0.0
        %1025 = vmatpush.msra.mxu0 %v1005
        %1026 = vmatpush.msra.mxu0 %v1004
        %1027 = vmatpush.msra.mxu0 %v1003
        %1028 = vmatpush.msra.mxu0 %v1002
        %1029 = vmatpush.msra.mxu0 %v1001
        %1030 = vmatpush.msra.mxu0 %v1000
        %1031 = vmatpush.msra.mxu0 %v999
        %1032 = vmatpush.msra.mxu0 %v998
        %1033 = vmatpush.msra.mxu0 %v997
        %1034 = vmatmul.f32.gmra.mxu0 %v1007
        %v1035 = vpop.f32.mrf.mxu0
        %v1036 = vadd.f32 0.0, %v1035
        %1037 = vmatmul.f32.gmra.mxu0 %v1010
        %v1038 = vpop.f32.mrf.mxu0
        %v1039 = vadd.f32 0.0, %v1038
        %1040 = vmatmul.f32.gmra.mxu0 %v1013
        %v1041 = vpop.f32.mrf.mxu0
        %v1042 = vadd.f32 0.0, %v1041
        %1043 = vmatmul.f32.gmra.mxu0 %v1016
        %v1044 = vpop.f32.mrf.mxu0
        %v1045 = vadd.f32 0.0, %v1044
        %1046 = vdwg.mxu0
        %v1047 = vadd.f32 %v989, %v1036
        %v1048 = vadd.f32 %v990, %v1039
        %v1049 = vadd.f32 %v991, %v1042
        %v1050 = vadd.f32 %v992, %v1045
        %v1051 = vld [vmem:[#allocation2 + $0xa0] sm:$0xff]
        %v1052 = vld [vmem:[#allocation2 + $0xa8] sm:$0xff]
        %v1053 = vld [vmem:[#allocation2 + $0xb0] sm:$0xff]
        %v1054 = vld [vmem:[#allocation2 + $0xb8] sm:$0xff]
        %v1055 = vld [vmem:[#allocation8 + $0x168] sm:$0xff]
        %v1056 = vld [vmem:[#allocation8 + $0x170] sm:$0xff]
        %v1057 = vld [vmem:[#allocation8 + $0x178] sm:$0xff]
        %v1058 = vld [vmem:[#allocation8 + $0x180] sm:$0xff]
        %v1059 = vld [vmem:[#allocation8 + $0x188] sm:$0xff]
        %v1060 = vld [vmem:[#allocation8 + $0x190] sm:$0xff]
        %v1061 = vld [vmem:[#allocation8 + $0x198] sm:$0xff]
        %v1062 = vld [vmem:[#allocation8 + $0x1a0] sm:$0xff]
        %v1063 = vld [vmem:[#allocation8 + $0x1a8] sm:$0xff]
        %v1065 = vsel %vm732, %v1051, 0
        %v1068 = vsel %vm732, %v1052, 0
        %v1071 = vsel %vm732, %v1053, 0
        %v1074 = vsel %vm732, %v1054, 0
        %1076 = vmatpush.msra.mxu0 0.0
        %1077 = vmatpush.msra.mxu0 0.0
        %1078 = vmatpush.msra.mxu0 0.0
        %1079 = vmatpush.msra.mxu0 0.0
        %1080 = vmatpush.msra.mxu0 0.0
        %1081 = vmatpush.msra.mxu0 0.0
        %1082 = vmatpush.msra.mxu0 0.0
        %1083 = vmatpush.msra.mxu0 %v1063
        %1084 = vmatpush.msra.mxu0 %v1062
        %1085 = vmatpush.msra.mxu0 %v1061
        %1086 = vmatpush.msra.mxu0 %v1060
        %1087 = vmatpush.msra.mxu0 %v1059
        %1088 = vmatpush.msra.mxu0 %v1058
        %1089 = vmatpush.msra.mxu0 %v1057
        %1090 = vmatpush.msra.mxu0 %v1056
        %1091 = vmatpush.msra.mxu0 %v1055
        %1092 = vmatmul.f32.gmra.mxu0 %v1065
        %v1093 = vpop.f32.mrf.mxu0
        %v1094 = vadd.f32 0.0, %v1093
        %1095 = vmatmul.f32.gmra.mxu0 %v1068
        %v1096 = vpop.f32.mrf.mxu0
        %v1097 = vadd.f32 0.0, %v1096
        %1098 = vmatmul.f32.gmra.mxu0 %v1071
        %v1099 = vpop.f32.mrf.mxu0
        %v1100 = vadd.f32 0.0, %v1099
        %1101 = vmatmul.f32.gmra.mxu0 %v1074
        %v1102 = vpop.f32.mrf.mxu0
        %v1103 = vadd.f32 0.0, %v1102
        %1104 = vdwg.mxu0
        %v1105 = vadd.f32 %v1047, %v1094
        %v1106 = vadd.f32 %v1048, %v1097
        %v1107 = vadd.f32 %v1049, %v1100
        %v1108 = vadd.f32 %v1050, %v1103
        %v1109 = vld [vmem:[#allocation2 + $0xc0] sm:$0xff]
        %v1110 = vld [vmem:[#allocation2 + $0xc8] sm:$0xff]
        %v1111 = vld [vmem:[#allocation2 + $0xd0] sm:$0xff]
        %v1112 = vld [vmem:[#allocation2 + $0xd8] sm:$0xff]
        %v1113 = vld [vmem:[#allocation8 + $0x1b0] sm:$0xff]
        %v1114 = vld [vmem:[#allocation8 + $0x1b8] sm:$0xff]
        %v1115 = vld [vmem:[#allocation8 + $0x1c0] sm:$0xff]
        %v1116 = vld [vmem:[#allocation8 + $0x1c8] sm:$0xff]
        %v1117 = vld [vmem:[#allocation8 + $0x1d0] sm:$0xff]
        %v1118 = vld [vmem:[#allocation8 + $0x1d8] sm:$0xff]
        %v1119 = vld [vmem:[#allocation8 + $0x1e0] sm:$0xff]
        %v1120 = vld [vmem:[#allocation8 + $0x1e8] sm:$0xff]
        %v1121 = vld [vmem:[#allocation8 + $0x1f0] sm:$0xff]
        %v1123 = vsel %vm732, %v1109, 0
        %v1126 = vsel %vm732, %v1110, 0
        %v1129 = vsel %vm732, %v1111, 0
        %v1132 = vsel %vm732, %v1112, 0
        %1134 = vmatpush.msra.mxu0 0.0
        %1135 = vmatpush.msra.mxu0 0.0
        %1136 = vmatpush.msra.mxu0 0.0
        %1137 = vmatpush.msra.mxu0 0.0
        %1138 = vmatpush.msra.mxu0 0.0
        %1139 = vmatpush.msra.mxu0 0.0
        %1140 = vmatpush.msra.mxu0 0.0
        %1141 = vmatpush.msra.mxu0 %v1121
        %1142 = vmatpush.msra.mxu0 %v1120
        %1143 = vmatpush.msra.mxu0 %v1119
        %1144 = vmatpush.msra.mxu0 %v1118
        %1145 = vmatpush.msra.mxu0 %v1117
        %1146 = vmatpush.msra.mxu0 %v1116
        %1147 = vmatpush.msra.mxu0 %v1115
        %1148 = vmatpush.msra.mxu0 %v1114
        %1149 = vmatpush.msra.mxu0 %v1113
        %1150 = vmatmul.f32.gmra.mxu0 %v1123
        %v1151 = vpop.f32.mrf.mxu0
        %v1152 = vadd.f32 0.0, %v1151
        %1153 = vmatmul.f32.gmra.mxu0 %v1126
        %v1154 = vpop.f32.mrf.mxu0
        %v1155 = vadd.f32 0.0, %v1154
        %1156 = vmatmul.f32.gmra.mxu0 %v1129
        %v1157 = vpop.f32.mrf.mxu0
        %v1158 = vadd.f32 0.0, %v1157
        %1159 = vmatmul.f32.gmra.mxu0 %v1132
        %v1160 = vpop.f32.mrf.mxu0
        %v1161 = vadd.f32 0.0, %v1160
        %1162 = vdwg.mxu0
        %v1163 = vadd.f32 %v1105, %v1152
        %v1164 = vadd.f32 %v1106, %v1155
        %v1165 = vadd.f32 %v1107, %v1158
        %v1166 = vadd.f32 %v1108, %v1161
        %v1167 = vld [vmem:[#allocation2 + $0xe0] sm:$0xff]
        %v1168 = vld [vmem:[#allocation2 + $0xe8] sm:$0xff]
        %v1169 = vld [vmem:[#allocation2 + $0xf0] sm:$0xff]
        %v1170 = vld [vmem:[#allocation2 + $0xf8] sm:$0xff]
        %v1171 = vld [vmem:[#allocation8 + $0x1f8] sm:$0xff]
        %v1172 = vld [vmem:[#allocation8 + $0x200] sm:$0xff]
        %v1173 = vld [vmem:[#allocation8 + $0x208] sm:$0xff]
        %v1174 = vld [vmem:[#allocation8 + $0x210] sm:$0xff]
        %v1175 = vld [vmem:[#allocation8 + $0x218] sm:$0xff]
        %v1176 = vld [vmem:[#allocation8 + $0x220] sm:$0xff]
        %v1177 = vld [vmem:[#allocation8 + $0x228] sm:$0xff]
        %v1178 = vld [vmem:[#allocation8 + $0x230] sm:$0xff]
        %v1179 = vld [vmem:[#allocation8 + $0x238] sm:$0xff]
        %v1181 = vsel %vm732, %v1167, 0
        %v1184 = vsel %vm732, %v1168, 0
        %v1187 = vsel %vm732, %v1169, 0
        %v1190 = vsel %vm732, %v1170, 0
        %1192 = vmatpush.msra.mxu0 0.0
        %1193 = vmatpush.msra.mxu0 0.0
        %1194 = vmatpush.msra.mxu0 0.0
        %1195 = vmatpush.msra.mxu0 0.0
        %1196 = vmatpush.msra.mxu0 0.0
        %1197 = vmatpush.msra.mxu0 0.0
        %1198 = vmatpush.msra.mxu0 0.0
        %1199 = vmatpush.msra.mxu0 %v1179
        %1200 = vmatpush.msra.mxu0 %v1178
        %1201 = vmatpush.msra.mxu0 %v1177
        %1202 = vmatpush.msra.mxu0 %v1176
        %1203 = vmatpush.msra.mxu0 %v1175
        %1204 = vmatpush.msra.mxu0 %v1174
        %1205 = vmatpush.msra.mxu0 %v1173
        %1206 = vmatpush.msra.mxu0 %v1172
        %1207 = vmatpush.msra.mxu0 %v1171
        %1208 = vmatmul.f32.gmra.mxu0 %v1181
        %v1209 = vpop.f32.mrf.mxu0
        %v1210 = vadd.f32 0.0, %v1209
        %1211 = vmatmul.f32.gmra.mxu0 %v1184
        %v1212 = vpop.f32.mrf.mxu0
        %v1213 = vadd.f32 0.0, %v1212
        %1214 = vmatmul.f32.gmra.mxu0 %v1187
        %v1215 = vpop.f32.mrf.mxu0
        %v1216 = vadd.f32 0.0, %v1215
        %1217 = vmatmul.f32.gmra.mxu0 %v1190
        %v1218 = vpop.f32.mrf.mxu0
        %v1219 = vadd.f32 0.0, %v1218
        %1220 = vdwg.mxu0
        %v1221 = vadd.f32 %v1163, %v1210
        %v1222 = vadd.f32 %v1164, %v1213
        %v1223 = vadd.f32 %v1165, %v1216
        %v1224 = vadd.f32 %v1166, %v1219
        %v1225 = vld [vmem:[#allocation2 + $0x100] sm:$0xff]
        %v1226 = vld [vmem:[#allocation2 + $0x108] sm:$0xff]
        %v1227 = vld [vmem:[#allocation2 + $0x110] sm:$0xff]
        %v1228 = vld [vmem:[#allocation2 + $0x118] sm:$0xff]
        %v1229 = vld [vmem:[#allocation8 + $0x240] sm:$0xff]
        %v1230 = vld [vmem:[#allocation8 + $0x248] sm:$0xff]
        %v1231 = vld [vmem:[#allocation8 + $0x250] sm:$0xff]
        %v1232 = vld [vmem:[#allocation8 + $0x258] sm:$0xff]
        %v1233 = vld [vmem:[#allocation8 + $0x260] sm:$0xff]
        %v1234 = vld [vmem:[#allocation8 + $0x268] sm:$0xff]
        %v1235 = vld [vmem:[#allocation8 + $0x270] sm:$0xff]
        %v1236 = vld [vmem:[#allocation8 + $0x278] sm:$0xff]
        %v1237 = vld [vmem:[#allocation8 + $0x280] sm:$0xff]
        %v1239 = vsel %vm732, %v1225, 0
        %v1242 = vsel %vm732, %v1226, 0
        %v1245 = vsel %vm732, %v1227, 0
        %v1248 = vsel %vm732, %v1228, 0
        %1250 = vmatpush.msra.mxu0 0.0
        %1251 = vmatpush.msra.mxu0 0.0
        %1252 = vmatpush.msra.mxu0 0.0
        %1253 = vmatpush.msra.mxu0 0.0
        %1254 = vmatpush.msra.mxu0 0.0
        %1255 = vmatpush.msra.mxu0 0.0
        %1256 = vmatpush.msra.mxu0 0.0
        %1257 = vmatpush.msra.mxu0 %v1237
        %1258 = vmatpush.msra.mxu0 %v1236
        %1259 = vmatpush.msra.mxu0 %v1235
        %1260 = vmatpush.msra.mxu0 %v1234
        %1261 = vmatpush.msra.mxu0 %v1233
        %1262 = vmatpush.msra.mxu0 %v1232
        %1263 = vmatpush.msra.mxu0 %v1231
        %1264 = vmatpush.msra.mxu0 %v1230
        %1265 = vmatpush.msra.mxu0 %v1229
        %1266 = vmatmul.f32.gmra.mxu0 %v1239
        %v1267 = vpop.f32.mrf.mxu0
        %v1268 = vadd.f32 0.0, %v1267
        %1269 = vmatmul.f32.gmra.mxu0 %v1242
        %v1270 = vpop.f32.mrf.mxu0
        %v1271 = vadd.f32 0.0, %v1270
        %1272 = vmatmul.f32.gmra.mxu0 %v1245
        %v1273 = vpop.f32.mrf.mxu0
        %v1274 = vadd.f32 0.0, %v1273
        %1275 = vmatmul.f32.gmra.mxu0 %v1248
        %v1276 = vpop.f32.mrf.mxu0
        %v1277 = vadd.f32 0.0, %v1276
        %1278 = vdwg.mxu0
        %v1279 = vadd.f32 %v1221, %v1268
        %v1280 = vadd.f32 %v1222, %v1271
        %v1281 = vadd.f32 %v1223, %v1274
        %v1282 = vadd.f32 %v1224, %v1277
        %v1283 = vld [vmem:[%s380] sm:$0xff]
        %v1284 = vld [vmem:[%s380 + $0x8] sm:$0xff]
        %v1285 = vld [vmem:[%s380 + $0x10] sm:$0xff]
        %v1286 = vld [vmem:[%s380 + $0x18] sm:$0xff]
        %1288 = vset.pattern.permute.xlu0 0
        %1289 = vperm.xlu0 %1288, %v1283
        %v1290 = vpop.permute.xlu0 %1289
        %1293 = vset.pattern.permute.xlu0 0
        %1294 = vperm.xlu0 %1293, %v1284
        %v1295 = vpop.permute.xlu0 %1294
        %1298 = vset.pattern.permute.xlu0 0
        %1299 = vperm.xlu0 %1298, %v1285
        %v1300 = vpop.permute.xlu0 %1299
        %1303 = vset.pattern.permute.xlu0 0
        %1304 = vperm.xlu0 %1303, %v1286
        %v1305 = vpop.permute.xlu0 %1304
        %v1307 = vadd.f32 %v1279, %v1290
        %v1308 = vadd.f32 %v1280, %v1295
        %v1309 = vadd.f32 %v1281, %v1300
        %v1310 = vadd.f32 %v1282, %v1305
        %v1312 = vsel %vm498, %v450, 0
        %v1315 = vsel %vm498, %v451, 0
        %v1318 = vsel %vm498, %v452, 0
        %v1321 = vsel %vm498, %v453, 0
        %1323 = vmatpush.msra.mxu0 0.0
        %1324 = vmatpush.msra.mxu0 0.0
        %1325 = vmatpush.msra.mxu0 0.0
        %1326 = vmatpush.msra.mxu0 0.0
        %1327 = vmatpush.msra.mxu0 0.0
        %1328 = vmatpush.msra.mxu0 0.0
        %1329 = vmatpush.msra.mxu0 0.0
        %1330 = vmatpush.msra.mxu0 0.0
        %1331 = vmatpush.msra.mxu0 0.0
        %1332 = vmatpush.msra.mxu0 0.0
        %1333 = vmatpush.msra.mxu0 0.0
        %1334 = vmatpush.msra.mxu0 0.0
        %1335 = vmatpush.msra.mxu0 %v1310
        %1336 = vmatpush.msra.mxu0 %v1309
        %1337 = vmatpush.msra.mxu0 %v1308
        %1338 = vmatpush.msra.mxu0 %v1307
        %1339 = vmatmul.f32.gmra.mxu0 %v1312
        %v1340 = vpop.f32.mrf.mxu0
        %v1341 = vadd.f32 0.0, %v1340
        %1342 = vmatmul.f32.gmra.mxu0 %v1315
        %v1343 = vpop.f32.mrf.mxu0
        %v1344 = vadd.f32 0.0, %v1343
        %1345 = vmatmul.f32.gmra.mxu0 %v1318
        %v1346 = vpop.f32.mrf.mxu0
        %v1347 = vadd.f32 0.0, %v1346
        %1348 = vmatmul.f32.gmra.mxu0 %v1321
        %v1349 = vpop.f32.mrf.mxu0
        %v1350 = vadd.f32 0.0, %v1349
        %1351 = vdwg.mxu0
        %v1352 = vsel %vm732, %v1341, 0.0
        %1353 = vadd.xlane.f32.xlu0 %v1352
        %v1354 = vpop.xlane.xlu0 %1353
        %v1355 = vsel %vm732, %v1344, 0.0
        %1356 = vadd.xlane.f32.xlu0 %v1355
        %v1357 = vpop.xlane.xlu0 %1356
        %v1358 = vsel %vm732, %v1347, 0.0
        %1359 = vadd.xlane.f32.xlu0 %v1358
        %v1360 = vpop.xlane.xlu0 %1359
        %v1361 = vsel %vm732, %v1350, 0.0
        %1362 = vadd.xlane.f32.xlu0 %v1361
        %v1363 = vpop.xlane.xlu0 %1362
        %v1364 = vmul.f32 %v1354, 0.0017361111
        %v1365 = vmul.f32 %v1357, 0.0017361111
        %v1366 = vmul.f32 %v1360, 0.0017361111
        %v1367 = vmul.f32 %v1363, 0.0017361111
        %v1368 = vmul.f32 %v1307, %v1307
        %v1369 = vmul.f32 %v1308, %v1308
        %v1370 = vmul.f32 %v1309, %v1309
        %v1371 = vmul.f32 %v1310, %v1310
        %1372 = vmatpush.msra.mxu0 0.0
        %1373 = vmatpush.msra.mxu0 0.0
        %1374 = vmatpush.msra.mxu0 0.0
        %1375 = vmatpush.msra.mxu0 0.0
        %1376 = vmatpush.msra.mxu0 0.0
        %1377 = vmatpush.msra.mxu0 0.0
        %1378 = vmatpush.msra.mxu0 0.0
        %1379 = vmatpush.msra.mxu0 0.0
        %1380 = vmatpush.msra.mxu0 0.0
        %1381 = vmatpush.msra.mxu0 0.0
        %1382 = vmatpush.msra.mxu0 0.0
        %1383 = vmatpush.msra.mxu0 0.0
        %1384 = vmatpush.msra.mxu0 %v1371
        %1385 = vmatpush.msra.mxu0 %v1370
        %1386 = vmatpush.msra.mxu0 %v1369
        %1387 = vmatpush.msra.mxu0 %v1368
        %1388 = vmatmul.f32.gmra.mxu0 %v1312
        %v1389 = vpop.f32.mrf.mxu0
        %v1390 = vadd.f32 0.0, %v1389
        %1391 = vmatmul.f32.gmra.mxu0 %v1315
        %v1392 = vpop.f32.mrf.mxu0
        %v1393 = vadd.f32 0.0, %v1392
        %1394 = vmatmul.f32.gmra.mxu0 %v1318
        %v1395 = vpop.f32.mrf.mxu0
        %v1396 = vadd.f32 0.0, %v1395
        %1397 = vmatmul.f32.gmra.mxu0 %v1321
        %v1398 = vpop.f32.mrf.mxu0
        %v1399 = vadd.f32 0.0, %v1398
        %1400 = vdwg.mxu0
        %v1401 = vsel %vm732, %v1390, 0.0
        %1402 = vadd.xlane.f32.xlu0 %v1401
        %v1403 = vpop.xlane.xlu0 %1402
        %v1404 = vsel %vm732, %v1393, 0.0
        %1405 = vadd.xlane.f32.xlu0 %v1404
        %v1406 = vpop.xlane.xlu0 %1405
        %v1407 = vsel %vm732, %v1396, 0.0
        %1408 = vadd.xlane.f32.xlu0 %v1407
        %v1409 = vpop.xlane.xlu0 %1408
        %v1410 = vsel %vm732, %v1399, 0.0
        %1411 = vadd.xlane.f32.xlu0 %v1410
        %v1412 = vpop.xlane.xlu0 %1411
        %v1413 = vmul.f32 %v1403, 0.0017361111
        %v1414 = vmul.f32 %v1406, 0.0017361111
        %v1415 = vmul.f32 %v1409, 0.0017361111
        %v1416 = vmul.f32 %v1412, 0.0017361111
        %v1417 = vmul.f32 %v1364, %v1364
        %v1418 = vmul.f32 %v1365, %v1365
        %v1419 = vmul.f32 %v1366, %v1366
        %v1420 = vmul.f32 %v1367, %v1367
        %v1421 = vsub.f32 %v1413, %v1417
        %v1422 = vsub.f32 %v1414, %v1418
        %v1423 = vsub.f32 %v1415, %v1419
        %v1424 = vsub.f32 %v1416, %v1420
        %v1425 = vsub.f32 %v1307, %v1364
        %v1426 = vsub.f32 %v1308, %v1365
        %v1427 = vsub.f32 %v1309, %v1366
        %v1428 = vsub.f32 %v1310, %v1367
        %v1429 = vadd.f32 %v1421, 1e-05
        %v1430 = vadd.f32 %v1422, 1e-05
        %v1431 = vadd.f32 %v1423, 1e-05
        %v1432 = vadd.f32 %v1424, 1e-05
        %v1433 = vrsqrt.pop %v1429
        %v1434 = vmul.f32 %v1433, %v1429
        %v1435 = vmul.f32 %v1434, %v1433
        %v1436 = vmul.f32 0.5, %v1435
        %v1437 = vsub.f32 1.5, %v1436
        %v1438 = vmul.f32 %v1433, %v1437
        %vm1439 = vweird.f32 %v1429
        %vm1440 = vweird.f32 %v1433
        %vm1441 = vmor %vm1439, %vm1440
        %v1442 = vsel %vm1441, %v1433, %v1438
        %v1443 = vrsqrt.pop %v1430
        %v1444 = vmul.f32 %v1443, %v1430
        %v1445 = vmul.f32 %v1444, %v1443
        %v1446 = vmul.f32 0.5, %v1445
        %v1447 = vsub.f32 1.5, %v1446
        %v1448 = vmul.f32 %v1443, %v1447
        %vm1449 = vweird.f32 %v1430
        %vm1450 = vweird.f32 %v1443
        %vm1451 = vmor %vm1449, %vm1450
        %v1452 = vsel %vm1451, %v1443, %v1448
        %v1453 = vrsqrt.pop %v1431
        %v1454 = vmul.f32 %v1453, %v1431
        %v1455 = vmul.f32 %v1454, %v1453
        %v1456 = vmul.f32 0.5, %v1455
        %v1457 = vsub.f32 1.5, %v1456
        %v1458 = vmul.f32 %v1453, %v1457
        %vm1459 = vweird.f32 %v1431
        %vm1460 = vweird.f32 %v1453
        %vm1461 = vmor %vm1459, %vm1460
        %v1462 = vsel %vm1461, %v1453, %v1458
        %v1463 = vrsqrt.pop %v1432
        %v1464 = vmul.f32 %v1463, %v1432
        %v1465 = vmul.f32 %v1464, %v1463
        %v1466 = vmul.f32 0.5, %v1465
        %v1467 = vsub.f32 1.5, %v1466
        %v1468 = vmul.f32 %v1463, %v1467
        %vm1469 = vweird.f32 %v1432
        %vm1470 = vweird.f32 %v1463
        %vm1471 = vmor %vm1469, %vm1470
        %v1472 = vsel %vm1471, %v1463, %v1468
        %v1473 = vmul.f32 %v1425, %v1442
        %v1474 = vmul.f32 %v1426, %v1452
        %v1475 = vmul.f32 %v1427, %v1462
        %v1476 = vmul.f32 %v1428, %v1472
        %1478 = vset.pattern.permute.xlu0 3
        %1479 = vperm.xlu0 %1478, %v454
        %v1480 = vpop.permute.xlu0 %1479
        %1483 = vset.pattern.permute.xlu0 3
        %1484 = vperm.xlu0 %1483, %v455
        %v1485 = vpop.permute.xlu0 %1484
        %1488 = vset.pattern.permute.xlu0 3
        %1489 = vperm.xlu0 %1488, %v456
        %v1490 = vpop.permute.xlu0 %1489
        %1493 = vset.pattern.permute.xlu0 3
        %1494 = vperm.xlu0 %1493, %v457
        %v1495 = vpop.permute.xlu0 %1494
        %v1497 = vmul.f32 %v1473, %v1480
        %v1498 = vmul.f32 %v1474, %v1485
        %v1499 = vmul.f32 %v1475, %v1490
        %v1500 = vmul.f32 %v1476, %v1495
        %1501 = vset.pattern.permute.xlu0 4
        %1502 = vperm.xlu0 %1501, %v454
        %v1503 = vpop.permute.xlu0 %1502
        %1505 = vset.pattern.permute.xlu0 4
        %1506 = vperm.xlu0 %1505, %v455
        %v1507 = vpop.permute.xlu0 %1506
        %1509 = vset.pattern.permute.xlu0 4
        %1510 = vperm.xlu0 %1509, %v456
        %v1511 = vpop.permute.xlu0 %1510
        %1513 = vset.pattern.permute.xlu0 4
        %1514 = vperm.xlu0 %1513, %v457
        %v1515 = vpop.permute.xlu0 %1514
        %v1517 = vadd.f32 %v1497, %v1503
        %v1518 = vadd.f32 %v1498, %v1507
        %v1519 = vadd.f32 %v1499, %v1511
        %v1520 = vadd.f32 %v1500, %v1515
        %v1521 = vmax.f32 %v1517, 0.0
        %v1522 = vmax.f32 %v1518, 0.0
        %v1523 = vmax.f32 %v1519, 0.0
        %v1524 = vmax.f32 %v1520, 0.0
        %v1525 = vld [vmem:[%s360 + $0x120] sm:$0xff]
        %v1526 = vld [vmem:[%s360 + $0x128] sm:$0xff]
        %v1527 = vld [vmem:[%s360 + $0x130] sm:$0xff]
        %v1528 = vld [vmem:[%s360 + $0x138] sm:$0xff]
        %v1529 = vld [vmem:[%s360 + $0x140] sm:$0xff]
        %v1530 = vld [vmem:[%s360 + $0x148] sm:$0xff]
        %v1531 = vld [vmem:[%s360 + $0x150] sm:$0xff]
        %v1532 = vld [vmem:[%s360 + $0x158] sm:$0xff]
        %v1533 = vld [vmem:[%s360 + $0x160] sm:$0xff]
        %v1534 = vld [vmem:[%s360 + $0x168] sm:$0xff]
        %v1535 = vld [vmem:[%s360 + $0x170] sm:$0xff]
        %v1536 = vld [vmem:[%s360 + $0x178] sm:$0xff]
        %v1537 = vld [vmem:[%s360 + $0x180] sm:$0xff]
        %v1538 = vld [vmem:[%s360 + $0x188] sm:$0xff]
        %v1539 = vld [vmem:[%s360 + $0x190] sm:$0xff]
        %v1540 = vld [vmem:[%s360 + $0x198] sm:$0xff]
        %v1541 = vld [vmem:[%s360 + $0x1a0] sm:$0xff]
        %v1542 = vld [vmem:[%s360 + $0x1a8] sm:$0xff]
        %v1543 = vld [vmem:[%s360 + $0x1b0] sm:$0xff]
        %v1544 = vld [vmem:[%s360 + $0x1b8] sm:$0xff]
        %v1545 = vld [vmem:[%s360 + $0x1c0] sm:$0xff]
        %v1546 = vld [vmem:[%s360 + $0x1c8] sm:$0xff]
        %v1547 = vld [vmem:[%s360 + $0x1d0] sm:$0xff]
        %v1548 = vld [vmem:[%s360 + $0x1d8] sm:$0xff]
        %v1549 = vld [vmem:[%s360 + $0x1e0] sm:$0xff]
        %v1550 = vld [vmem:[%s360 + $0x1e8] sm:$0xff]
        %v1551 = vld [vmem:[%s360 + $0x1f0] sm:$0xff]
        %v1552 = vld [vmem:[%s360 + $0x1f8] sm:$0xff]
        %v1553 = vld [vmem:[%s360 + $0x200] sm:$0xff]
        %v1554 = vld [vmem:[%s360 + $0x208] sm:$0xff]
        %v1555 = vld [vmem:[%s360 + $0x210] sm:$0xff]
        %v1556 = vld [vmem:[%s360 + $0x218] sm:$0xff]
        %v1557 = vld [vmem:[%s360 + $0x220] sm:$0xff]
        %v1558 = vld [vmem:[%s360 + $0x228] sm:$0xff]
        %v1559 = vld [vmem:[%s360 + $0x230] sm:$0xff]
        %v1560 = vld [vmem:[%s360 + $0x238] sm:$0xff]
        %v1562 = vsel %vm498, %v1525, 0
        %v1565 = vsel %vm498, %v1526, 0
        %v1568 = vsel %vm498, %v1527, 0
        %v1571 = vsel %vm498, %v1528, 0
        %v1574 = vsel %vm498, %v1529, 0
        %v1577 = vsel %vm498, %v1530, 0
        %v1580 = vsel %vm498, %v1531, 0
        %v1583 = vsel %vm498, %v1532, 0
        %v1586 = vsel %vm498, %v1533, 0
        %v1589 = vsel %vm498, %v1534, 0
        %v1592 = vsel %vm498, %v1535, 0
        %v1595 = vsel %vm498, %v1536, 0
        %v1598 = vsel %vm498, %v1537, 0
        %v1601 = vsel %vm498, %v1538, 0
        %v1604 = vsel %vm498, %v1539, 0
        %v1607 = vsel %vm498, %v1540, 0
        %v1610 = vsel %vm498, %v1541, 0
        %v1613 = vsel %vm498, %v1542, 0
        %v1616 = vsel %vm498, %v1543, 0
        %v1619 = vsel %vm498, %v1544, 0
        %v1622 = vsel %vm498, %v1545, 0
        %v1625 = vsel %vm498, %v1546, 0
        %v1628 = vsel %vm498, %v1547, 0
        %v1631 = vsel %vm498, %v1548, 0
        %v1634 = vsel %vm498, %v1549, 0
        %v1637 = vsel %vm498, %v1550, 0
        %v1640 = vsel %vm498, %v1551, 0
        %v1643 = vsel %vm498, %v1552, 0
        %v1646 = vsel %vm498, %v1553, 0
        %v1649 = vsel %vm498, %v1554, 0
        %v1652 = vsel %vm498, %v1555, 0
        %v1655 = vsel %vm498, %v1556, 0
        %v1658 = vsel %vm498, %v1557, 0
        %v1661 = vsel %vm498, %v1558, 0
        %v1664 = vsel %vm498, %v1559, 0
        %v1667 = vsel %vm498, %v1560, 0
        %1669 = vmatpush.msra.mxu0 0.0
        %1670 = vmatpush.msra.mxu0 0.0
        %1671 = vmatpush.msra.mxu0 0.0
        %1672 = vmatpush.msra.mxu0 0.0
        %1673 = vmatpush.msra.mxu0 0.0
        %1674 = vmatpush.msra.mxu0 0.0
        %1675 = vmatpush.msra.mxu0 0.0
        %1676 = vmatpush.msra.mxu0 0.0
        %1677 = vmatpush.msra.mxu0 0.0
        %1678 = vmatpush.msra.mxu0 0.0
        %1679 = vmatpush.msra.mxu0 0.0
        %1680 = vmatpush.msra.mxu0 0.0
        %1681 = vmatpush.msra.mxu0 %v1524
        %1682 = vmatpush.msra.mxu0 %v1523
        %1683 = vmatpush.msra.mxu0 %v1522
        %1684 = vmatpush.msra.mxu0 %v1521
        %1685 = vmatmul.f32.gmra.mxu0 %v1562
        %v1686 = vpop.f32.mrf.mxu0
        %v1687 = vadd.f32 0.0, %v1686
        %1688 = vmatmul.f32.gmra.mxu0 %v1565
        %v1689 = vpop.f32.mrf.mxu0
        %v1690 = vadd.f32 0.0, %v1689
        %1691 = vmatmul.f32.gmra.mxu0 %v1568
        %v1692 = vpop.f32.mrf.mxu0
        %v1693 = vadd.f32 0.0, %v1692
        %1694 = vmatmul.f32.gmra.mxu0 %v1571
        %v1695 = vpop.f32.mrf.mxu0
        %v1696 = vadd.f32 0.0, %v1695
        %1697 = vmatmul.f32.gmra.mxu0 %v1574
        %v1698 = vpop.f32.mrf.mxu0
        %v1699 = vadd.f32 0.0, %v1698
        %1700 = vmatmul.f32.gmra.mxu0 %v1577
        %v1701 = vpop.f32.mrf.mxu0
        %v1702 = vadd.f32 0.0, %v1701
        %1703 = vmatmul.f32.gmra.mxu0 %v1580
        %v1704 = vpop.f32.mrf.mxu0
        %v1705 = vadd.f32 0.0, %v1704
        %1706 = vmatmul.f32.gmra.mxu0 %v1583
        %v1707 = vpop.f32.mrf.mxu0
        %v1708 = vadd.f32 0.0, %v1707
        %1709 = vmatmul.f32.gmra.mxu0 %v1586
        %v1710 = vpop.f32.mrf.mxu0
        %v1711 = vadd.f32 0.0, %v1710
        %1712 = vmatmul.f32.gmra.mxu0 %v1589
        %v1713 = vpop.f32.mrf.mxu0
        %v1714 = vadd.f32 0.0, %v1713
        %1715 = vmatmul.f32.gmra.mxu0 %v1592
        %v1716 = vpop.f32.mrf.mxu0
        %v1717 = vadd.f32 0.0, %v1716
        %1718 = vmatmul.f32.gmra.mxu0 %v1595
        %v1719 = vpop.f32.mrf.mxu0
        %v1720 = vadd.f32 0.0, %v1719
        %1721 = vmatmul.f32.gmra.mxu0 %v1598
        %v1722 = vpop.f32.mrf.mxu0
        %v1723 = vadd.f32 0.0, %v1722
        %1724 = vmatmul.f32.gmra.mxu0 %v1601
        %v1725 = vpop.f32.mrf.mxu0
        %v1726 = vadd.f32 0.0, %v1725
        %1727 = vmatmul.f32.gmra.mxu0 %v1604
        %v1728 = vpop.f32.mrf.mxu0
        %v1729 = vadd.f32 0.0, %v1728
        %1730 = vmatmul.f32.gmra.mxu0 %v1607
        %v1731 = vpop.f32.mrf.mxu0
        %v1732 = vadd.f32 0.0, %v1731
        %1733 = vmatmul.f32.gmra.mxu0 %v1610
        %v1734 = vpop.f32.mrf.mxu0
        %v1735 = vadd.f32 0.0, %v1734
        %1736 = vmatmul.f32.gmra.mxu0 %v1613
        %v1737 = vpop.f32.mrf.mxu0
        %v1738 = vadd.f32 0.0, %v1737
        %1739 = vmatmul.f32.gmra.mxu0 %v1616
        %v1740 = vpop.f32.mrf.mxu0
        %v1741 = vadd.f32 0.0, %v1740
        %1742 = vmatmul.f32.gmra.mxu0 %v1619
        %v1743 = vpop.f32.mrf.mxu0
        %v1744 = vadd.f32 0.0, %v1743
        %1745 = vmatmul.f32.gmra.mxu0 %v1622
        %v1746 = vpop.f32.mrf.mxu0
        %v1747 = vadd.f32 0.0, %v1746
        %1748 = vmatmul.f32.gmra.mxu0 %v1625
        %v1749 = vpop.f32.mrf.mxu0
        %v1750 = vadd.f32 0.0, %v1749
        %1751 = vmatmul.f32.gmra.mxu0 %v1628
        %v1752 = vpop.f32.mrf.mxu0
        %v1753 = vadd.f32 0.0, %v1752
        %1754 = vmatmul.f32.gmra.mxu0 %v1631
        %v1755 = vpop.f32.mrf.mxu0
        %v1756 = vadd.f32 0.0, %v1755
        %1757 = vmatmul.f32.gmra.mxu0 %v1634
        %v1758 = vpop.f32.mrf.mxu0
        %v1759 = vadd.f32 0.0, %v1758
        %1760 = vmatmul.f32.gmra.mxu0 %v1637
        %v1761 = vpop.f32.mrf.mxu0
        %v1762 = vadd.f32 0.0, %v1761
        %1763 = vmatmul.f32.gmra.mxu0 %v1640
        %v1764 = vpop.f32.mrf.mxu0
        %v1765 = vadd.f32 0.0, %v1764
        %1766 = vmatmul.f32.gmra.mxu0 %v1643
        %v1767 = vpop.f32.mrf.mxu0
        %v1768 = vadd.f32 0.0, %v1767
        %1769 = vmatmul.f32.gmra.mxu0 %v1646
        %v1770 = vpop.f32.mrf.mxu0
        %v1771 = vadd.f32 0.0, %v1770
        %1772 = vmatmul.f32.gmra.mxu0 %v1649
        %v1773 = vpop.f32.mrf.mxu0
        %v1774 = vadd.f32 0.0, %v1773
        %1775 = vmatmul.f32.gmra.mxu0 %v1652
        %v1776 = vpop.f32.mrf.mxu0
        %v1777 = vadd.f32 0.0, %v1776
        %1778 = vmatmul.f32.gmra.mxu0 %v1655
        %v1779 = vpop.f32.mrf.mxu0
        %v1780 = vadd.f32 0.0, %v1779
        %1781 = vmatmul.f32.gmra.mxu0 %v1658
        %v1782 = vpop.f32.mrf.mxu0
        %v1783 = vadd.f32 0.0, %v1782
        %1784 = vmatmul.f32.gmra.mxu0 %v1661
        %v1785 = vpop.f32.mrf.mxu0
        %v1786 = vadd.f32 0.0, %v1785
        %1787 = vmatmul.f32.gmra.mxu0 %v1664
        %v1788 = vpop.f32.mrf.mxu0
        %v1789 = vadd.f32 0.0, %v1788
        %1790 = vmatmul.f32.gmra.mxu0 %v1667
        %v1791 = vpop.f32.mrf.mxu0
        %v1792 = vadd.f32 0.0, %v1791
        %1793 = vdwg.mxu0
        %1794 = vst.msk [vmem:[#allocation2] sm:$0xff] %vm732, %v1687
        %1795 = vst.msk [vmem:[#allocation2 + $0x8] sm:$0xff] %vm732, %v1690
        %1796 = vst.msk [vmem:[#allocation2 + $0x10] sm:$0xff] %vm732, %v1693
        %1797 = vst.msk [vmem:[#allocation2 + $0x18] sm:$0xff] %vm732, %v1696
        %1798 = vst.msk [vmem:[#allocation2 + $0x20] sm:$0xff] %vm732, %v1699
        %1799 = vst.msk [vmem:[#allocation2 + $0x28] sm:$0xff] %vm732, %v1702
        %1800 = vst.msk [vmem:[#allocation2 + $0x30] sm:$0xff] %vm732, %v1705
        %1801 = vst.msk [vmem:[#allocation2 + $0x38] sm:$0xff] %vm732, %v1708
        %1802 = vst.msk [vmem:[#allocation2 + $0x40] sm:$0xff] %vm732, %v1711
        %1803 = vst.msk [vmem:[#allocation2 + $0x48] sm:$0xff] %vm732, %v1714
        %1804 = vst.msk [vmem:[#allocation2 + $0x50] sm:$0xff] %vm732, %v1717
        %1805 = vst.msk [vmem:[#allocation2 + $0x58] sm:$0xff] %vm732, %v1720
        %1806 = vst.msk [vmem:[#allocation2 + $0x60] sm:$0xff] %vm732, %v1723
        %1807 = vst.msk [vmem:[#allocation2 + $0x68] sm:$0xff] %vm732, %v1726
        %1808 = vst.msk [vmem:[#allocation2 + $0x70] sm:$0xff] %vm732, %v1729
        %1809 = vst.msk [vmem:[#allocation2 + $0x78] sm:$0xff] %vm732, %v1732
        %1810 = vst.msk [vmem:[#allocation2 + $0x80] sm:$0xff] %vm732, %v1735
        %1811 = vst.msk [vmem:[#allocation2 + $0x88] sm:$0xff] %vm732, %v1738
        %1812 = vst.msk [vmem:[#allocation2 + $0x90] sm:$0xff] %vm732, %v1741
        %1813 = vst.msk [vmem:[#allocation2 + $0x98] sm:$0xff] %vm732, %v1744
        %1814 = vst.msk [vmem:[#allocation2 + $0xa0] sm:$0xff] %vm732, %v1747
        %1815 = vst.msk [vmem:[#allocation2 + $0xa8] sm:$0xff] %vm732, %v1750
        %1816 = vst.msk [vmem:[#allocation2 + $0xb0] sm:$0xff] %vm732, %v1753
        %1817 = vst.msk [vmem:[#allocation2 + $0xb8] sm:$0xff] %vm732, %v1756
        %1818 = vst.msk [vmem:[#allocation2 + $0xc0] sm:$0xff] %vm732, %v1759
        %1819 = vst.msk [vmem:[#allocation2 + $0xc8] sm:$0xff] %vm732, %v1762
        %1820 = vst.msk [vmem:[#allocation2 + $0xd0] sm:$0xff] %vm732, %v1765
        %1821 = vst.msk [vmem:[#allocation2 + $0xd8] sm:$0xff] %vm732, %v1768
        %1822 = vst.msk [vmem:[#allocation2 + $0xe0] sm:$0xff] %vm732, %v1771
        %1823 = vst.msk [vmem:[#allocation2 + $0xe8] sm:$0xff] %vm732, %v1774
        %1824 = vst.msk [vmem:[#allocation2 + $0xf0] sm:$0xff] %vm732, %v1777
        %1825 = vst.msk [vmem:[#allocation2 + $0xf8] sm:$0xff] %vm732, %v1780
        %1826 = vst.msk [vmem:[#allocation2 + $0x100] sm:$0xff] %vm732, %v1783
        %1827 = vst.msk [vmem:[#allocation2 + $0x108] sm:$0xff] %vm732, %v1786
        %1828 = vst.msk [vmem:[#allocation2 + $0x110] sm:$0xff] %vm732, %v1789
        %1829 = vst.msk [vmem:[#allocation2 + $0x118] sm:$0xff] %vm732, %v1792
        %v1830 = vld [vmem:[#allocation2] sm:$0xff]
        %v1831 = vld [vmem:[#allocation2 + $0x8] sm:$0xff]
        %v1832 = vld [vmem:[#allocation2 + $0x10] sm:$0xff]
        %v1833 = vld [vmem:[#allocation2 + $0x18] sm:$0xff]
        %v1834 = vld [vmem:[#allocation8] sm:$0xff]
        %v1835 = vld [vmem:[#allocation8 + $0x8] sm:$0xff]
        %v1836 = vld [vmem:[#allocation8 + $0x10] sm:$0xff]
        %v1837 = vld [vmem:[#allocation8 + $0x18] sm:$0xff]
        %v1838 = vld [vmem:[#allocation8 + $0x20] sm:$0xff]
        %v1839 = vld [vmem:[#allocation8 + $0x28] sm:$0xff]
        %v1840 = vld [vmem:[#allocation8 + $0x30] sm:$0xff]
        %v1841 = vld [vmem:[#allocation8 + $0x38] sm:$0xff]
        %v1842 = vld [vmem:[#allocation8 + $0x40] sm:$0xff]
        %v1843 = vld [vmem:[#allocation2 + $0x20] sm:$0xff]
        %v1844 = vld [vmem:[#allocation2 + $0x28] sm:$0xff]
        %v1845 = vld [vmem:[#allocation2 + $0x30] sm:$0xff]
        %v1846 = vld [vmem:[#allocation2 + $0x38] sm:$0xff]
        %v1847 = vld [vmem:[#allocation8 + $0x48] sm:$0xff]
        %v1848 = vld [vmem:[#allocation8 + $0x50] sm:$0xff]
        %v1849 = vld [vmem:[#allocation8 + $0x58] sm:$0xff]
        %v1850 = vld [vmem:[#allocation8 + $0x60] sm:$0xff]
        %v1851 = vld [vmem:[#allocation8 + $0x68] sm:$0xff]
        %v1852 = vld [vmem:[#allocation8 + $0x70] sm:$0xff]
        %v1853 = vld [vmem:[#allocation8 + $0x78] sm:$0xff]
        %v1854 = vld [vmem:[#allocation8 + $0x80] sm:$0xff]
        %v1855 = vld [vmem:[#allocation8 + $0x88] sm:$0xff]
        %v1857 = vsel %vm732, %v1843, 0
        %v1860 = vsel %vm732, %v1844, 0
        %v1863 = vsel %vm732, %v1845, 0
        %v1866 = vsel %vm732, %v1846, 0
        %1868 = vmatpush.msra.mxu0 0.0
        %1869 = vmatpush.msra.mxu0 0.0
        %1870 = vmatpush.msra.mxu0 0.0
        %1871 = vmatpush.msra.mxu0 0.0
        %1872 = vmatpush.msra.mxu0 0.0
        %1873 = vmatpush.msra.mxu0 0.0
        %1874 = vmatpush.msra.mxu0 0.0
        %1875 = vmatpush.msra.mxu0 %v1855
        %1876 = vmatpush.msra.mxu0 %v1854
        %1877 = vmatpush.msra.mxu0 %v1853
        %1878 = vmatpush.msra.mxu0 %v1852
        %1879 = vmatpush.msra.mxu0 %v1851
        %1880 = vmatpush.msra.mxu0 %v1850
        %1881 = vmatpush.msra.mxu0 %v1849
        %1882 = vmatpush.msra.mxu0 %v1848
        %1883 = vmatpush.msra.mxu0 %v1847
        %1884 = vmatmul.f32.gmra.mxu0 %v1857
        %v1885 = vpop.f32.mrf.mxu0
        %v1886 = vadd.f32 0.0, %v1885
        %1887 = vmatmul.f32.gmra.mxu0 %v1860
        %v1888 = vpop.f32.mrf.mxu0
        %v1889 = vadd.f32 0.0, %v1888
        %1890 = vmatmul.f32.gmra.mxu0 %v1863
        %v1891 = vpop.f32.mrf.mxu0
        %v1892 = vadd.f32 0.0, %v1891
        %1893 = vmatmul.f32.gmra.mxu0 %v1866
        %v1894 = vpop.f32.mrf.mxu0
        %v1895 = vadd.f32 0.0, %v1894
        %1896 = vdwg.mxu0
        %v1898 = vsel %vm732, %v1830, 0
        %v1901 = vsel %vm732, %v1831, 0
        %v1904 = vsel %vm732, %v1832, 0
        %v1907 = vsel %vm732, %v1833, 0
        %1909 = vmatpush.msra.mxu0 0.0
        %1910 = vmatpush.msra.mxu0 0.0
        %1911 = vmatpush.msra.mxu0 0.0
        %1912 = vmatpush.msra.mxu0 0.0
        %1913 = vmatpush.msra.mxu0 0.0
        %1914 = vmatpush.msra.mxu0 0.0
        %1915 = vmatpush.msra.mxu0 0.0
        %1916 = vmatpush.msra.mxu0 %v1842
        %1917 = vmatpush.msra.mxu0 %v1841
        %1918 = vmatpush.msra.mxu0 %v1840
        %1919 = vmatpush.msra.mxu0 %v1839
        %1920 = vmatpush.msra.mxu0 %v1838
        %1921 = vmatpush.msra.mxu0 %v1837
        %1922 = vmatpush.msra.mxu0 %v1836
        %1923 = vmatpush.msra.mxu0 %v1835
        %1924 = vmatpush.msra.mxu0 %v1834
        %1925 = vmatmul.f32.gmra.mxu0 %v1898
        %v1926 = vpop.f32.mrf.mxu0
        %v1927 = vadd.f32 %v1886, %v1926
        %1928 = vmatmul.f32.gmra.mxu0 %v1901
        %v1929 = vpop.f32.mrf.mxu0
        %v1930 = vadd.f32 %v1889, %v1929
        %1931 = vmatmul.f32.gmra.mxu0 %v1904
        %v1932 = vpop.f32.mrf.mxu0
        %v1933 = vadd.f32 %v1892, %v1932
        %1934 = vmatmul.f32.gmra.mxu0 %v1907
        %v1935 = vpop.f32.mrf.mxu0
        %v1936 = vadd.f32 %v1895, %v1935
        %1937 = vdwg.mxu0
        %v1938 = vld [vmem:[#allocation2 + $0x40] sm:$0xff]
        %v1939 = vld [vmem:[#allocation2 + $0x48] sm:$0xff]
        %v1940 = vld [vmem:[#allocation2 + $0x50] sm:$0xff]
        %v1941 = vld [vmem:[#allocation2 + $0x58] sm:$0xff]
        %v1942 = vld [vmem:[#allocation8 + $0x90] sm:$0xff]
        %v1943 = vld [vmem:[#allocation8 + $0x98] sm:$0xff]
        %v1944 = vld [vmem:[#allocation8 + $0xa0] sm:$0xff]
        %v1945 = vld [vmem:[#allocation8 + $0xa8] sm:$0xff]
        %v1946 = vld [vmem:[#allocation8 + $0xb0] sm:$0xff]
        %v1947 = vld [vmem:[#allocation8 + $0xb8] sm:$0xff]
        %v1948 = vld [vmem:[#allocation8 + $0xc0] sm:$0xff]
        %v1949 = vld [vmem:[#allocation8 + $0xc8] sm:$0xff]
        %v1950 = vld [vmem:[#allocation8 + $0xd0] sm:$0xff]
        %v1952 = vsel %vm732, %v1938, 0
        %v1955 = vsel %vm732, %v1939, 0
        %v1958 = vsel %vm732, %v1940, 0
        %v1961 = vsel %vm732, %v1941, 0
        %1963 = vmatpush.msra.mxu0 0.0
        %1964 = vmatpush.msra.mxu0 0.0
        %1965 = vmatpush.msra.mxu0 0.0
        %1966 = vmatpush.msra.mxu0 0.0
        %1967 = vmatpush.msra.mxu0 0.0
        %1968 = vmatpush.msra.mxu0 0.0
        %1969 = vmatpush.msra.mxu0 0.0
        %1970 = vmatpush.msra.mxu0 %v1950
        %1971 = vmatpush.msra.mxu0 %v1949
        %1972 = vmatpush.msra.mxu0 %v1948
        %1973 = vmatpush.msra.mxu0 %v1947
        %1974 = vmatpush.msra.mxu0 %v1946
        %1975 = vmatpush.msra.mxu0 %v1945
        %1976 = vmatpush.msra.mxu0 %v1944
        %1977 = vmatpush.msra.mxu0 %v1943
        %1978 = vmatpush.msra.mxu0 %v1942
        %1979 = vmatmul.f32.gmra.mxu0 %v1952
        %v1980 = vpop.f32.mrf.mxu0
        %v1981 = vadd.f32 0.0, %v1980
        %1982 = vmatmul.f32.gmra.mxu0 %v1955
        %v1983 = vpop.f32.mrf.mxu0
        %v1984 = vadd.f32 0.0, %v1983
        %1985 = vmatmul.f32.gmra.mxu0 %v1958
        %v1986 = vpop.f32.mrf.mxu0
        %v1987 = vadd.f32 0.0, %v1986
        %1988 = vmatmul.f32.gmra.mxu0 %v1961
        %v1989 = vpop.f32.mrf.mxu0
        %v1990 = vadd.f32 0.0, %v1989
        %1991 = vdwg.mxu0
        %v1992 = vadd.f32 %v1927, %v1981
        %v1993 = vadd.f32 %v1930, %v1984
        %v1994 = vadd.f32 %v1933, %v1987
        %v1995 = vadd.f32 %v1936, %v1990
        %v1996 = vld [vmem:[#allocation2 + $0x60] sm:$0xff]
        %v1997 = vld [vmem:[#allocation2 + $0x68] sm:$0xff]
        %v1998 = vld [vmem:[#allocation2 + $0x70] sm:$0xff]
        %v1999 = vld [vmem:[#allocation2 + $0x78] sm:$0xff]
        %v2000 = vld [vmem:[#allocation8 + $0xd8] sm:$0xff]
        %v2001 = vld [vmem:[#allocation8 + $0xe0] sm:$0xff]
        %v2002 = vld [vmem:[#allocation8 + $0xe8] sm:$0xff]
        %v2003 = vld [vmem:[#allocation8 + $0xf0] sm:$0xff]
        %v2004 = vld [vmem:[#allocation8 + $0xf8] sm:$0xff]
        %v2005 = vld [vmem:[#allocation8 + $0x100] sm:$0xff]
        %v2006 = vld [vmem:[#allocation8 + $0x108] sm:$0xff]
        %v2007 = vld [vmem:[#allocation8 + $0x110] sm:$0xff]
        %v2008 = vld [vmem:[#allocation8 + $0x118] sm:$0xff]
        %v2010 = vsel %vm732, %v1996, 0
        %v2013 = vsel %vm732, %v1997, 0
        %v2016 = vsel %vm732, %v1998, 0
        %v2019 = vsel %vm732, %v1999, 0
        %2021 = vmatpush.msra.mxu0 0.0
        %2022 = vmatpush.msra.mxu0 0.0
        %2023 = vmatpush.msra.mxu0 0.0
        %2024 = vmatpush.msra.mxu0 0.0
        %2025 = vmatpush.msra.mxu0 0.0
        %2026 = vmatpush.msra.mxu0 0.0
        %2027 = vmatpush.msra.mxu0 0.0
        %2028 = vmatpush.msra.mxu0 %v2008
        %2029 = vmatpush.msra.mxu0 %v2007
        %2030 = vmatpush.msra.mxu0 %v2006
        %2031 = vmatpush.msra.mxu0 %v2005
        %2032 = vmatpush.msra.mxu0 %v2004
        %2033 = vmatpush.msra.mxu0 %v2003
        %2034 = vmatpush.msra.mxu0 %v2002
        %2035 = vmatpush.msra.mxu0 %v2001
        %2036 = vmatpush.msra.mxu0 %v2000
        %2037 = vmatmul.f32.gmra.mxu0 %v2010
        %v2038 = vpop.f32.mrf.mxu0
        %v2039 = vadd.f32 0.0, %v2038
        %2040 = vmatmul.f32.gmra.mxu0 %v2013
        %v2041 = vpop.f32.mrf.mxu0
        %v2042 = vadd.f32 0.0, %v2041
        %2043 = vmatmul.f32.gmra.mxu0 %v2016
        %v2044 = vpop.f32.mrf.mxu0
        %v2045 = vadd.f32 0.0, %v2044
        %2046 = vmatmul.f32.gmra.mxu0 %v2019
        %v2047 = vpop.f32.mrf.mxu0
        %v2048 = vadd.f32 0.0, %v2047
        %2049 = vdwg.mxu0
        %v2050 = vadd.f32 %v1992, %v2039
        %v2051 = vadd.f32 %v1993, %v2042
        %v2052 = vadd.f32 %v1994, %v2045
        %v2053 = vadd.f32 %v1995, %v2048
        %v2054 = vld [vmem:[#allocation2 + $0x80] sm:$0xff]
        %v2055 = vld [vmem:[#allocation2 + $0x88] sm:$0xff]
        %v2056 = vld [vmem:[#allocation2 + $0x90] sm:$0xff]
        %v2057 = vld [vmem:[#allocation2 + $0x98] sm:$0xff]
        %v2058 = vld [vmem:[#allocation8 + $0x120] sm:$0xff]
        %v2059 = vld [vmem:[#allocation8 + $0x128] sm:$0xff]
        %v2060 = vld [vmem:[#allocation8 + $0x130] sm:$0xff]
        %v2061 = vld [vmem:[#allocation8 + $0x138] sm:$0xff]
        %v2062 = vld [vmem:[#allocation8 + $0x140] sm:$0xff]
        %v2063 = vld [vmem:[#allocation8 + $0x148] sm:$0xff]
        %v2064 = vld [vmem:[#allocation8 + $0x150] sm:$0xff]
        %v2065 = vld [vmem:[#allocation8 + $0x158] sm:$0xff]
        %v2066 = vld [vmem:[#allocation8 + $0x160] sm:$0xff]
        %v2068 = vsel %vm732, %v2054, 0
        %v2071 = vsel %vm732, %v2055, 0
        %v2074 = vsel %vm732, %v2056, 0
        %v2077 = vsel %vm732, %v2057, 0
        %2079 = vmatpush.msra.mxu0 0.0
        %2080 = vmatpush.msra.mxu0 0.0
        %2081 = vmatpush.msra.mxu0 0.0
        %2082 = vmatpush.msra.mxu0 0.0
        %2083 = vmatpush.msra.mxu0 0.0
        %2084 = vmatpush.msra.mxu0 0.0
        %2085 = vmatpush.msra.mxu0 0.0
        %2086 = vmatpush.msra.mxu0 %v2066
        %2087 = vmatpush.msra.mxu0 %v2065
        %2088 = vmatpush.msra.mxu0 %v2064
        %2089 = vmatpush.msra.mxu0 %v2063
        %2090 = vmatpush.msra.mxu0 %v2062
        %2091 = vmatpush.msra.mxu0 %v2061
        %2092 = vmatpush.msra.mxu0 %v2060
        %2093 = vmatpush.msra.mxu0 %v2059
        %2094 = vmatpush.msra.mxu0 %v2058
        %2095 = vmatmul.f32.gmra.mxu0 %v2068
        %v2096 = vpop.f32.mrf.mxu0
        %v2097 = vadd.f32 0.0, %v2096
        %2098 = vmatmul.f32.gmra.mxu0 %v2071
        %v2099 = vpop.f32.mrf.mxu0
        %v2100 = vadd.f32 0.0, %v2099
        %2101 = vmatmul.f32.gmra.mxu0 %v2074
        %v2102 = vpop.f32.mrf.mxu0
        %v2103 = vadd.f32 0.0, %v2102
        %2104 = vmatmul.f32.gmra.mxu0 %v2077
        %v2105 = vpop.f32.mrf.mxu0
        %v2106 = vadd.f32 0.0, %v2105
        %2107 = vdwg.mxu0
        %v2108 = vadd.f32 %v2050, %v2097
        %v2109 = vadd.f32 %v2051, %v2100
        %v2110 = vadd.f32 %v2052, %v2103
        %v2111 = vadd.f32 %v2053, %v2106
        %v2112 = vld [vmem:[#allocation2 + $0xa0] sm:$0xff]
        %v2113 = vld [vmem:[#allocation2 + $0xa8] sm:$0xff]
        %v2114 = vld [vmem:[#allocation2 + $0xb0] sm:$0xff]
        %v2115 = vld [vmem:[#allocation2 + $0xb8] sm:$0xff]
        %v2116 = vld [vmem:[#allocation8 + $0x168] sm:$0xff]
        %v2117 = vld [vmem:[#allocation8 + $0x170] sm:$0xff]
        %v2118 = vld [vmem:[#allocation8 + $0x178] sm:$0xff]
        %v2119 = vld [vmem:[#allocation8 + $0x180] sm:$0xff]
        %v2120 = vld [vmem:[#allocation8 + $0x188] sm:$0xff]
        %v2121 = vld [vmem:[#allocation8 + $0x190] sm:$0xff]
        %v2122 = vld [vmem:[#allocation8 + $0x198] sm:$0xff]
        %v2123 = vld [vmem:[#allocation8 + $0x1a0] sm:$0xff]
        %v2124 = vld [vmem:[#allocation8 + $0x1a8] sm:$0xff]
        %v2126 = vsel %vm732, %v2112, 0
        %v2129 = vsel %vm732, %v2113, 0
        %v2132 = vsel %vm732, %v2114, 0
        %v2135 = vsel %vm732, %v2115, 0
        %2137 = vmatpush.msra.mxu0 0.0
        %2138 = vmatpush.msra.mxu0 0.0
        %2139 = vmatpush.msra.mxu0 0.0
        %2140 = vmatpush.msra.mxu0 0.0
        %2141 = vmatpush.msra.mxu0 0.0
        %2142 = vmatpush.msra.mxu0 0.0
        %2143 = vmatpush.msra.mxu0 0.0
        %2144 = vmatpush.msra.mxu0 %v2124
        %2145 = vmatpush.msra.mxu0 %v2123
        %2146 = vmatpush.msra.mxu0 %v2122
        %2147 = vmatpush.msra.mxu0 %v2121
        %2148 = vmatpush.msra.mxu0 %v2120
        %2149 = vmatpush.msra.mxu0 %v2119
        %2150 = vmatpush.msra.mxu0 %v2118
        %2151 = vmatpush.msra.mxu0 %v2117
        %2152 = vmatpush.msra.mxu0 %v2116
        %2153 = vmatmul.f32.gmra.mxu0 %v2126
        %v2154 = vpop.f32.mrf.mxu0
        %v2155 = vadd.f32 0.0, %v2154
        %2156 = vmatmul.f32.gmra.mxu0 %v2129
        %v2157 = vpop.f32.mrf.mxu0
        %v2158 = vadd.f32 0.0, %v2157
        %2159 = vmatmul.f32.gmra.mxu0 %v2132
        %v2160 = vpop.f32.mrf.mxu0
        %v2161 = vadd.f32 0.0, %v2160
        %2162 = vmatmul.f32.gmra.mxu0 %v2135
        %v2163 = vpop.f32.mrf.mxu0
        %v2164 = vadd.f32 0.0, %v2163
        %2165 = vdwg.mxu0
        %v2166 = vadd.f32 %v2108, %v2155
        %v2167 = vadd.f32 %v2109, %v2158
        %v2168 = vadd.f32 %v2110, %v2161
        %v2169 = vadd.f32 %v2111, %v2164
        %v2170 = vld [vmem:[#allocation2 + $0xc0] sm:$0xff]
        %v2171 = vld [vmem:[#allocation2 + $0xc8] sm:$0xff]
        %v2172 = vld [vmem:[#allocation2 + $0xd0] sm:$0xff]
        %v2173 = vld [vmem:[#allocation2 + $0xd8] sm:$0xff]
        %v2174 = vld [vmem:[#allocation8 + $0x1b0] sm:$0xff]
        %v2175 = vld [vmem:[#allocation8 + $0x1b8] sm:$0xff]
        %v2176 = vld [vmem:[#allocation8 + $0x1c0] sm:$0xff]
        %v2177 = vld [vmem:[#allocation8 + $0x1c8] sm:$0xff]
        %v2178 = vld [vmem:[#allocation8 + $0x1d0] sm:$0xff]
        %v2179 = vld [vmem:[#allocation8 + $0x1d8] sm:$0xff]
        %v2180 = vld [vmem:[#allocation8 + $0x1e0] sm:$0xff]
        %v2181 = vld [vmem:[#allocation8 + $0x1e8] sm:$0xff]
        %v2182 = vld [vmem:[#allocation8 + $0x1f0] sm:$0xff]
        %v2184 = vsel %vm732, %v2170, 0
        %v2187 = vsel %vm732, %v2171, 0
        %v2190 = vsel %vm732, %v2172, 0
        %v2193 = vsel %vm732, %v2173, 0
        %2195 = vmatpush.msra.mxu0 0.0
        %2196 = vmatpush.msra.mxu0 0.0
        %2197 = vmatpush.msra.mxu0 0.0
        %2198 = vmatpush.msra.mxu0 0.0
        %2199 = vmatpush.msra.mxu0 0.0
        %2200 = vmatpush.msra.mxu0 0.0
        %2201 = vmatpush.msra.mxu0 0.0
        %2202 = vmatpush.msra.mxu0 %v2182
        %2203 = vmatpush.msra.mxu0 %v2181
        %2204 = vmatpush.msra.mxu0 %v2180
        %2205 = vmatpush.msra.mxu0 %v2179
        %2206 = vmatpush.msra.mxu0 %v2178
        %2207 = vmatpush.msra.mxu0 %v2177
        %2208 = vmatpush.msra.mxu0 %v2176
        %2209 = vmatpush.msra.mxu0 %v2175
        %2210 = vmatpush.msra.mxu0 %v2174
        %2211 = vmatmul.f32.gmra.mxu0 %v2184
        %v2212 = vpop.f32.mrf.mxu0
        %v2213 = vadd.f32 0.0, %v2212
        %2214 = vmatmul.f32.gmra.mxu0 %v2187
        %v2215 = vpop.f32.mrf.mxu0
        %v2216 = vadd.f32 0.0, %v2215
        %2217 = vmatmul.f32.gmra.mxu0 %v2190
        %v2218 = vpop.f32.mrf.mxu0
        %v2219 = vadd.f32 0.0, %v2218
        %2220 = vmatmul.f32.gmra.mxu0 %v2193
        %v2221 = vpop.f32.mrf.mxu0
        %v2222 = vadd.f32 0.0, %v2221
        %2223 = vdwg.mxu0
        %v2224 = vadd.f32 %v2166, %v2213
        %v2225 = vadd.f32 %v2167, %v2216
        %v2226 = vadd.f32 %v2168, %v2219
        %v2227 = vadd.f32 %v2169, %v2222
        %v2228 = vld [vmem:[#allocation2 + $0xe0] sm:$0xff]
        %v2229 = vld [vmem:[#allocation2 + $0xe8] sm:$0xff]
        %v2230 = vld [vmem:[#allocation2 + $0xf0] sm:$0xff]
        %v2231 = vld [vmem:[#allocation2 + $0xf8] sm:$0xff]
        %v2232 = vld [vmem:[#allocation8 + $0x1f8] sm:$0xff]
        %v2233 = vld [vmem:[#allocation8 + $0x200] sm:$0xff]
        %v2234 = vld [vmem:[#allocation8 + $0x208] sm:$0xff]
        %v2235 = vld [vmem:[#allocation8 + $0x210] sm:$0xff]
        %v2236 = vld [vmem:[#allocation8 + $0x218] sm:$0xff]
        %v2237 = vld [vmem:[#allocation8 + $0x220] sm:$0xff]
        %v2238 = vld [vmem:[#allocation8 + $0x228] sm:$0xff]
        %v2239 = vld [vmem:[#allocation8 + $0x230] sm:$0xff]
        %v2240 = vld [vmem:[#allocation8 + $0x238] sm:$0xff]
        %v2242 = vsel %vm732, %v2228, 0
        %v2245 = vsel %vm732, %v2229, 0
        %v2248 = vsel %vm732, %v2230, 0
        %v2251 = vsel %vm732, %v2231, 0
        %2253 = vmatpush.msra.mxu0 0.0
        %2254 = vmatpush.msra.mxu0 0.0
        %2255 = vmatpush.msra.mxu0 0.0
        %2256 = vmatpush.msra.mxu0 0.0
        %2257 = vmatpush.msra.mxu0 0.0
        %2258 = vmatpush.msra.mxu0 0.0
        %2259 = vmatpush.msra.mxu0 0.0
        %2260 = vmatpush.msra.mxu0 %v2240
        %2261 = vmatpush.msra.mxu0 %v2239
        %2262 = vmatpush.msra.mxu0 %v2238
        %2263 = vmatpush.msra.mxu0 %v2237
        %2264 = vmatpush.msra.mxu0 %v2236
        %2265 = vmatpush.msra.mxu0 %v2235
        %2266 = vmatpush.msra.mxu0 %v2234
        %2267 = vmatpush.msra.mxu0 %v2233
        %2268 = vmatpush.msra.mxu0 %v2232
        %2269 = vmatmul.f32.gmra.mxu0 %v2242
        %v2270 = vpop.f32.mrf.mxu0
        %v2271 = vadd.f32 0.0, %v2270
        %2272 = vmatmul.f32.gmra.mxu0 %v2245
        %v2273 = vpop.f32.mrf.mxu0
        %v2274 = vadd.f32 0.0, %v2273
        %2275 = vmatmul.f32.gmra.mxu0 %v2248
        %v2276 = vpop.f32.mrf.mxu0
        %v2277 = vadd.f32 0.0, %v2276
        %2278 = vmatmul.f32.gmra.mxu0 %v2251
        %v2279 = vpop.f32.mrf.mxu0
        %v2280 = vadd.f32 0.0, %v2279
        %2281 = vdwg.mxu0
        %v2282 = vadd.f32 %v2224, %v2271
        %v2283 = vadd.f32 %v2225, %v2274
        %v2284 = vadd.f32 %v2226, %v2277
        %v2285 = vadd.f32 %v2227, %v2280
        %v2286 = vld [vmem:[#allocation2 + $0x100] sm:$0xff]
        %v2287 = vld [vmem:[#allocation2 + $0x108] sm:$0xff]
        %v2288 = vld [vmem:[#allocation2 + $0x110] sm:$0xff]
        %v2289 = vld [vmem:[#allocation2 + $0x118] sm:$0xff]
        %v2290 = vld [vmem:[#allocation8 + $0x240] sm:$0xff]
        %v2291 = vld [vmem:[#allocation8 + $0x248] sm:$0xff]
        %v2292 = vld [vmem:[#allocation8 + $0x250] sm:$0xff]
        %v2293 = vld [vmem:[#allocation8 + $0x258] sm:$0xff]
        %v2294 = vld [vmem:[#allocation8 + $0x260] sm:$0xff]
        %v2295 = vld [vmem:[#allocation8 + $0x268] sm:$0xff]
        %v2296 = vld [vmem:[#allocation8 + $0x270] sm:$0xff]
        %v2297 = vld [vmem:[#allocation8 + $0x278] sm:$0xff]
        %v2298 = vld [vmem:[#allocation8 + $0x280] sm:$0xff]
        %v2300 = vsel %vm732, %v2286, 0
        %v2303 = vsel %vm732, %v2287, 0
        %v2306 = vsel %vm732, %v2288, 0
        %v2309 = vsel %vm732, %v2289, 0
        %2311 = vmatpush.msra.mxu0 0.0
        %2312 = vmatpush.msra.mxu0 0.0
        %2313 = vmatpush.msra.mxu0 0.0
        %2314 = vmatpush.msra.mxu0 0.0
        %2315 = vmatpush.msra.mxu0 0.0
        %2316 = vmatpush.msra.mxu0 0.0
        %2317 = vmatpush.msra.mxu0 0.0
        %2318 = vmatpush.msra.mxu0 %v2298
        %2319 = vmatpush.msra.mxu0 %v2297
        %2320 = vmatpush.msra.mxu0 %v2296
        %2321 = vmatpush.msra.mxu0 %v2295
        %2322 = vmatpush.msra.mxu0 %v2294
        %2323 = vmatpush.msra.mxu0 %v2293
        %2324 = vmatpush.msra.mxu0 %v2292
        %2325 = vmatpush.msra.mxu0 %v2291
        %2326 = vmatpush.msra.mxu0 %v2290
        %2327 = vmatmul.f32.gmra.mxu0 %v2300
        %v2328 = vpop.f32.mrf.mxu0
        %v2329 = vadd.f32 0.0, %v2328
        %2330 = vmatmul.f32.gmra.mxu0 %v2303
        %v2331 = vpop.f32.mrf.mxu0
        %v2332 = vadd.f32 0.0, %v2331
        %2333 = vmatmul.f32.gmra.mxu0 %v2306
        %v2334 = vpop.f32.mrf.mxu0
        %v2335 = vadd.f32 0.0, %v2334
        %2336 = vmatmul.f32.gmra.mxu0 %v2309
        %v2337 = vpop.f32.mrf.mxu0
        %v2338 = vadd.f32 0.0, %v2337
        %2339 = vdwg.mxu0
        %v2340 = vadd.f32 %v2282, %v2329
        %v2341 = vadd.f32 %v2283, %v2332
        %v2342 = vadd.f32 %v2284, %v2335
        %v2343 = vadd.f32 %v2285, %v2338
        %v2344 = vld [vmem:[%s380] sm:$0xff]
        %v2345 = vld [vmem:[%s380 + $0x8] sm:$0xff]
        %v2346 = vld [vmem:[%s380 + $0x10] sm:$0xff]
        %v2347 = vld [vmem:[%s380 + $0x18] sm:$0xff]
        %2349 = vset.pattern.permute.xlu0 1
        %2350 = vperm.xlu0 %2349, %v2344
        %v2351 = vpop.permute.xlu0 %2350
        %2354 = vset.pattern.permute.xlu0 1
        %2355 = vperm.xlu0 %2354, %v2345
        %v2356 = vpop.permute.xlu0 %2355
        %2359 = vset.pattern.permute.xlu0 1
        %2360 = vperm.xlu0 %2359, %v2346
        %v2361 = vpop.permute.xlu0 %2360
        %2364 = vset.pattern.permute.xlu0 1
        %2365 = vperm.xlu0 %2364, %v2347
        %v2366 = vpop.permute.xlu0 %2365
        %v2368 = vadd.f32 %v2340, %v2351
        %v2369 = vadd.f32 %v2341, %v2356
        %v2370 = vadd.f32 %v2342, %v2361
        %v2371 = vadd.f32 %v2343, %v2366
        %2372 = vmatpush.msra.mxu0 0.0
        %2373 = vmatpush.msra.mxu0 0.0
        %2374 = vmatpush.msra.mxu0 0.0
        %2375 = vmatpush.msra.mxu0 0.0
        %2376 = vmatpush.msra.mxu0 0.0
        %2377 = vmatpush.msra.mxu0 0.0
        %2378 = vmatpush.msra.mxu0 0.0
        %2379 = vmatpush.msra.mxu0 0.0
        %2380 = vmatpush.msra.mxu0 0.0
        %2381 = vmatpush.msra.mxu0 0.0
        %2382 = vmatpush.msra.mxu0 0.0
        %2383 = vmatpush.msra.mxu0 0.0
        %2384 = vmatpush.msra.mxu0 %v2371
        %2385 = vmatpush.msra.mxu0 %v2370
        %2386 = vmatpush.msra.mxu0 %v2369
        %2387 = vmatpush.msra.mxu0 %v2368
        %2388 = vmatmul.f32.gmra.mxu0 %v1312
        %v2389 = vpop.f32.mrf.mxu0
        %v2390 = vadd.f32 0.0, %v2389
        %2391 = vmatmul.f32.gmra.mxu0 %v1315
        %v2392 = vpop.f32.mrf.mxu0
        %v2393 = vadd.f32 0.0, %v2392
        %2394 = vmatmul.f32.gmra.mxu0 %v1318
        %v2395 = vpop.f32.mrf.mxu0
        %v2396 = vadd.f32 0.0, %v2395
        %2397 = vmatmul.f32.gmra.mxu0 %v1321
        %v2398 = vpop.f32.mrf.mxu0
        %v2399 = vadd.f32 0.0, %v2398
        %2400 = vdwg.mxu0
        %v2401 = vsel %vm732, %v2390, 0.0
        %2402 = vadd.xlane.f32.xlu0 %v2401
        %v2403 = vpop.xlane.xlu0 %2402
        %v2404 = vsel %vm732, %v2393, 0.0
        %2405 = vadd.xlane.f32.xlu0 %v2404
        %v2406 = vpop.xlane.xlu0 %2405
        %v2407 = vsel %vm732, %v2396, 0.0
        %2408 = vadd.xlane.f32.xlu0 %v2407
        %v2409 = vpop.xlane.xlu0 %2408
        %v2410 = vsel %vm732, %v2399, 0.0
        %2411 = vadd.xlane.f32.xlu0 %v2410
        %v2412 = vpop.xlane.xlu0 %2411
        %v2413 = vmul.f32 %v2403, 0.0017361111
        %v2414 = vmul.f32 %v2406, 0.0017361111
        %v2415 = vmul.f32 %v2409, 0.0017361111
        %v2416 = vmul.f32 %v2412, 0.0017361111
        %v2417 = vmul.f32 %v2368, %v2368
        %v2418 = vmul.f32 %v2369, %v2369
        %v2419 = vmul.f32 %v2370, %v2370
        %v2420 = vmul.f32 %v2371, %v2371
        %2421 = vmatpush.msra.mxu0 0.0
        %2422 = vmatpush.msra.mxu0 0.0
        %2423 = vmatpush.msra.mxu0 0.0
        %2424 = vmatpush.msra.mxu0 0.0
        %2425 = vmatpush.msra.mxu0 0.0
        %2426 = vmatpush.msra.mxu0 0.0
        %2427 = vmatpush.msra.mxu0 0.0
        %2428 = vmatpush.msra.mxu0 0.0
        %2429 = vmatpush.msra.mxu0 0.0
        %2430 = vmatpush.msra.mxu0 0.0
        %2431 = vmatpush.msra.mxu0 0.0
        %2432 = vmatpush.msra.mxu0 0.0
        %2433 = vmatpush.msra.mxu0 %v2420
        %2434 = vmatpush.msra.mxu0 %v2419
        %2435 = vmatpush.msra.mxu0 %v2418
        %2436 = vmatpush.msra.mxu0 %v2417
        %2437 = vmatmul.f32.gmra.mxu0 %v1312
        %v2438 = vpop.f32.mrf.mxu0
        %v2439 = vadd.f32 0.0, %v2438
        %2440 = vmatmul.f32.gmra.mxu0 %v1315
        %v2441 = vpop.f32.mrf.mxu0
        %v2442 = vadd.f32 0.0, %v2441
        %2443 = vmatmul.f32.gmra.mxu0 %v1318
        %v2444 = vpop.f32.mrf.mxu0
        %v2445 = vadd.f32 0.0, %v2444
        %2446 = vmatmul.f32.gmra.mxu0 %v1321
        %v2447 = vpop.f32.mrf.mxu0
        %v2448 = vadd.f32 0.0, %v2447
        %2449 = vdwg.mxu0
        %v2450 = vsel %vm732, %v2439, 0.0
        %2451 = vadd.xlane.f32.xlu0 %v2450
        %v2452 = vpop.xlane.xlu0 %2451
        %v2453 = vsel %vm732, %v2442, 0.0
        %2454 = vadd.xlane.f32.xlu0 %v2453
        %v2455 = vpop.xlane.xlu0 %2454
        %v2456 = vsel %vm732, %v2445, 0.0
        %2457 = vadd.xlane.f32.xlu0 %v2456
        %v2458 = vpop.xlane.xlu0 %2457
        %v2459 = vsel %vm732, %v2448, 0.0
        %2460 = vadd.xlane.f32.xlu0 %v2459
        %v2461 = vpop.xlane.xlu0 %2460
        %v2462 = vmul.f32 %v2452, 0.0017361111
        %v2463 = vmul.f32 %v2455, 0.0017361111
        %v2464 = vmul.f32 %v2458, 0.0017361111
        %v2465 = vmul.f32 %v2461, 0.0017361111
        %v2466 = vmul.f32 %v2413, %v2413
        %v2467 = vmul.f32 %v2414, %v2414
        %v2468 = vmul.f32 %v2415, %v2415
        %v2469 = vmul.f32 %v2416, %v2416
        %v2470 = vsub.f32 %v2462, %v2466
        %v2471 = vsub.f32 %v2463, %v2467
        %v2472 = vsub.f32 %v2464, %v2468
        %v2473 = vsub.f32 %v2465, %v2469
        %v2474 = vsub.f32 %v2368, %v2413
        %v2475 = vsub.f32 %v2369, %v2414
        %v2476 = vsub.f32 %v2370, %v2415
        %v2477 = vsub.f32 %v2371, %v2416
        %v2478 = vadd.f32 %v2470, 1e-05
        %v2479 = vadd.f32 %v2471, 1e-05
        %v2480 = vadd.f32 %v2472, 1e-05
        %v2481 = vadd.f32 %v2473, 1e-05
        %v2482 = vrsqrt.pop %v2478
        %v2483 = vmul.f32 %v2482, %v2478
        %v2484 = vmul.f32 %v2483, %v2482
        %v2485 = vmul.f32 0.5, %v2484
        %v2486 = vsub.f32 1.5, %v2485
        %v2487 = vmul.f32 %v2482, %v2486
        %vm2488 = vweird.f32 %v2478
        %vm2489 = vweird.f32 %v2482
        %vm2490 = vmor %vm2488, %vm2489
        %v2491 = vsel %vm2490, %v2482, %v2487
        %v2492 = vrsqrt.pop %v2479
        %v2493 = vmul.f32 %v2492, %v2479
        %v2494 = vmul.f32 %v2493, %v2492
        %v2495 = vmul.f32 0.5, %v2494
        %v2496 = vsub.f32 1.5, %v2495
        %v2497 = vmul.f32 %v2492, %v2496
        %vm2498 = vweird.f32 %v2479
        %vm2499 = vweird.f32 %v2492
        %vm2500 = vmor %vm2498, %vm2499
        %v2501 = vsel %vm2500, %v2492, %v2497
        %v2502 = vrsqrt.pop %v2480
        %v2503 = vmul.f32 %v2502, %v2480
        %v2504 = vmul.f32 %v2503, %v2502
        %v2505 = vmul.f32 0.5, %v2504
        %v2506 = vsub.f32 1.5, %v2505
        %v2507 = vmul.f32 %v2502, %v2506
        %vm2508 = vweird.f32 %v2480
        %vm2509 = vweird.f32 %v2502
        %vm2510 = vmor %vm2508, %vm2509
        %v2511 = vsel %vm2510, %v2502, %v2507
        %v2512 = vrsqrt.pop %v2481
        %v2513 = vmul.f32 %v2512, %v2481
        %v2514 = vmul.f32 %v2513, %v2512
        %v2515 = vmul.f32 0.5, %v2514
        %v2516 = vsub.f32 1.5, %v2515
        %v2517 = vmul.f32 %v2512, %v2516
        %vm2518 = vweird.f32 %v2481
        %vm2519 = vweird.f32 %v2512
        %vm2520 = vmor %vm2518, %vm2519
        %v2521 = vsel %vm2520, %v2512, %v2517
        %v2522 = vmul.f32 %v2474, %v2491
        %v2523 = vmul.f32 %v2475, %v2501
        %v2524 = vmul.f32 %v2476, %v2511
        %v2525 = vmul.f32 %v2477, %v2521
        %v2526 = vmul.f32 %v2522, %v1480
        %v2527 = vmul.f32 %v2523, %v1485
        %v2528 = vmul.f32 %v2524, %v1490
        %v2529 = vmul.f32 %v2525, %v1495
        %v2530 = vadd.f32 %v2526, %v1503
        %v2531 = vadd.f32 %v2527, %v1507
        %v2532 = vadd.f32 %v2528, %v1511
        %v2533 = vadd.f32 %v2529, %v1515
        %v2534 = vmax.f32 %v2530, 0.0
        %v2535 = vmax.f32 %v2531, 0.0
        %v2536 = vmax.f32 %v2532, 0.0
        %v2537 = vmax.f32 %v2533, 0.0
        %v2538 = vld [vmem:[%s360 + $0x240] sm:$0xff]
        %v2539 = vld [vmem:[%s360 + $0x248] sm:$0xff]
        %v2540 = vld [vmem:[%s360 + $0x250] sm:$0xff]
        %v2541 = vld [vmem:[%s360 + $0x258] sm:$0xff]
        %v2542 = vld [vmem:[%s360 + $0x260] sm:$0xff]
        %v2543 = vld [vmem:[%s360 + $0x268] sm:$0xff]
        %v2544 = vld [vmem:[%s360 + $0x270] sm:$0xff]
        %v2545 = vld [vmem:[%s360 + $0x278] sm:$0xff]
        %v2546 = vld [vmem:[%s360 + $0x280] sm:$0xff]
        %v2547 = vld [vmem:[%s360 + $0x288] sm:$0xff]
        %v2548 = vld [vmem:[%s360 + $0x290] sm:$0xff]
        %v2549 = vld [vmem:[%s360 + $0x298] sm:$0xff]
        %v2550 = vld [vmem:[%s360 + $0x2a0] sm:$0xff]
        %v2551 = vld [vmem:[%s360 + $0x2a8] sm:$0xff]
        %v2552 = vld [vmem:[%s360 + $0x2b0] sm:$0xff]
        %v2553 = vld [vmem:[%s360 + $0x2b8] sm:$0xff]
        %v2554 = vld [vmem:[%s360 + $0x2c0] sm:$0xff]
        %v2555 = vld [vmem:[%s360 + $0x2c8] sm:$0xff]
        %v2556 = vld [vmem:[%s360 + $0x2d0] sm:$0xff]
        %v2557 = vld [vmem:[%s360 + $0x2d8] sm:$0xff]
        %v2558 = vld [vmem:[%s360 + $0x2e0] sm:$0xff]
        %v2559 = vld [vmem:[%s360 + $0x2e8] sm:$0xff]
        %v2560 = vld [vmem:[%s360 + $0x2f0] sm:$0xff]
        %v2561 = vld [vmem:[%s360 + $0x2f8] sm:$0xff]
        %v2562 = vld [vmem:[%s360 + $0x300] sm:$0xff]
        %v2563 = vld [vmem:[%s360 + $0x308] sm:$0xff]
        %v2564 = vld [vmem:[%s360 + $0x310] sm:$0xff]
        %v2565 = vld [vmem:[%s360 + $0x318] sm:$0xff]
        %v2566 = vld [vmem:[%s360 + $0x320] sm:$0xff]
        %v2567 = vld [vmem:[%s360 + $0x328] sm:$0xff]
        %v2568 = vld [vmem:[%s360 + $0x330] sm:$0xff]
        %v2569 = vld [vmem:[%s360 + $0x338] sm:$0xff]
        %v2570 = vld [vmem:[%s360 + $0x340] sm:$0xff]
        %v2571 = vld [vmem:[%s360 + $0x348] sm:$0xff]
        %v2572 = vld [vmem:[%s360 + $0x350] sm:$0xff]
        %v2573 = vld [vmem:[%s360 + $0x358] sm:$0xff]
        %v2575 = vsel %vm498, %v2538, 0
        %v2578 = vsel %vm498, %v2539, 0
        %v2581 = vsel %vm498, %v2540, 0
        %v2584 = vsel %vm498, %v2541, 0
        %v2587 = vsel %vm498, %v2542, 0
        %v2590 = vsel %vm498, %v2543, 0
        %v2593 = vsel %vm498, %v2544, 0
        %v2596 = vsel %vm498, %v2545, 0
        %v2599 = vsel %vm498, %v2546, 0
        %v2602 = vsel %vm498, %v2547, 0
        %v2605 = vsel %vm498, %v2548, 0
        %v2608 = vsel %vm498, %v2549, 0
        %v2611 = vsel %vm498, %v2550, 0
        %v2614 = vsel %vm498, %v2551, 0
        %v2617 = vsel %vm498, %v2552, 0
        %v2620 = vsel %vm498, %v2553, 0
        %v2623 = vsel %vm498, %v2554, 0
        %v2626 = vsel %vm498, %v2555, 0
        %v2629 = vsel %vm498, %v2556, 0
        %v2632 = vsel %vm498, %v2557, 0
        %v2635 = vsel %vm498, %v2558, 0
        %v2638 = vsel %vm498, %v2559, 0
        %v2641 = vsel %vm498, %v2560, 0
        %v2644 = vsel %vm498, %v2561, 0
        %v2647 = vsel %vm498, %v2562, 0
        %v2650 = vsel %vm498, %v2563, 0
        %v2653 = vsel %vm498, %v2564, 0
        %v2656 = vsel %vm498, %v2565, 0
        %v2659 = vsel %vm498, %v2566, 0
        %v2662 = vsel %vm498, %v2567, 0
        %v2665 = vsel %vm498, %v2568, 0
        %v2668 = vsel %vm498, %v2569, 0
        %v2671 = vsel %vm498, %v2570, 0
        %v2674 = vsel %vm498, %v2571, 0
        %v2677 = vsel %vm498, %v2572, 0
        %v2680 = vsel %vm498, %v2573, 0
        %2682 = vmatpush.msra.mxu0 0.0
        %2683 = vmatpush.msra.mxu0 0.0
        %2684 = vmatpush.msra.mxu0 0.0
        %2685 = vmatpush.msra.mxu0 0.0
        %2686 = vmatpush.msra.mxu0 0.0
        %2687 = vmatpush.msra.mxu0 0.0
        %2688 = vmatpush.msra.mxu0 0.0
        %2689 = vmatpush.msra.mxu0 0.0
        %2690 = vmatpush.msra.mxu0 0.0
        %2691 = vmatpush.msra.mxu0 0.0
        %2692 = vmatpush.msra.mxu0 0.0
        %2693 = vmatpush.msra.mxu0 0.0
        %2694 = vmatpush.msra.mxu0 %v2537
        %2695 = vmatpush.msra.mxu0 %v2536
        %2696 = vmatpush.msra.mxu0 %v2535
        %2697 = vmatpush.msra.mxu0 %v2534
        %2698 = vmatmul.f32.gmra.mxu0 %v2575
        %v2699 = vpop.f32.mrf.mxu0
        %v2700 = vadd.f32 0.0, %v2699
        %2701 = vmatmul.f32.gmra.mxu0 %v2578
        %v2702 = vpop.f32.mrf.mxu0
        %v2703 = vadd.f32 0.0, %v2702
        %2704 = vmatmul.f32.gmra.mxu0 %v2581
        %v2705 = vpop.f32.mrf.mxu0
        %v2706 = vadd.f32 0.0, %v2705
        %2707 = vmatmul.f32.gmra.mxu0 %v2584
        %v2708 = vpop.f32.mrf.mxu0
        %v2709 = vadd.f32 0.0, %v2708
        %2710 = vmatmul.f32.gmra.mxu0 %v2587
        %v2711 = vpop.f32.mrf.mxu0
        %v2712 = vadd.f32 0.0, %v2711
        %2713 = vmatmul.f32.gmra.mxu0 %v2590
        %v2714 = vpop.f32.mrf.mxu0
        %v2715 = vadd.f32 0.0, %v2714
        %2716 = vmatmul.f32.gmra.mxu0 %v2593
        %v2717 = vpop.f32.mrf.mxu0
        %v2718 = vadd.f32 0.0, %v2717
        %2719 = vmatmul.f32.gmra.mxu0 %v2596
        %v2720 = vpop.f32.mrf.mxu0
        %v2721 = vadd.f32 0.0, %v2720
        %2722 = vmatmul.f32.gmra.mxu0 %v2599
        %v2723 = vpop.f32.mrf.mxu0
        %v2724 = vadd.f32 0.0, %v2723
        %2725 = vmatmul.f32.gmra.mxu0 %v2602
        %v2726 = vpop.f32.mrf.mxu0
        %v2727 = vadd.f32 0.0, %v2726
        %2728 = vmatmul.f32.gmra.mxu0 %v2605
        %v2729 = vpop.f32.mrf.mxu0
        %v2730 = vadd.f32 0.0, %v2729
        %2731 = vmatmul.f32.gmra.mxu0 %v2608
        %v2732 = vpop.f32.mrf.mxu0
        %v2733 = vadd.f32 0.0, %v2732
        %2734 = vmatmul.f32.gmra.mxu0 %v2611
        %v2735 = vpop.f32.mrf.mxu0
        %v2736 = vadd.f32 0.0, %v2735
        %2737 = vmatmul.f32.gmra.mxu0 %v2614
        %v2738 = vpop.f32.mrf.mxu0
        %v2739 = vadd.f32 0.0, %v2738
        %2740 = vmatmul.f32.gmra.mxu0 %v2617
        %v2741 = vpop.f32.mrf.mxu0
        %v2742 = vadd.f32 0.0, %v2741
        %2743 = vmatmul.f32.gmra.mxu0 %v2620
        %v2744 = vpop.f32.mrf.mxu0
        %v2745 = vadd.f32 0.0, %v2744
        %2746 = vmatmul.f32.gmra.mxu0 %v2623
        %v2747 = vpop.f32.mrf.mxu0
        %v2748 = vadd.f32 0.0, %v2747
        %2749 = vmatmul.f32.gmra.mxu0 %v2626
        %v2750 = vpop.f32.mrf.mxu0
        %v2751 = vadd.f32 0.0, %v2750
        %2752 = vmatmul.f32.gmra.mxu0 %v2629
        %v2753 = vpop.f32.mrf.mxu0
        %v2754 = vadd.f32 0.0, %v2753
        %2755 = vmatmul.f32.gmra.mxu0 %v2632
        %v2756 = vpop.f32.mrf.mxu0
        %v2757 = vadd.f32 0.0, %v2756
        %2758 = vmatmul.f32.gmra.mxu0 %v2635
        %v2759 = vpop.f32.mrf.mxu0
        %v2760 = vadd.f32 0.0, %v2759
        %2761 = vmatmul.f32.gmra.mxu0 %v2638
        %v2762 = vpop.f32.mrf.mxu0
        %v2763 = vadd.f32 0.0, %v2762
        %2764 = vmatmul.f32.gmra.mxu0 %v2641
        %v2765 = vpop.f32.mrf.mxu0
        %v2766 = vadd.f32 0.0, %v2765
        %2767 = vmatmul.f32.gmra.mxu0 %v2644
        %v2768 = vpop.f32.mrf.mxu0
        %v2769 = vadd.f32 0.0, %v2768
        %2770 = vmatmul.f32.gmra.mxu0 %v2647
        %v2771 = vpop.f32.mrf.mxu0
        %v2772 = vadd.f32 0.0, %v2771
        %2773 = vmatmul.f32.gmra.mxu0 %v2650
        %v2774 = vpop.f32.mrf.mxu0
        %v2775 = vadd.f32 0.0, %v2774
        %2776 = vmatmul.f32.gmra.mxu0 %v2653
        %v2777 = vpop.f32.mrf.mxu0
        %v2778 = vadd.f32 0.0, %v2777
        %2779 = vmatmul.f32.gmra.mxu0 %v2656
        %v2780 = vpop.f32.mrf.mxu0
        %v2781 = vadd.f32 0.0, %v2780
        %2782 = vmatmul.f32.gmra.mxu0 %v2659
        %v2783 = vpop.f32.mrf.mxu0
        %v2784 = vadd.f32 0.0, %v2783
        %2785 = vmatmul.f32.gmra.mxu0 %v2662
        %v2786 = vpop.f32.mrf.mxu0
        %v2787 = vadd.f32 0.0, %v2786
        %2788 = vmatmul.f32.gmra.mxu0 %v2665
        %v2789 = vpop.f32.mrf.mxu0
        %v2790 = vadd.f32 0.0, %v2789
        %2791 = vmatmul.f32.gmra.mxu0 %v2668
        %v2792 = vpop.f32.mrf.mxu0
        %v2793 = vadd.f32 0.0, %v2792
        %2794 = vmatmul.f32.gmra.mxu0 %v2671
        %v2795 = vpop.f32.mrf.mxu0
        %v2796 = vadd.f32 0.0, %v2795
        %2797 = vmatmul.f32.gmra.mxu0 %v2674
        %v2798 = vpop.f32.mrf.mxu0
        %v2799 = vadd.f32 0.0, %v2798
        %2800 = vmatmul.f32.gmra.mxu0 %v2677
        %v2801 = vpop.f32.mrf.mxu0
        %v2802 = vadd.f32 0.0, %v2801
        %2803 = vmatmul.f32.gmra.mxu0 %v2680
        %v2804 = vpop.f32.mrf.mxu0
        %v2805 = vadd.f32 0.0, %v2804
        %2806 = vdwg.mxu0
        %2807 = vst.msk [vmem:[#allocation2] sm:$0xff] %vm732, %v2700
        %2808 = vst.msk [vmem:[#allocation2 + $0x8] sm:$0xff] %vm732, %v2703
        %2809 = vst.msk [vmem:[#allocation2 + $0x10] sm:$0xff] %vm732, %v2706
        %2810 = vst.msk [vmem:[#allocation2 + $0x18] sm:$0xff] %vm732, %v2709
        %2811 = vst.msk [vmem:[#allocation2 + $0x20] sm:$0xff] %vm732, %v2712
        %2812 = vst.msk [vmem:[#allocation2 + $0x28] sm:$0xff] %vm732, %v2715
        %2813 = vst.msk [vmem:[#allocation2 + $0x30] sm:$0xff] %vm732, %v2718
        %2814 = vst.msk [vmem:[#allocation2 + $0x38] sm:$0xff] %vm732, %v2721
        %2815 = vst.msk [vmem:[#allocation2 + $0x40] sm:$0xff] %vm732, %v2724
        %2816 = vst.msk [vmem:[#allocation2 + $0x48] sm:$0xff] %vm732, %v2727
        %2817 = vst.msk [vmem:[#allocation2 + $0x50] sm:$0xff] %vm732, %v2730
        %2818 = vst.msk [vmem:[#allocation2 + $0x58] sm:$0xff] %vm732, %v2733
        %2819 = vst.msk [vmem:[#allocation2 + $0x60] sm:$0xff] %vm732, %v2736
        %2820 = vst.msk [vmem:[#allocation2 + $0x68] sm:$0xff] %vm732, %v2739
        %2821 = vst.msk [vmem:[#allocation2 + $0x70] sm:$0xff] %vm732, %v2742
        %2822 = vst.msk [vmem:[#allocation2 + $0x78] sm:$0xff] %vm732, %v2745
        %2823 = vst.msk [vmem:[#allocation2 + $0x80] sm:$0xff] %vm732, %v2748
        %2824 = vst.msk [vmem:[#allocation2 + $0x88] sm:$0xff] %vm732, %v2751
        %2825 = vst.msk [vmem:[#allocation2 + $0x90] sm:$0xff] %vm732, %v2754
        %2826 = vst.msk [vmem:[#allocation2 + $0x98] sm:$0xff] %vm732, %v2757
        %2827 = vst.msk [vmem:[#allocation2 + $0xa0] sm:$0xff] %vm732, %v2760
        %2828 = vst.msk [vmem:[#allocation2 + $0xa8] sm:$0xff] %vm732, %v2763
        %2829 = vst.msk [vmem:[#allocation2 + $0xb0] sm:$0xff] %vm732, %v2766
        %2830 = vst.msk [vmem:[#allocation2 + $0xb8] sm:$0xff] %vm732, %v2769
        %2831 = vst.msk [vmem:[#allocation2 + $0xc0] sm:$0xff] %vm732, %v2772
        %2832 = vst.msk [vmem:[#allocation2 + $0xc8] sm:$0xff] %vm732, %v2775
        %2833 = vst.msk [vmem:[#allocation2 + $0xd0] sm:$0xff] %vm732, %v2778
        %2834 = vst.msk [vmem:[#allocation2 + $0xd8] sm:$0xff] %vm732, %v2781
        %2835 = vst.msk [vmem:[#allocation2 + $0xe0] sm:$0xff] %vm732, %v2784
        %2836 = vst.msk [vmem:[#allocation2 + $0xe8] sm:$0xff] %vm732, %v2787
        %2837 = vst.msk [vmem:[#allocation2 + $0xf0] sm:$0xff] %vm732, %v2790
        %2838 = vst.msk [vmem:[#allocation2 + $0xf8] sm:$0xff] %vm732, %v2793
        %2839 = vst.msk [vmem:[#allocation2 + $0x100] sm:$0xff] %vm732, %v2796
        %2840 = vst.msk [vmem:[#allocation2 + $0x108] sm:$0xff] %vm732, %v2799
        %2841 = vst.msk [vmem:[#allocation2 + $0x110] sm:$0xff] %vm732, %v2802
        %2842 = vst.msk [vmem:[#allocation2 + $0x118] sm:$0xff] %vm732, %v2805
        %v2843 = vld [vmem:[#allocation2] sm:$0xff]
        %v2844 = vld [vmem:[#allocation2 + $0x8] sm:$0xff]
        %v2845 = vld [vmem:[#allocation2 + $0x10] sm:$0xff]
        %v2846 = vld [vmem:[#allocation2 + $0x18] sm:$0xff]
        %v2847 = vld [vmem:[#allocation8] sm:$0xff]
        %v2848 = vld [vmem:[#allocation8 + $0x8] sm:$0xff]
        %v2849 = vld [vmem:[#allocation8 + $0x10] sm:$0xff]
        %v2850 = vld [vmem:[#allocation8 + $0x18] sm:$0xff]
        %v2851 = vld [vmem:[#allocation8 + $0x20] sm:$0xff]
        %v2852 = vld [vmem:[#allocation8 + $0x28] sm:$0xff]
        %v2853 = vld [vmem:[#allocation8 + $0x30] sm:$0xff]
        %v2854 = vld [vmem:[#allocation8 + $0x38] sm:$0xff]
        %v2855 = vld [vmem:[#allocation8 + $0x40] sm:$0xff]
        %v2856 = vld [vmem:[#allocation2 + $0x20] sm:$0xff]
        %v2857 = vld [vmem:[#allocation2 + $0x28] sm:$0xff]
        %v2858 = vld [vmem:[#allocation2 + $0x30] sm:$0xff]
        %v2859 = vld [vmem:[#allocation2 + $0x38] sm:$0xff]
        %v2860 = vld [vmem:[#allocation8 + $0x48] sm:$0xff]
        %v2861 = vld [vmem:[#allocation8 + $0x50] sm:$0xff]
        %v2862 = vld [vmem:[#allocation8 + $0x58] sm:$0xff]
        %v2863 = vld [vmem:[#allocation8 + $0x60] sm:$0xff]
        %v2864 = vld [vmem:[#allocation8 + $0x68] sm:$0xff]
        %v2865 = vld [vmem:[#allocation8 + $0x70] sm:$0xff]
        %v2866 = vld [vmem:[#allocation8 + $0x78] sm:$0xff]
        %v2867 = vld [vmem:[#allocation8 + $0x80] sm:$0xff]
        %v2868 = vld [vmem:[#allocation8 + $0x88] sm:$0xff]
        %v2870 = vsel %vm732, %v2856, 0
        %v2873 = vsel %vm732, %v2857, 0
        %v2876 = vsel %vm732, %v2858, 0
        %v2879 = vsel %vm732, %v2859, 0
        %2881 = vmatpush.msra.mxu0 0.0
        %2882 = vmatpush.msra.mxu0 0.0
        %2883 = vmatpush.msra.mxu0 0.0
        %2884 = vmatpush.msra.mxu0 0.0
        %2885 = vmatpush.msra.mxu0 0.0
        %2886 = vmatpush.msra.mxu0 0.0
        %2887 = vmatpush.msra.mxu0 0.0
        %2888 = vmatpush.msra.mxu0 %v2868
        %2889 = vmatpush.msra.mxu0 %v2867
        %2890 = vmatpush.msra.mxu0 %v2866
        %2891 = vmatpush.msra.mxu0 %v2865
        %2892 = vmatpush.msra.mxu0 %v2864
        %2893 = vmatpush.msra.mxu0 %v2863
        %2894 = vmatpush.msra.mxu0 %v2862
        %2895 = vmatpush.msra.mxu0 %v2861
        %2896 = vmatpush.msra.mxu0 %v2860
        %2897 = vmatmul.f32.gmra.mxu0 %v2870
        %v2898 = vpop.f32.mrf.mxu0
        %v2899 = vadd.f32 0.0, %v2898
        %2900 = vmatmul.f32.gmra.mxu0 %v2873
        %v2901 = vpop.f32.mrf.mxu0
        %v2902 = vadd.f32 0.0, %v2901
        %2903 = vmatmul.f32.gmra.mxu0 %v2876
        %v2904 = vpop.f32.mrf.mxu0
        %v2905 = vadd.f32 0.0, %v2904
        %2906 = vmatmul.f32.gmra.mxu0 %v2879
        %v2907 = vpop.f32.mrf.mxu0
        %v2908 = vadd.f32 0.0, %v2907
        %2909 = vdwg.mxu0
        %v2911 = vsel %vm732, %v2843, 0
        %v2914 = vsel %vm732, %v2844, 0
        %v2917 = vsel %vm732, %v2845, 0
        %v2920 = vsel %vm732, %v2846, 0
        %2922 = vmatpush.msra.mxu0 0.0
        %2923 = vmatpush.msra.mxu0 0.0
        %2924 = vmatpush.msra.mxu0 0.0
        %2925 = vmatpush.msra.mxu0 0.0
        %2926 = vmatpush.msra.mxu0 0.0
        %2927 = vmatpush.msra.mxu0 0.0
        %2928 = vmatpush.msra.mxu0 0.0
        %2929 = vmatpush.msra.mxu0 %v2855
        %2930 = vmatpush.msra.mxu0 %v2854
        %2931 = vmatpush.msra.mxu0 %v2853
        %2932 = vmatpush.msra.mxu0 %v2852
        %2933 = vmatpush.msra.mxu0 %v2851
        %2934 = vmatpush.msra.mxu0 %v2850
        %2935 = vmatpush.msra.mxu0 %v2849
        %2936 = vmatpush.msra.mxu0 %v2848
        %2937 = vmatpush.msra.mxu0 %v2847
        %2938 = vmatmul.f32.gmra.mxu0 %v2911
        %v2939 = vpop.f32.mrf.mxu0
        %v2940 = vadd.f32 %v2899, %v2939
        %2941 = vmatmul.f32.gmra.mxu0 %v2914
        %v2942 = vpop.f32.mrf.mxu0
        %v2943 = vadd.f32 %v2902, %v2942
        %2944 = vmatmul.f32.gmra.mxu0 %v2917
        %v2945 = vpop.f32.mrf.mxu0
        %v2946 = vadd.f32 %v2905, %v2945
        %2947 = vmatmul.f32.gmra.mxu0 %v2920
        %v2948 = vpop.f32.mrf.mxu0
        %v2949 = vadd.f32 %v2908, %v2948
        %2950 = vdwg.mxu0
        %v2951 = vld [vmem:[#allocation2 + $0x40] sm:$0xff]
        %v2952 = vld [vmem:[#allocation2 + $0x48] sm:$0xff]
        %v2953 = vld [vmem:[#allocation2 + $0x50] sm:$0xff]
        %v2954 = vld [vmem:[#allocation2 + $0x58] sm:$0xff]
        %v2955 = vld [vmem:[#allocation8 + $0x90] sm:$0xff]
        %v2956 = vld [vmem:[#allocation8 + $0x98] sm:$0xff]
        %v2957 = vld [vmem:[#allocation8 + $0xa0] sm:$0xff]
        %v2958 = vld [vmem:[#allocation8 + $0xa8] sm:$0xff]
        %v2959 = vld [vmem:[#allocation8 + $0xb0] sm:$0xff]
        %v2960 = vld [vmem:[#allocation8 + $0xb8] sm:$0xff]
        %v2961 = vld [vmem:[#allocation8 + $0xc0] sm:$0xff]
        %v2962 = vld [vmem:[#allocation8 + $0xc8] sm:$0xff]
        %v2963 = vld [vmem:[#allocation8 + $0xd0] sm:$0xff]
        %v2965 = vsel %vm732, %v2951, 0
        %v2968 = vsel %vm732, %v2952, 0
        %v2971 = vsel %vm732, %v2953, 0
        %v2974 = vsel %vm732, %v2954, 0
        %2976 = vmatpush.msra.mxu0 0.0
        %2977 = vmatpush.msra.mxu0 0.0
        %2978 = vmatpush.msra.mxu0 0.0
        %2979 = vmatpush.msra.mxu0 0.0
        %2980 = vmatpush.msra.mxu0 0.0
        %2981 = vmatpush.msra.mxu0 0.0
        %2982 = vmatpush.msra.mxu0 0.0
        %2983 = vmatpush.msra.mxu0 %v2963
        %2984 = vmatpush.msra.mxu0 %v2962
        %2985 = vmatpush.msra.mxu0 %v2961
        %2986 = vmatpush.msra.mxu0 %v2960
        %2987 = vmatpush.msra.mxu0 %v2959
        %2988 = vmatpush.msra.mxu0 %v2958
        %2989 = vmatpush.msra.mxu0 %v2957
        %2990 = vmatpush.msra.mxu0 %v2956
        %2991 = vmatpush.msra.mxu0 %v2955
        %2992 = vmatmul.f32.gmra.mxu0 %v2965
        %v2993 = vpop.f32.mrf.mxu0
        %v2994 = vadd.f32 0.0, %v2993
        %2995 = vmatmul.f32.gmra.mxu0 %v2968
        %v2996 = vpop.f32.mrf.mxu0
        %v2997 = vadd.f32 0.0, %v2996
        %2998 = vmatmul.f32.gmra.mxu0 %v2971
        %v2999 = vpop.f32.mrf.mxu0
        %v3000 = vadd.f32 0.0, %v2999
        %3001 = vmatmul.f32.gmra.mxu0 %v2974
        %v3002 = vpop.f32.mrf.mxu0
        %v3003 = vadd.f32 0.0, %v3002
        %3004 = vdwg.mxu0
        %v3005 = vadd.f32 %v2940, %v2994
        %v3006 = vadd.f32 %v2943, %v2997
        %v3007 = vadd.f32 %v2946, %v3000
        %v3008 = vadd.f32 %v2949, %v3003
        %v3009 = vld [vmem:[#allocation2 + $0x60] sm:$0xff]
        %v3010 = vld [vmem:[#allocation2 + $0x68] sm:$0xff]
        %v3011 = vld [vmem:[#allocation2 + $0x70] sm:$0xff]
        %v3012 = vld [vmem:[#allocation2 + $0x78] sm:$0xff]
        %v3013 = vld [vmem:[#allocation8 + $0xd8] sm:$0xff]
        %v3014 = vld [vmem:[#allocation8 + $0xe0] sm:$0xff]
        %v3015 = vld [vmem:[#allocation8 + $0xe8] sm:$0xff]
        %v3016 = vld [vmem:[#allocation8 + $0xf0] sm:$0xff]
        %v3017 = vld [vmem:[#allocation8 + $0xf8] sm:$0xff]
        %v3018 = vld [vmem:[#allocation8 + $0x100] sm:$0xff]
        %v3019 = vld [vmem:[#allocation8 + $0x108] sm:$0xff]
        %v3020 = vld [vmem:[#allocation8 + $0x110] sm:$0xff]
        %v3021 = vld [vmem:[#allocation8 + $0x118] sm:$0xff]
        %v3023 = vsel %vm732, %v3009, 0
        %v3026 = vsel %vm732, %v3010, 0
        %v3029 = vsel %vm732, %v3011, 0
        %v3032 = vsel %vm732, %v3012, 0
        %3034 = vmatpush.msra.mxu0 0.0
        %3035 = vmatpush.msra.mxu0 0.0
        %3036 = vmatpush.msra.mxu0 0.0
        %3037 = vmatpush.msra.mxu0 0.0
        %3038 = vmatpush.msra.mxu0 0.0
        %3039 = vmatpush.msra.mxu0 0.0
        %3040 = vmatpush.msra.mxu0 0.0
        %3041 = vmatpush.msra.mxu0 %v3021
        %3042 = vmatpush.msra.mxu0 %v3020
        %3043 = vmatpush.msra.mxu0 %v3019
        %3044 = vmatpush.msra.mxu0 %v3018
        %3045 = vmatpush.msra.mxu0 %v3017
        %3046 = vmatpush.msra.mxu0 %v3016
        %3047 = vmatpush.msra.mxu0 %v3015
        %3048 = vmatpush.msra.mxu0 %v3014
        %3049 = vmatpush.msra.mxu0 %v3013
        %3050 = vmatmul.f32.gmra.mxu0 %v3023
        %v3051 = vpop.f32.mrf.mxu0
        %v3052 = vadd.f32 0.0, %v3051
        %3053 = vmatmul.f32.gmra.mxu0 %v3026
        %v3054 = vpop.f32.mrf.mxu0
        %v3055 = vadd.f32 0.0, %v3054
        %3056 = vmatmul.f32.gmra.mxu0 %v3029
        %v3057 = vpop.f32.mrf.mxu0
        %v3058 = vadd.f32 0.0, %v3057
        %3059 = vmatmul.f32.gmra.mxu0 %v3032
        %v3060 = vpop.f32.mrf.mxu0
        %v3061 = vadd.f32 0.0, %v3060
        %3062 = vdwg.mxu0
        %v3063 = vadd.f32 %v3005, %v3052
        %v3064 = vadd.f32 %v3006, %v3055
        %v3065 = vadd.f32 %v3007, %v3058
        %v3066 = vadd.f32 %v3008, %v3061
        %v3067 = vld [vmem:[#allocation2 + $0x80] sm:$0xff]
        %v3068 = vld [vmem:[#allocation2 + $0x88] sm:$0xff]
        %v3069 = vld [vmem:[#allocation2 + $0x90] sm:$0xff]
        %v3070 = vld [vmem:[#allocation2 + $0x98] sm:$0xff]
        %v3071 = vld [vmem:[#allocation8 + $0x120] sm:$0xff]
        %v3072 = vld [vmem:[#allocation8 + $0x128] sm:$0xff]
        %v3073 = vld [vmem:[#allocation8 + $0x130] sm:$0xff]
        %v3074 = vld [vmem:[#allocation8 + $0x138] sm:$0xff]
        %v3075 = vld [vmem:[#allocation8 + $0x140] sm:$0xff]
        %v3076 = vld [vmem:[#allocation8 + $0x148] sm:$0xff]
        %v3077 = vld [vmem:[#allocation8 + $0x150] sm:$0xff]
        %v3078 = vld [vmem:[#allocation8 + $0x158] sm:$0xff]
        %v3079 = vld [vmem:[#allocation8 + $0x160] sm:$0xff]
        %v3081 = vsel %vm732, %v3067, 0
        %v3084 = vsel %vm732, %v3068, 0
        %v3087 = vsel %vm732, %v3069, 0
        %v3090 = vsel %vm732, %v3070, 0
        %3092 = vmatpush.msra.mxu0 0.0
        %3093 = vmatpush.msra.mxu0 0.0
        %3094 = vmatpush.msra.mxu0 0.0
        %3095 = vmatpush.msra.mxu0 0.0
        %3096 = vmatpush.msra.mxu0 0.0
        %3097 = vmatpush.msra.mxu0 0.0
        %3098 = vmatpush.msra.mxu0 0.0
        %3099 = vmatpush.msra.mxu0 %v3079
        %3100 = vmatpush.msra.mxu0 %v3078
        %3101 = vmatpush.msra.mxu0 %v3077
        %3102 = vmatpush.msra.mxu0 %v3076
        %3103 = vmatpush.msra.mxu0 %v3075
        %3104 = vmatpush.msra.mxu0 %v3074
        %3105 = vmatpush.msra.mxu0 %v3073
        %3106 = vmatpush.msra.mxu0 %v3072
        %3107 = vmatpush.msra.mxu0 %v3071
        %3108 = vmatmul.f32.gmra.mxu0 %v3081
        %v3109 = vpop.f32.mrf.mxu0
        %v3110 = vadd.f32 0.0, %v3109
        %3111 = vmatmul.f32.gmra.mxu0 %v3084
        %v3112 = vpop.f32.mrf.mxu0
        %v3113 = vadd.f32 0.0, %v3112
        %3114 = vmatmul.f32.gmra.mxu0 %v3087
        %v3115 = vpop.f32.mrf.mxu0
        %v3116 = vadd.f32 0.0, %v3115
        %3117 = vmatmul.f32.gmra.mxu0 %v3090
        %v3118 = vpop.f32.mrf.mxu0
        %v3119 = vadd.f32 0.0, %v3118
        %3120 = vdwg.mxu0
        %v3121 = vadd.f32 %v3063, %v3110
        %v3122 = vadd.f32 %v3064, %v3113
        %v3123 = vadd.f32 %v3065, %v3116
        %v3124 = vadd.f32 %v3066, %v3119
        %v3125 = vld [vmem:[#allocation2 + $0xa0] sm:$0xff]
        %v3126 = vld [vmem:[#allocation2 + $0xa8] sm:$0xff]
        %v3127 = vld [vmem:[#allocation2 + $0xb0] sm:$0xff]
        %v3128 = vld [vmem:[#allocation2 + $0xb8] sm:$0xff]
        %v3129 = vld [vmem:[#allocation8 + $0x168] sm:$0xff]
        %v3130 = vld [vmem:[#allocation8 + $0x170] sm:$0xff]
        %v3131 = vld [vmem:[#allocation8 + $0x178] sm:$0xff]
        %v3132 = vld [vmem:[#allocation8 + $0x180] sm:$0xff]
        %v3133 = vld [vmem:[#allocation8 + $0x188] sm:$0xff]
        %v3134 = vld [vmem:[#allocation8 + $0x190] sm:$0xff]
        %v3135 = vld [vmem:[#allocation8 + $0x198] sm:$0xff]
        %v3136 = vld [vmem:[#allocation8 + $0x1a0] sm:$0xff]
        %v3137 = vld [vmem:[#allocation8 + $0x1a8] sm:$0xff]
        %v3139 = vsel %vm732, %v3125, 0
        %v3142 = vsel %vm732, %v3126, 0
        %v3145 = vsel %vm732, %v3127, 0
        %v3148 = vsel %vm732, %v3128, 0
        %3150 = vmatpush.msra.mxu0 0.0
        %3151 = vmatpush.msra.mxu0 0.0
        %3152 = vmatpush.msra.mxu0 0.0
        %3153 = vmatpush.msra.mxu0 0.0
        %3154 = vmatpush.msra.mxu0 0.0
        %3155 = vmatpush.msra.mxu0 0.0
        %3156 = vmatpush.msra.mxu0 0.0
        %3157 = vmatpush.msra.mxu0 %v3137
        %3158 = vmatpush.msra.mxu0 %v3136
        %3159 = vmatpush.msra.mxu0 %v3135
        %3160 = vmatpush.msra.mxu0 %v3134
        %3161 = vmatpush.msra.mxu0 %v3133
        %3162 = vmatpush.msra.mxu0 %v3132
        %3163 = vmatpush.msra.mxu0 %v3131
        %3164 = vmatpush.msra.mxu0 %v3130
        %3165 = vmatpush.msra.mxu0 %v3129
        %3166 = vmatmul.f32.gmra.mxu0 %v3139
        %v3167 = vpop.f32.mrf.mxu0
        %v3168 = vadd.f32 0.0, %v3167
        %3169 = vmatmul.f32.gmra.mxu0 %v3142
        %v3170 = vpop.f32.mrf.mxu0
        %v3171 = vadd.f32 0.0, %v3170
        %3172 = vmatmul.f32.gmra.mxu0 %v3145
        %v3173 = vpop.f32.mrf.mxu0
        %v3174 = vadd.f32 0.0, %v3173
        %3175 = vmatmul.f32.gmra.mxu0 %v3148
        %v3176 = vpop.f32.mrf.mxu0
        %v3177 = vadd.f32 0.0, %v3176
        %3178 = vdwg.mxu0
        %v3179 = vadd.f32 %v3121, %v3168
        %v3180 = vadd.f32 %v3122, %v3171
        %v3181 = vadd.f32 %v3123, %v3174
        %v3182 = vadd.f32 %v3124, %v3177
        %v3183 = vld [vmem:[#allocation2 + $0xc0] sm:$0xff]
        %v3184 = vld [vmem:[#allocation2 + $0xc8] sm:$0xff]
        %v3185 = vld [vmem:[#allocation2 + $0xd0] sm:$0xff]
        %v3186 = vld [vmem:[#allocation2 + $0xd8] sm:$0xff]
        %v3187 = vld [vmem:[#allocation8 + $0x1b0] sm:$0xff]
        %v3188 = vld [vmem:[#allocation8 + $0x1b8] sm:$0xff]
        %v3189 = vld [vmem:[#allocation8 + $0x1c0] sm:$0xff]
        %v3190 = vld [vmem:[#allocation8 + $0x1c8] sm:$0xff]
        %v3191 = vld [vmem:[#allocation8 + $0x1d0] sm:$0xff]
        %v3192 = vld [vmem:[#allocation8 + $0x1d8] sm:$0xff]
        %v3193 = vld [vmem:[#allocation8 + $0x1e0] sm:$0xff]
        %v3194 = vld [vmem:[#allocation8 + $0x1e8] sm:$0xff]
        %v3195 = vld [vmem:[#allocation8 + $0x1f0] sm:$0xff]
        %v3197 = vsel %vm732, %v3183, 0
        %v3200 = vsel %vm732, %v3184, 0
        %v3203 = vsel %vm732, %v3185, 0
        %v3206 = vsel %vm732, %v3186, 0
        %3208 = vmatpush.msra.mxu0 0.0
        %3209 = vmatpush.msra.mxu0 0.0
        %3210 = vmatpush.msra.mxu0 0.0
        %3211 = vmatpush.msra.mxu0 0.0
        %3212 = vmatpush.msra.mxu0 0.0
        %3213 = vmatpush.msra.mxu0 0.0
        %3214 = vmatpush.msra.mxu0 0.0
        %3215 = vmatpush.msra.mxu0 %v3195
        %3216 = vmatpush.msra.mxu0 %v3194
        %3217 = vmatpush.msra.mxu0 %v3193
        %3218 = vmatpush.msra.mxu0 %v3192
        %3219 = vmatpush.msra.mxu0 %v3191
        %3220 = vmatpush.msra.mxu0 %v3190
        %3221 = vmatpush.msra.mxu0 %v3189
        %3222 = vmatpush.msra.mxu0 %v3188
        %3223 = vmatpush.msra.mxu0 %v3187
        %3224 = vmatmul.f32.gmra.mxu0 %v3197
        %v3225 = vpop.f32.mrf.mxu0
        %v3226 = vadd.f32 0.0, %v3225
        %3227 = vmatmul.f32.gmra.mxu0 %v3200
        %v3228 = vpop.f32.mrf.mxu0
        %v3229 = vadd.f32 0.0, %v3228
        %3230 = vmatmul.f32.gmra.mxu0 %v3203
        %v3231 = vpop.f32.mrf.mxu0
        %v3232 = vadd.f32 0.0, %v3231
        %3233 = vmatmul.f32.gmra.mxu0 %v3206
        %v3234 = vpop.f32.mrf.mxu0
        %v3235 = vadd.f32 0.0, %v3234
        %3236 = vdwg.mxu0
        %v3237 = vadd.f32 %v3179, %v3226
        %v3238 = vadd.f32 %v3180, %v3229
        %v3239 = vadd.f32 %v3181, %v3232
        %v3240 = vadd.f32 %v3182, %v3235
        %v3241 = vld [vmem:[#allocation2 + $0xe0] sm:$0xff]
        %v3242 = vld [vmem:[#allocation2 + $0xe8] sm:$0xff]
        %v3243 = vld [vmem:[#allocation2 + $0xf0] sm:$0xff]
        %v3244 = vld [vmem:[#allocation2 + $0xf8] sm:$0xff]
        %v3245 = vld [vmem:[#allocation8 + $0x1f8] sm:$0xff]
        %v3246 = vld [vmem:[#allocation8 + $0x200] sm:$0xff]
        %v3247 = vld [vmem:[#allocation8 + $0x208] sm:$0xff]
        %v3248 = vld [vmem:[#allocation8 + $0x210] sm:$0xff]
        %v3249 = vld [vmem:[#allocation8 + $0x218] sm:$0xff]
        %v3250 = vld [vmem:[#allocation8 + $0x220] sm:$0xff]
        %v3251 = vld [vmem:[#allocation8 + $0x228] sm:$0xff]
        %v3252 = vld [vmem:[#allocation8 + $0x230] sm:$0xff]
        %v3253 = vld [vmem:[#allocation8 + $0x238] sm:$0xff]
        %v3255 = vsel %vm732, %v3241, 0
        %v3258 = vsel %vm732, %v3242, 0
        %v3261 = vsel %vm732, %v3243, 0
        %v3264 = vsel %vm732, %v3244, 0
        %3266 = vmatpush.msra.mxu0 0.0
        %3267 = vmatpush.msra.mxu0 0.0
        %3268 = vmatpush.msra.mxu0 0.0
        %3269 = vmatpush.msra.mxu0 0.0
        %3270 = vmatpush.msra.mxu0 0.0
        %3271 = vmatpush.msra.mxu0 0.0
        %3272 = vmatpush.msra.mxu0 0.0
        %3273 = vmatpush.msra.mxu0 %v3253
        %3274 = vmatpush.msra.mxu0 %v3252
        %3275 = vmatpush.msra.mxu0 %v3251
        %3276 = vmatpush.msra.mxu0 %v3250
        %3277 = vmatpush.msra.mxu0 %v3249
        %3278 = vmatpush.msra.mxu0 %v3248
        %3279 = vmatpush.msra.mxu0 %v3247
        %3280 = vmatpush.msra.mxu0 %v3246
        %3281 = vmatpush.msra.mxu0 %v3245
        %3282 = vmatmul.f32.gmra.mxu0 %v3255
        %v3283 = vpop.f32.mrf.mxu0
        %v3284 = vadd.f32 0.0, %v3283
        %3285 = vmatmul.f32.gmra.mxu0 %v3258
        %v3286 = vpop.f32.mrf.mxu0
        %v3287 = vadd.f32 0.0, %v3286
        %3288 = vmatmul.f32.gmra.mxu0 %v3261
        %v3289 = vpop.f32.mrf.mxu0
        %v3290 = vadd.f32 0.0, %v3289
        %3291 = vmatmul.f32.gmra.mxu0 %v3264
        %v3292 = vpop.f32.mrf.mxu0
        %v3293 = vadd.f32 0.0, %v3292
        %3294 = vdwg.mxu0
        %v3295 = vadd.f32 %v3237, %v3284
        %v3296 = vadd.f32 %v3238, %v3287
        %v3297 = vadd.f32 %v3239, %v3290
        %v3298 = vadd.f32 %v3240, %v3293
        %v3299 = vld [vmem:[#allocation2 + $0x100] sm:$0xff]
        %v3300 = vld [vmem:[#allocation2 + $0x108] sm:$0xff]
        %v3301 = vld [vmem:[#allocation2 + $0x110] sm:$0xff]
        %v3302 = vld [vmem:[#allocation2 + $0x118] sm:$0xff]
        %v3303 = vld [vmem:[#allocation8 + $0x240] sm:$0xff]
        %v3304 = vld [vmem:[#allocation8 + $0x248] sm:$0xff]
        %v3305 = vld [vmem:[#allocation8 + $0x250] sm:$0xff]
        %v3306 = vld [vmem:[#allocation8 + $0x258] sm:$0xff]
        %v3307 = vld [vmem:[#allocation8 + $0x260] sm:$0xff]
        %v3308 = vld [vmem:[#allocation8 + $0x268] sm:$0xff]
        %v3309 = vld [vmem:[#allocation8 + $0x270] sm:$0xff]
        %v3310 = vld [vmem:[#allocation8 + $0x278] sm:$0xff]
        %v3311 = vld [vmem:[#allocation8 + $0x280] sm:$0xff]
        %v3313 = vsel %vm732, %v3299, 0
        %v3316 = vsel %vm732, %v3300, 0
        %v3319 = vsel %vm732, %v3301, 0
        %v3322 = vsel %vm732, %v3302, 0
        %3324 = vmatpush.msra.mxu0 0.0
        %3325 = vmatpush.msra.mxu0 0.0
        %3326 = vmatpush.msra.mxu0 0.0
        %3327 = vmatpush.msra.mxu0 0.0
        %3328 = vmatpush.msra.mxu0 0.0
        %3329 = vmatpush.msra.mxu0 0.0
        %3330 = vmatpush.msra.mxu0 0.0
        %3331 = vmatpush.msra.mxu0 %v3311
        %3332 = vmatpush.msra.mxu0 %v3310
        %3333 = vmatpush.msra.mxu0 %v3309
        %3334 = vmatpush.msra.mxu0 %v3308
        %3335 = vmatpush.msra.mxu0 %v3307
        %3336 = vmatpush.msra.mxu0 %v3306
        %3337 = vmatpush.msra.mxu0 %v3305
        %3338 = vmatpush.msra.mxu0 %v3304
        %3339 = vmatpush.msra.mxu0 %v3303
        %3340 = vmatmul.f32.gmra.mxu0 %v3313
        %v3341 = vpop.f32.mrf.mxu0
        %v3342 = vadd.f32 0.0, %v3341
        %3343 = vmatmul.f32.gmra.mxu0 %v3316
        %v3344 = vpop.f32.mrf.mxu0
        %v3345 = vadd.f32 0.0, %v3344
        %3346 = vmatmul.f32.gmra.mxu0 %v3319
        %v3347 = vpop.f32.mrf.mxu0
        %v3348 = vadd.f32 0.0, %v3347
        %3349 = vmatmul.f32.gmra.mxu0 %v3322
        %v3350 = vpop.f32.mrf.mxu0
        %v3351 = vadd.f32 0.0, %v3350
        %3352 = vdwg.mxu0
        %v3353 = vadd.f32 %v3295, %v3342
        %v3354 = vadd.f32 %v3296, %v3345
        %v3355 = vadd.f32 %v3297, %v3348
        %v3356 = vadd.f32 %v3298, %v3351
        %v3357 = vld [vmem:[%s380] sm:$0xff]
        %v3358 = vld [vmem:[%s380 + $0x8] sm:$0xff]
        %v3359 = vld [vmem:[%s380 + $0x10] sm:$0xff]
        %v3360 = vld [vmem:[%s380 + $0x18] sm:$0xff]
        %3362 = vset.pattern.permute.xlu0 2
        %3363 = vperm.xlu0 %3362, %v3357
        %v3364 = vpop.permute.xlu0 %3363
        %3367 = vset.pattern.permute.xlu0 2
        %3368 = vperm.xlu0 %3367, %v3358
        %v3369 = vpop.permute.xlu0 %3368
        %3372 = vset.pattern.permute.xlu0 2
        %3373 = vperm.xlu0 %3372, %v3359
        %v3374 = vpop.permute.xlu0 %3373
        %3377 = vset.pattern.permute.xlu0 2
        %3378 = vperm.xlu0 %3377, %v3360
        %v3379 = vpop.permute.xlu0 %3378
        %v3381 = vadd.f32 %v3353, %v3364
        %v3382 = vadd.f32 %v3354, %v3369
        %v3383 = vadd.f32 %v3355, %v3374
        %v3384 = vadd.f32 %v3356, %v3379
        %3385 = vmatpush.msra.mxu0 0.0
        %3386 = vmatpush.msra.mxu0 0.0
        %3387 = vmatpush.msra.mxu0 0.0
        %3388 = vmatpush.msra.mxu0 0.0
        %3389 = vmatpush.msra.mxu0 0.0
        %3390 = vmatpush.msra.mxu0 0.0
        %3391 = vmatpush.msra.mxu0 0.0
        %3392 = vmatpush.msra.mxu0 0.0
        %3393 = vmatpush.msra.mxu0 0.0
        %3394 = vmatpush.msra.mxu0 0.0
        %3395 = vmatpush.msra.mxu0 0.0
        %3396 = vmatpush.msra.mxu0 0.0
        %3397 = vmatpush.msra.mxu0 %v3384
        %3398 = vmatpush.msra.mxu0 %v3383
        %3399 = vmatpush.msra.mxu0 %v3382
        %3400 = vmatpush.msra.mxu0 %v3381
        %3401 = vmatmul.f32.gmra.mxu0 %v1312
        %v3402 = vpop.f32.mrf.mxu0
        %v3403 = vadd.f32 0.0, %v3402
        %3404 = vmatmul.f32.gmra.mxu0 %v1315
        %v3405 = vpop.f32.mrf.mxu0
        %v3406 = vadd.f32 0.0, %v3405
        %3407 = vmatmul.f32.gmra.mxu0 %v1318
        %v3408 = vpop.f32.mrf.mxu0
        %v3409 = vadd.f32 0.0, %v3408
        %3410 = vmatmul.f32.gmra.mxu0 %v1321
        %v3411 = vpop.f32.mrf.mxu0
        %v3412 = vadd.f32 0.0, %v3411
        %3413 = vdwg.mxu0
        %v3414 = vsel %vm732, %v3403, 0.0
        %3415 = vadd.xlane.f32.xlu0 %v3414
        %v3416 = vpop.xlane.xlu0 %3415
        %v3417 = vsel %vm732, %v3406, 0.0
        %3418 = vadd.xlane.f32.xlu0 %v3417
        %v3419 = vpop.xlane.xlu0 %3418
        %v3420 = vsel %vm732, %v3409, 0.0
        %3421 = vadd.xlane.f32.xlu0 %v3420
        %v3422 = vpop.xlane.xlu0 %3421
        %v3423 = vsel %vm732, %v3412, 0.0
        %3424 = vadd.xlane.f32.xlu0 %v3423
        %v3425 = vpop.xlane.xlu0 %3424
        %v3426 = vmul.f32 %v3416, 0.0017361111
        %v3427 = vmul.f32 %v3419, 0.0017361111
        %v3428 = vmul.f32 %v3422, 0.0017361111
        %v3429 = vmul.f32 %v3425, 0.0017361111
        %v3430 = vmul.f32 %v3381, %v3381
        %v3431 = vmul.f32 %v3382, %v3382
        %v3432 = vmul.f32 %v3383, %v3383
        %v3433 = vmul.f32 %v3384, %v3384
        %3434 = vmatpush.msra.mxu0 0.0
        %3435 = vmatpush.msra.mxu0 0.0
        %3436 = vmatpush.msra.mxu0 0.0
        %3437 = vmatpush.msra.mxu0 0.0
        %3438 = vmatpush.msra.mxu0 0.0
        %3439 = vmatpush.msra.mxu0 0.0
        %3440 = vmatpush.msra.mxu0 0.0
        %3441 = vmatpush.msra.mxu0 0.0
        %3442 = vmatpush.msra.mxu0 0.0
        %3443 = vmatpush.msra.mxu0 0.0
        %3444 = vmatpush.msra.mxu0 0.0
        %3445 = vmatpush.msra.mxu0 0.0
        %3446 = vmatpush.msra.mxu0 %v3433
        %3447 = vmatpush.msra.mxu0 %v3432
        %3448 = vmatpush.msra.mxu0 %v3431
        %3449 = vmatpush.msra.mxu0 %v3430
        %3450 = vmatmul.f32.gmra.mxu0 %v1312
        %v3451 = vpop.f32.mrf.mxu0
        %v3452 = vadd.f32 0.0, %v3451
        %3453 = vmatmul.f32.gmra.mxu0 %v1315
        %v3454 = vpop.f32.mrf.mxu0
        %v3455 = vadd.f32 0.0, %v3454
        %3456 = vmatmul.f32.gmra.mxu0 %v1318
        %v3457 = vpop.f32.mrf.mxu0
        %v3458 = vadd.f32 0.0, %v3457
        %3459 = vmatmul.f32.gmra.mxu0 %v1321
        %v3460 = vpop.f32.mrf.mxu0
        %v3461 = vadd.f32 0.0, %v3460
        %3462 = vdwg.mxu0
        %v3463 = vsel %vm732, %v3452, 0.0
        %3464 = vadd.xlane.f32.xlu0 %v3463
        %v3465 = vpop.xlane.xlu0 %3464
        %v3466 = vsel %vm732, %v3455, 0.0
        %3467 = vadd.xlane.f32.xlu0 %v3466
        %v3468 = vpop.xlane.xlu0 %3467
        %v3469 = vsel %vm732, %v3458, 0.0
        %3470 = vadd.xlane.f32.xlu0 %v3469
        %v3471 = vpop.xlane.xlu0 %3470
        %v3472 = vsel %vm732, %v3461, 0.0
        %3473 = vadd.xlane.f32.xlu0 %v3472
        %v3474 = vpop.xlane.xlu0 %3473
        %v3475 = vmul.f32 %v3465, 0.0017361111
        %v3476 = vmul.f32 %v3468, 0.0017361111
        %v3477 = vmul.f32 %v3471, 0.0017361111
        %v3478 = vmul.f32 %v3474, 0.0017361111
        %v3479 = vmul.f32 %v3426, %v3426
        %v3480 = vmul.f32 %v3427, %v3427
        %v3481 = vmul.f32 %v3428, %v3428
        %v3482 = vmul.f32 %v3429, %v3429
        %v3483 = vsub.f32 %v3475, %v3479
        %v3484 = vsub.f32 %v3476, %v3480
        %v3485 = vsub.f32 %v3477, %v3481
        %v3486 = vsub.f32 %v3478, %v3482
        %v3487 = vsub.f32 %v3381, %v3426
        %v3488 = vsub.f32 %v3382, %v3427
        %v3489 = vsub.f32 %v3383, %v3428
        %v3490 = vsub.f32 %v3384, %v3429
        %v3491 = vadd.f32 %v3483, 1e-05
        %v3492 = vadd.f32 %v3484, 1e-05
        %v3493 = vadd.f32 %v3485, 1e-05
        %v3494 = vadd.f32 %v3486, 1e-05
        %v3495 = vrsqrt.pop %v3491
        %v3496 = vmul.f32 %v3495, %v3491
        %v3497 = vmul.f32 %v3496, %v3495
        %v3498 = vmul.f32 0.5, %v3497
        %v3499 = vsub.f32 1.5, %v3498
        %v3500 = vmul.f32 %v3495, %v3499
        %vm3501 = vweird.f32 %v3491
        %vm3502 = vweird.f32 %v3495
        %vm3503 = vmor %vm3501, %vm3502
        %v3504 = vsel %vm3503, %v3495, %v3500
        %v3505 = vrsqrt.pop %v3492
        %v3506 = vmul.f32 %v3505, %v3492
        %v3507 = vmul.f32 %v3506, %v3505
        %v3508 = vmul.f32 0.5, %v3507
        %v3509 = vsub.f32 1.5, %v3508
        %v3510 = vmul.f32 %v3505, %v3509
        %vm3511 = vweird.f32 %v3492
        %vm3512 = vweird.f32 %v3505
        %vm3513 = vmor %vm3511, %vm3512
        %v3514 = vsel %vm3513, %v3505, %v3510
        %v3515 = vrsqrt.pop %v3493
        %v3516 = vmul.f32 %v3515, %v3493
        %v3517 = vmul.f32 %v3516, %v3515
        %v3518 = vmul.f32 0.5, %v3517
        %v3519 = vsub.f32 1.5, %v3518
        %v3520 = vmul.f32 %v3515, %v3519
        %vm3521 = vweird.f32 %v3493
        %vm3522 = vweird.f32 %v3515
        %vm3523 = vmor %vm3521, %vm3522
        %v3524 = vsel %vm3523, %v3515, %v3520
        %v3525 = vrsqrt.pop %v3494
        %v3526 = vmul.f32 %v3525, %v3494
        %v3527 = vmul.f32 %v3526, %v3525
        %v3528 = vmul.f32 0.5, %v3527
        %v3529 = vsub.f32 1.5, %v3528
        %v3530 = vmul.f32 %v3525, %v3529
        %vm3531 = vweird.f32 %v3494
        %vm3532 = vweird.f32 %v3525
        %vm3533 = vmor %vm3531, %vm3532
        %v3534 = vsel %vm3533, %v3525, %v3530
        %v3535 = vmul.f32 %v3487, %v3504
        %v3536 = vmul.f32 %v3488, %v3514
        %v3537 = vmul.f32 %v3489, %v3524
        %v3538 = vmul.f32 %v3490, %v3534
        %v3539 = vmul.f32 %v3535, %v1480
        %v3540 = vmul.f32 %v3536, %v1485
        %v3541 = vmul.f32 %v3537, %v1490
        %v3542 = vmul.f32 %v3538, %v1495
        %v3543 = vadd.f32 %v3539, %v1503
        %v3544 = vadd.f32 %v3540, %v1507
        %v3545 = vadd.f32 %v3541, %v1511
        %v3546 = vadd.f32 %v3542, %v1515
        %v3547 = vmax.f32 %v3543, 0.0
        %v3548 = vmax.f32 %v3544, 0.0
        %v3549 = vmax.f32 %v3545, 0.0
        %v3550 = vmax.f32 %v3546, 0.0
        %v3551 = vld [vmem:[%s370] sm:$0xff]
        %v3552 = vld [vmem:[%s370 + $0x8] sm:$0xff]
        %v3553 = vld [vmem:[%s370 + $0x10] sm:$0xff]
        %v3554 = vld [vmem:[%s370 + $0x18] sm:$0xff]
        %v3556 = vsel %vm498, %v3551, 0
        %v3559 = vsel %vm498, %v3552, 0
        %v3562 = vsel %vm498, %v3553, 0
        %v3565 = vsel %vm498, %v3554, 0
        %3567 = vmatpush.msra.mxu0 0.0
        %3568 = vmatpush.msra.mxu0 0.0
        %3569 = vmatpush.msra.mxu0 0.0
        %3570 = vmatpush.msra.mxu0 0.0
        %3571 = vmatpush.msra.mxu0 0.0
        %3572 = vmatpush.msra.mxu0 0.0
        %3573 = vmatpush.msra.mxu0 0.0
        %3574 = vmatpush.msra.mxu0 0.0
        %3575 = vmatpush.msra.mxu0 0.0
        %3576 = vmatpush.msra.mxu0 0.0
        %3577 = vmatpush.msra.mxu0 0.0
        %3578 = vmatpush.msra.mxu0 0.0
        %3579 = vmatpush.msra.mxu0 %v3550
        %3580 = vmatpush.msra.mxu0 %v3549
        %3581 = vmatpush.msra.mxu0 %v3548
        %3582 = vmatpush.msra.mxu0 %v3547
        %3583 = vmatmul.f32.gmra.mxu0 %v3556
        %v3584 = vpop.f32.mrf.mxu0
        %v3585 = vadd.f32 0.0, %v3584
        %3586 = vmatmul.f32.gmra.mxu0 %v3559
        %v3587 = vpop.f32.mrf.mxu0
        %v3588 = vadd.f32 0.0, %v3587
        %3589 = vmatmul.f32.gmra.mxu0 %v3562
        %v3590 = vpop.f32.mrf.mxu0
        %v3591 = vadd.f32 0.0, %v3590
        %3592 = vmatmul.f32.gmra.mxu0 %v3565
        %v3593 = vpop.f32.mrf.mxu0
        %v3594 = vadd.f32 0.0, %v3593
        %3595 = vdwg.mxu0
        %3596 = vst.msk [vmem:[#allocation2] sm:$0xff] %vm732, %v3585
        %3597 = vst.msk [vmem:[#allocation2 + $0x8] sm:$0xff] %vm732, %v3588
        %3598 = vst.msk [vmem:[#allocation2 + $0x10] sm:$0xff] %vm732, %v3591
        %3599 = vst.msk [vmem:[#allocation2 + $0x18] sm:$0xff] %vm732, %v3594
        %v3600 = vld [vmem:[#allocation2] sm:$0xff]
        %v3601 = vld [vmem:[#allocation10] sm:$0xff]
        %v3602 = vld [vmem:[#allocation10 + $0x8] sm:$0xff]
        %v3603 = vld [vmem:[#allocation10 + $0x10] sm:$0xff]
        %v3604 = vld [vmem:[#allocation10 + $0x18] sm:$0xff]
        %v3605 = vld [vmem:[#allocation10 + $0x20] sm:$0xff]
        %v3606 = vld [vmem:[#allocation10 + $0x28] sm:$0xff]
        %v3607 = vld [vmem:[#allocation10 + $0x30] sm:$0xff]
        %v3608 = vld [vmem:[#allocation10 + $0x38] sm:$0xff]
        %v3609 = vld [vmem:[#allocation10 + $0x40] sm:$0xff]
        %v3610 = vld [vmem:[#allocation2 + $0x8] sm:$0xff]
        %v3611 = vld [vmem:[#allocation10 + $0x48] sm:$0xff]
        %v3612 = vld [vmem:[#allocation10 + $0x50] sm:$0xff]
        %v3613 = vld [vmem:[#allocation10 + $0x58] sm:$0xff]
        %v3614 = vld [vmem:[#allocation10 + $0x60] sm:$0xff]
        %v3615 = vld [vmem:[#allocation10 + $0x68] sm:$0xff]
        %v3616 = vld [vmem:[#allocation10 + $0x70] sm:$0xff]
        %v3617 = vld [vmem:[#allocation10 + $0x78] sm:$0xff]
        %v3618 = vld [vmem:[#allocation10 + $0x80] sm:$0xff]
        %v3619 = vld [vmem:[#allocation10 + $0x88] sm:$0xff]
        %v3621 = vsel %vm732, %v3610, 0
        %3623 = vmatpush.msra.mxu0 0.0
        %3624 = vmatpush.msra.mxu0 0.0
        %3625 = vmatpush.msra.mxu0 0.0
        %3626 = vmatpush.msra.mxu0 0.0
        %3627 = vmatpush.msra.mxu0 0.0
        %3628 = vmatpush.msra.mxu0 0.0
        %3629 = vmatpush.msra.mxu0 0.0
        %3630 = vmatpush.msra.mxu0 %v3619
        %3631 = vmatpush.msra.mxu0 %v3618
        %3632 = vmatpush.msra.mxu0 %v3617
        %3633 = vmatpush.msra.mxu0 %v3616
        %3634 = vmatpush.msra.mxu0 %v3615
        %3635 = vmatpush.msra.mxu0 %v3614
        %3636 = vmatpush.msra.mxu0 %v3613
        %3637 = vmatpush.msra.mxu0 %v3612
        %3638 = vmatpush.msra.mxu0 %v3611
        %3639 = vmatmul.f32.gmra.mxu0 %v3621
        %v3640 = vpop.f32.mrf.mxu0
        %v3641 = vadd.f32 0.0, %v3640
        %3642 = vdwg.mxu0
        %v3644 = vsel %vm732, %v3600, 0
        %3646 = vmatpush.msra.mxu0 0.0
        %3647 = vmatpush.msra.mxu0 0.0
        %3648 = vmatpush.msra.mxu0 0.0
        %3649 = vmatpush.msra.mxu0 0.0
        %3650 = vmatpush.msra.mxu0 0.0
        %3651 = vmatpush.msra.mxu0 0.0
        %3652 = vmatpush.msra.mxu0 0.0
        %3653 = vmatpush.msra.mxu0 %v3609
        %3654 = vmatpush.msra.mxu0 %v3608
        %3655 = vmatpush.msra.mxu0 %v3607
        %3656 = vmatpush.msra.mxu0 %v3606
        %3657 = vmatpush.msra.mxu0 %v3605
        %3658 = vmatpush.msra.mxu0 %v3604
        %3659 = vmatpush.msra.mxu0 %v3603
        %3660 = vmatpush.msra.mxu0 %v3602
        %3661 = vmatpush.msra.mxu0 %v3601
        %3662 = vmatmul.f32.gmra.mxu0 %v3644
        %v3663 = vpop.f32.mrf.mxu0
        %v3664 = vadd.f32 %v3641, %v3663
        %3665 = vdwg.mxu0
        %v3666 = vld [vmem:[#allocation2 + $0x10] sm:$0xff]
        %v3667 = vld [vmem:[#allocation10 + $0x90] sm:$0xff]
        %v3668 = vld [vmem:[#allocation10 + $0x98] sm:$0xff]
        %v3669 = vld [vmem:[#allocation10 + $0xa0] sm:$0xff]
        %v3670 = vld [vmem:[#allocation10 + $0xa8] sm:$0xff]
        %v3671 = vld [vmem:[#allocation10 + $0xb0] sm:$0xff]
        %v3672 = vld [vmem:[#allocation10 + $0xb8] sm:$0xff]
        %v3673 = vld [vmem:[#allocation10 + $0xc0] sm:$0xff]
        %v3674 = vld [vmem:[#allocation10 + $0xc8] sm:$0xff]
        %v3675 = vld [vmem:[#allocation10 + $0xd0] sm:$0xff]
        %v3677 = vsel %vm732, %v3666, 0
        %3679 = vmatpush.msra.mxu0 0.0
        %3680 = vmatpush.msra.mxu0 0.0
        %3681 = vmatpush.msra.mxu0 0.0
        %3682 = vmatpush.msra.mxu0 0.0
        %3683 = vmatpush.msra.mxu0 0.0
        %3684 = vmatpush.msra.mxu0 0.0
        %3685 = vmatpush.msra.mxu0 0.0
        %3686 = vmatpush.msra.mxu0 %v3675
        %3687 = vmatpush.msra.mxu0 %v3674
        %3688 = vmatpush.msra.mxu0 %v3673
        %3689 = vmatpush.msra.mxu0 %v3672
        %3690 = vmatpush.msra.mxu0 %v3671
        %3691 = vmatpush.msra.mxu0 %v3670
        %3692 = vmatpush.msra.mxu0 %v3669
        %3693 = vmatpush.msra.mxu0 %v3668
        %3694 = vmatpush.msra.mxu0 %v3667
        %3695 = vmatmul.f32.gmra.mxu0 %v3677
        %v3696 = vpop.f32.mrf.mxu0
        %v3697 = vadd.f32 0.0, %v3696
        %3698 = vdwg.mxu0
        %v3699 = vadd.f32 %v3664, %v3697
        %v3700 = vld [vmem:[#allocation2 + $0x18] sm:$0xff]
        %v3701 = vld [vmem:[#allocation10 + $0xd8] sm:$0xff]
        %v3702 = vld [vmem:[#allocation10 + $0xe0] sm:$0xff]
        %v3703 = vld [vmem:[#allocation10 + $0xe8] sm:$0xff]
        %v3704 = vld [vmem:[#allocation10 + $0xf0] sm:$0xff]
        %v3705 = vld [vmem:[#allocation10 + $0xf8] sm:$0xff]
        %v3706 = vld [vmem:[#allocation10 + $0x100] sm:$0xff]
        %v3707 = vld [vmem:[#allocation10 + $0x108] sm:$0xff]
        %v3708 = vld [vmem:[#allocation10 + $0x110] sm:$0xff]
        %v3709 = vld [vmem:[#allocation10 + $0x118] sm:$0xff]
        %v3711 = vsel %vm732, %v3700, 0
        %3713 = vmatpush.msra.mxu0 0.0
        %3714 = vmatpush.msra.mxu0 0.0
        %3715 = vmatpush.msra.mxu0 0.0
        %3716 = vmatpush.msra.mxu0 0.0
        %3717 = vmatpush.msra.mxu0 0.0
        %3718 = vmatpush.msra.mxu0 0.0
        %3719 = vmatpush.msra.mxu0 0.0
        %3720 = vmatpush.msra.mxu0 %v3709
        %3721 = vmatpush.msra.mxu0 %v3708
        %3722 = vmatpush.msra.mxu0 %v3707
        %3723 = vmatpush.msra.mxu0 %v3706
        %3724 = vmatpush.msra.mxu0 %v3705
        %3725 = vmatpush.msra.mxu0 %v3704
        %3726 = vmatpush.msra.mxu0 %v3703
        %3727 = vmatpush.msra.mxu0 %v3702
        %3728 = vmatpush.msra.mxu0 %v3701
        %3729 = vmatmul.f32.gmra.mxu0 %v3711
        %v3730 = vpop.f32.mrf.mxu0
        %v3731 = vadd.f32 0.0, %v3730
        %3732 = vdwg.mxu0
        %v3733 = vadd.f32 %v3699, %v3731
        %v3734 = vld [vmem:[%s380] sm:$0xff]
        %3736 = vset.pattern.permute.xlu0 5
        %3737 = vperm.xlu0 %3736, %v3734
        %v3738 = vpop.permute.xlu0 %3737
        %v3740 = vadd.f32 %v3733, %v3738
        %vm3741 = vcmask 146432
        %v3742 = vsel %vm3741, %v3740, 0.0
        %3743 = vadd.xlane.f32.xlu0 %v3742
        %v3744 = vpop.xlane.xlu0 %3743
        %v3745 = vrot.slane %v3744, 4
        %v3746 = vadd.f32 %v3744, %v3745
        %v3747 = vrot.slane %v3746, 2
        %v3748 = vadd.f32 %v3746, %v3747
        %v3749 = vrot.slane %v3748, 1
        %v3750 = vadd.f32 %v3748, %v3749
        %v3751 = vmul.f32 %v3750, 0.0069444445
        %v3752 = vmul.f32 %v3740, %v3740
        %v3753 = vsel %vm3741, %v3752, 0.0
        %3754 = vadd.xlane.f32.xlu0 %v3753
        %v3755 = vpop.xlane.xlu0 %3754
        %v3756 = vrot.slane %v3755, 4
        %v3757 = vadd.f32 %v3755, %v3756
        %v3758 = vrot.slane %v3757, 2
        %v3759 = vadd.f32 %v3757, %v3758
        %v3760 = vrot.slane %v3759, 1
        %v3761 = vadd.f32 %v3759, %v3760
        %v3762 = vmul.f32 %v3761, 0.0069444445
        %v3763 = vmul.f32 %v3751, %v3751
        %v3764 = vsub.f32 %v3762, %v3763
        %v3765 = vld [vmem:[%s380] sm:$0x1]
        %v3766 = vsub.f32 %v3740, %v3751
        %v3767 = vadd.f32 %v3764, 1e-05
        %v3768 = vrsqrt.pop %v3767
        %v3769 = vmul.f32 %v3768, %v3767
        %v3770 = vmul.f32 %v3769, %v3768
        %v3771 = vmul.f32 0.5, %v3770
        %v3772 = vsub.f32 1.5, %v3771
        %v3773 = vmul.f32 %v3768, %v3772
        %vm3774 = vweird.f32 %v3767
        %vm3775 = vweird.f32 %v3768
        %vm3776 = vmor %vm3774, %vm3775
        %v3777 = vsel %vm3776, %v3768, %v3773
        %v3778 = vmul.f32 %v3766, %v3777
        %3780 = vrot.lane.b32.xlu0 %v3765, 122
        %v3781 = vpop.permute.xlu0 %3780
        %s3782 = vtos %v3781
        %v3783 = vstv %s3782
        %v3785 = vmul.f32 %v3778, %v3783
        %3786 = vrot.lane.b32.xlu0 %v3765, 121
        %v3787 = vpop.permute.xlu0 %3786
        %s3788 = vtos %v3787
        %v3789 = vstv %s3788
        %v3791 = vadd.f32 %v3785, %v3789
        %v3792 = vmax.f32 %v3791, 0.0
        %3793 = vst.msk [vmem:[%s449] sm:$0xff] %vm3741, %v3792
        %p3794 = scmp.lt.s32.totalorder %s26, 2
        %s3795 = scalar_select %p3794, %s26, 2
        %s3796 = smul.addr %s3795, 8
        %s3797 = scalar_lea.vmem %s7, %s3796
        // Predicated region
        $region73: #{three_cnn_forward.2} parent=47 // pred_check
          %p3798 = pneg %p211
        $region74: #{three_cnn_forward.2} parent=47 // pred_check_branch
          %3800 = sbr.rel (%p3798) target = $region76
        $region75: #{three_cnn_forward.2} parent=47 // pred_region
          _
        $region76: #{three_cnn_forward.2} parent=47 // pred_fallthru
          _
      $region48: #{three_cnn_forward.2} parent=5 // pred_fallthru
        _
      %p3801 = scmp.le.s32.totalorder 2, %s21
      // Predicated region
      $region77: #{three_cnn_forward.2} parent=5 // pred_check
        %p3802 = pneg %p3801
      $region78: #{three_cnn_forward.2} parent=5 // pred_check_branch
        %3804 = sbr.rel (%p3802) target = $region80
      $region79: #{three_cnn_forward.2} parent=5 // pred_region
        %s3805 = ssub.s32 %s21, 2
        // Predicated region
        $region81: #{three_cnn_forward.2} parent=79 // pred_check
          %p3806 = pneg %p217
        $region82: #{three_cnn_forward.2} parent=79 // pred_check_branch
          %3808 = sbr.rel (%p3806) target = $region84
        $region83: #{three_cnn_forward.2} parent=79 // pred_region
          %p3809 = scmp.lt.s32.totalorder %s27, 2
          %s3810 = scalar_select %p3809, %s27, 2
          %s3811 = smul.addr %s3810, 8
          %s3812 = scalar_lea.vmem %s7, %s3811
        $region84: #{three_cnn_forward.2} parent=79 // pred_fallthru
          _
      $region80: #{three_cnn_forward.2} parent=5 // pred_fallthru
        _
    $region6: #{three_cnn_forward.2} parent=1 // loop_footer
      %s25 = sadd.s32 1, %s21
    $region7: #{three_cnn_forward.2} parent=1 // loop_footer_branch
      %20 = sbr.rel target = $region3
    $region8: #{three_cnn_forward.2} parent=1 // loop_exit
      _
    %3813 = vsyncpa [#allocation4], 1
    %s3814 = scalar_lea.sflag [#allocation4], 1
    %3815 = vsyncpa %s3814, 1
    %3816 = vsyncpa [#allocation6], 1
    %s3817 = scalar_lea.sflag [#allocation6], 1
    %3818 = vsyncpa %s3817, 1
    %3819 = vsyncpa [#allocation9], 1
    %3820 = vsyncpa [#allocation12], 1

</llo_original>
